<compile_context>
chip_gen: v5e
topology: v5e:2x2
jax: 0.10.0
libtpu: 0.0.40
codegen_flags: <defaults>
</compile_context>

<pallas_src>
import functools

import jax
import jax.numpy as jnp
from jax.experimental import pallas as pl
from jax.experimental.pallas import tpu as pltpu

C_IN = 3
C_HID = 300           # real channel count of the torch layers
C_PAD = 384           # lane-dense channel padding (multiple of 128)
KH = KW = 4
K_IM2COL = KH * KW * C_IN   # 48
MAX_TILE_M = 1024     # cap on rows of the activation slab per grid step


def _fused_model_kernel(p_ref, w1_ref, b1_ref, w3_ref, b3_ref,
                        w5_ref, b5_ref, w7_ref, b7_ref, w9_ref, b9_ref,
                        o_ref):
    # conv1 as im2col matmul (bf16 operands, f32 MXU accumulation) + bias+relu,
    # with the bf16 downcast fused into the activation for the next MXU LHS.
    x = jnp.dot(p_ref[...], w1_ref[...], preferred_element_type=jnp.float32)
    x = jnp.maximum(x + b1_ref[...], 0.0).astype(jnp.bfloat16)
    # four 1x1 convs (channel matmuls) + bias + relu
    layers = ((w3_ref, b3_ref), (w5_ref, b5_ref),
              (w7_ref, b7_ref), (w9_ref, b9_ref))
    for li, (w_ref, b_ref) in enumerate(layers):
        x = jnp.dot(x, w_ref[...], preferred_element_type=jnp.float32)
        x = jnp.maximum(x + b_ref[...], 0.0)
        if li < len(layers) - 1:
            x = x.astype(jnp.bfloat16)      # keep inter-layer value bf16
    # final tanh in f32 (EUP; hidden under the MXU weight-tile cadence)
    o_ref[...] = jnp.tanh(x)


def _im2col_valid(x_nhwc, kh, kw):
    """Extract kh x kw patches (stride 1, VALID) -> (N*Ho*Wo, kh*kw*C)."""
    n, h, w, c = x_nhwc.shape
    ho, wo = h - kh + 1, w - kw + 1
    cols = []
    for i in range(kh):
        for j in range(kw):
            cols.append(x_nhwc[:, i:i + ho, j:j + wo, :])
    patches = jnp.concatenate(cols, axis=-1)          # (N, Ho, Wo, kh*kw*C)
    return patches.reshape(n * ho * wo, kh * kw * c), (n, ho, wo)


def _round_up(x, m):
    return (x + m - 1) // m * m


def _pick_tile_m(m):
    """Adaptive M tile: >=4 roughly equal grid steps (v7x megacore balance),
    <~5% padding waste, multiple of 8, capped at MAX_TILE_M."""
    tm = max(-(-m // 4), 128)          # ceil(m/4), at least 128
    tm = _round_up(tm, 8)
    tm = min(tm, MAX_TILE_M)
    tm = min(tm, _round_up(m, 8))      # never bigger than (padded) m itself
    return tm


def prepare_params(params):
    """One-time prep: pad channel dim 300->384 with zeros and cast weights to
    bf16.  Zeros propagate exactly (bias 0 + relu), padded lanes sliced later.
    Input params layout matches init_params():
      w1 (48,300), b1 (1,300), then 4x [w (300,300), b (1,300)]."""
    w1, b1, w3, b3, w5, b5, w7, b7, w9, b9 = params
    dc = C_PAD - C_HID
    bf16 = jnp.bfloat16

    def pad_cols(a):            # (*, 300) -> (*, 384)
        return jnp.pad(a, ((0, 0), (0, dc)))

    def pad_both(a):            # (300, 300) -> (384, 384)
        return jnp.pad(a, ((0, dc), (0, dc)))

    return (pad_cols(w1).astype(bf16), pad_cols(b1),
            pad_both(w3).astype(bf16), pad_cols(b3),
            pad_both(w5).astype(bf16), pad_cols(b5),
            pad_both(w7).astype(bf16), pad_cols(b7),
            pad_both(w9).astype(bf16), pad_cols(b9))


@functools.partial(jax.jit, static_argnames=("out_layout",))
def model_tanh_forward(x_nchw, prepared_params, out_layout="NHWC"):
    """x_nchw: (N, 3, H, W) float32; prepared_params from prepare_params().

    Returns the tanh activation:
      out_layout="NHWC" (default): (N, H-3, W-3, 300)  -- no output transpose
      out_layout="NCHW":           (N, 300, H-3, W-3)  -- torch-like layout
    """
    (w1, b1, w3, b3, w5, b5, w7, b7, w9, b9) = prepared_params

    x_nhwc = jnp.transpose(x_nchw, (0, 2, 3, 1))
    patches, (n, ho, wo) = _im2col_valid(x_nhwc, KH, KW)
    m, k = patches.shape

    # Adaptive M tiling; pad M so every block is full and (8,128)-legal.
    tm = _pick_tile_m(m)
    m_pad = _round_up(m, tm)
    if m_pad != m:
        patches = jnp.pad(patches, ((0, m_pad - m), (0, 0)))
    patches = patches.astype(jnp.bfloat16)

    def resident(shape):
        # Constant index_map -> block stays VMEM-resident across grid steps.
        return pl.BlockSpec(shape, lambda i: (0, 0))

    out = pl.pallas_call(
        _fused_model_kernel,
        out_shape=jax.ShapeDtypeStruct((m_pad, C_PAD), jnp.float32),
        grid=(m_pad // tm,),
        in_specs=[pl.BlockSpec((tm, k), lambda i: (i, 0)),
                  resident((K_IM2COL, C_PAD)), resident((1, C_PAD)),
                  resident((C_PAD, C_PAD)), resident((1, C_PAD)),
                  resident((C_PAD, C_PAD)), resident((1, C_PAD)),
                  resident((C_PAD, C_PAD)), resident((1, C_PAD)),
                  resident((C_PAD, C_PAD)), resident((1, C_PAD))],
        out_specs=pl.BlockSpec((tm, C_PAD), lambda i: (i, 0)),
        compiler_params=pltpu.CompilerParams(
            dimension_semantics=("parallel",)),
    )(patches, w1, b1, w3, b3, w5, b5, w7, b7, w9, b9)

    out = out[:m, :C_HID].reshape(n, ho, wo, C_HID)    # NHWC, real channels
    if out_layout == "NCHW":
        out = jnp.transpose(out, (0, 3, 1, 2))
    return out


def reference_forward_nhwc(x_nchw, params):
    """Pure-JAX f32 reference (lax conv) for validation; returns NHWC."""
    w1, b1, w3, b3, w5, b5, w7, b7, w9, b9 = params
    x = jnp.transpose(x_nchw, (0, 2, 3, 1))
    w1_hwio = w1.reshape(KH, KW, C_IN, C_HID)
    y = jax.lax.conv_general_dilated(
        x, w1_hwio, window_strides=(1, 1), padding="VALID",
        dimension_numbers=("NHWC", "HWIO", "NHWC"))
    y = jnp.maximum(y + b1.reshape(1, 1, 1, -1), 0.0)
    for w, b in ((w3, b3), (w5, b5), (w7, b7), (w9, b9)):
        y = jnp.einsum("nhwc,cd->nhwd", y, w) + b.reshape(1, 1, 1, -1)
        y = jnp.maximum(y, 0.0)
    return jnp.tanh(y)


def init_params(key):
    """Deterministic synthetic parameters matching the torch layer shapes.
    conv1 weight stored as (48, 300) im2col matrix with row index
    ((i*KW + j)*C_IN + c); 1x1 convs as (300, 300) matrices; biases (1,300)."""
    ks = jax.random.split(key, 10)
    scale1 = 1.0 / jnp.sqrt(KH * KW * C_IN)
    scale2 = 1.0 / jnp.sqrt(C_HID)
    w1 = jax.random.normal(ks[0], (KH * KW * C_IN, C_HID), jnp.float32) * scale1
    b1 = jax.random.normal(ks[1], (1, C_HID), jnp.float32) * 0.1
    params = [w1, b1]
    for li in range(4):
        w = jax.random.normal(ks[2 + 2 * li], (C_HID, C_HID), jnp.float32) * scale2
        b = jax.random.normal(ks[3 + 2 * li], (1, C_HID), jnp.float32) * 0.1
        params += [w, b]
    return tuple(params)


if __name__ == "__main__":
    key = jax.random.PRNGKey(0)
    k_x, k_p = jax.random.split(key)
    # Small input consistent with the module (torch used 1x3x64x64); batch 4
    # so M = 4*13*13 = 676, exercising multi-tile (grid=4) + padding paths.
    x = jax.random.normal(k_x, (4, C_IN, 16, 16), jnp.float32)
    params = init_params(k_p)
    prepared = jax.block_until_ready(prepare_params(params))  # one-time prep

    out = model_tanh_forward(x, prepared)              # jitted, NHWC output
    out = jax.block_until_ready(out)

    ref = jax.block_until_ready(reference_forward_nhwc(x, params))
    assert out.shape == (4, 13, 13, C_HID), out.shape
    # bf16 operands with f32 accumulation across 5 fused layers -> ~1e-2 error
    assert jnp.allclose(out, ref, atol=3e-2, rtol=3e-2), "mismatch vs reference"

    print("KERNEL_OK")
</pallas_src>

<mosaic_0001>
module attributes {stable_mosaic.version = 11 : i64} {
  func.func @_fused_model_kernel(%arg0: i32, %arg1: memref<176x48xbf16, #tpu.memory_space<vmem>>, %arg2: memref<48x384xbf16, #tpu.memory_space<vmem>>, %arg3: memref<1x384xf32, #tpu.memory_space<vmem>>, %arg4: memref<384x384xbf16, #tpu.memory_space<vmem>>, %arg5: memref<1x384xf32, #tpu.memory_space<vmem>>, %arg6: memref<384x384xbf16, #tpu.memory_space<vmem>>, %arg7: memref<1x384xf32, #tpu.memory_space<vmem>>, %arg8: memref<384x384xbf16, #tpu.memory_space<vmem>>, %arg9: memref<1x384xf32, #tpu.memory_space<vmem>>, %arg10: memref<384x384xbf16, #tpu.memory_space<vmem>>, %arg11: memref<1x384xf32, #tpu.memory_space<vmem>>, %arg12: memref<176x384xf32, #tpu.memory_space<vmem>>) attributes {dimension_semantics = [#tpu.dimension_semantics<parallel>], iteration_bounds = array<i64: 4>, scalar_prefetch = 0 : i64, scratch_operands = 0 : i64, tpu.core_type = #tpu.core_type<tc>, window_params = [{transform_indices = @transform_0, window_bounds = array<i64: 176, 48>}, {pipeline_mode = #tpu.pipeline_mode<synchronous>, transform_indices = @transform_1, window_bounds = array<i64: 48, 384>}, {pipeline_mode = #tpu.pipeline_mode<synchronous>, transform_indices = @transform_2, window_bounds = array<i64: 1, 384>}, {pipeline_mode = #tpu.pipeline_mode<synchronous>, transform_indices = @transform_3, window_bounds = array<i64: 384, 384>}, {pipeline_mode = #tpu.pipeline_mode<synchronous>, transform_indices = @transform_4, window_bounds = array<i64: 1, 384>}, {pipeline_mode = #tpu.pipeline_mode<synchronous>, transform_indices = @transform_5, window_bounds = array<i64: 384, 384>}, {pipeline_mode = #tpu.pipeline_mode<synchronous>, transform_indices = @transform_6, window_bounds = array<i64: 1, 384>}, {pipeline_mode = #tpu.pipeline_mode<synchronous>, transform_indices = @transform_7, window_bounds = array<i64: 384, 384>}, {pipeline_mode = #tpu.pipeline_mode<synchronous>, transform_indices = @transform_8, window_bounds = array<i64: 1, 384>}, {pipeline_mode = #tpu.pipeline_mode<synchronous>, transform_indices = @transform_9, window_bounds = array<i64: 384, 384>}, {pipeline_mode = #tpu.pipeline_mode<synchronous>, transform_indices = @transform_10, window_bounds = array<i64: 1, 384>}, {transform_indices = @transform_11, window_bounds = array<i64: 176, 384>}]} {
    %c0 = arith.constant 0 : index
    %c0_0 = arith.constant 0 : index
    %0 = vector.load %arg1[%c0, %c0_0] : memref<176x48xbf16, #tpu.memory_space<vmem>>, vector<176x48xbf16>
    %c0_1 = arith.constant 0 : index
    %c0_2 = arith.constant 0 : index
    %1 = vector.load %arg2[%c0_1, %c0_2] : memref<48x384xbf16, #tpu.memory_space<vmem>>, vector<48x384xbf16>
    %cst = arith.constant dense<0.000000e+00> : vector<176x384xf32>
    %2 = tpu.matmul %0, %1, %cst {dimension_numbers = #tpu.dot_dimension_numbers<[1], [0], [0], [1], [0, 0, 1, 1], [], []>} : vector<176x48xbf16>, vector<48x384xbf16>, vector<176x384xf32> -> vector<176x384xf32>
    %c0_3 = arith.constant 0 : index
    %c0_4 = arith.constant 0 : index
    %3 = vector.load %arg3[%c0_3, %c0_4] : memref<1x384xf32, #tpu.memory_space<vmem>>, vector<1x384xf32>
    %4 = vector.broadcast %3 : vector<1x384xf32> to vector<176x384xf32>
    %5 = arith.addf %2, %4 : vector<176x384xf32>
    %cst_5 = arith.constant 0.000000e+00 : f32
    %6 = vector.broadcast %cst_5 : f32 to vector<176x384xf32>
    %7 = arith.maximumf %5, %6 : vector<176x384xf32>
    %8 = arith.truncf %7 : vector<176x384xf32> to vector<176x384xbf16>
    %c0_6 = arith.constant 0 : index
    %c0_7 = arith.constant 0 : index
    %9 = vector.load %arg4[%c0_6, %c0_7] : memref<384x384xbf16, #tpu.memory_space<vmem>>, vector<384x384xbf16>
    %cst_8 = arith.constant dense<0.000000e+00> : vector<176x384xf32>
    %10 = tpu.matmul %8, %9, %cst_8 {dimension_numbers = #tpu.dot_dimension_numbers<[1], [0], [0], [1], [0, 0, 1, 1], [], []>} : vector<176x384xbf16>, vector<384x384xbf16>, vector<176x384xf32> -> vector<176x384xf32>
    %c0_9 = arith.constant 0 : index
    %c0_10 = arith.constant 0 : index
    %11 = vector.load %arg5[%c0_9, %c0_10] : memref<1x384xf32, #tpu.memory_space<vmem>>, vector<1x384xf32>
    %12 = vector.broadcast %11 : vector<1x384xf32> to vector<176x384xf32>
    %13 = arith.addf %10, %12 : vector<176x384xf32>
    %cst_11 = arith.constant 0.000000e+00 : f32
    %14 = vector.broadcast %cst_11 : f32 to vector<176x384xf32>
    %15 = arith.maximumf %13, %14 : vector<176x384xf32>
    %16 = arith.truncf %15 : vector<176x384xf32> to vector<176x384xbf16>
    %c0_12 = arith.constant 0 : index
    %c0_13 = arith.constant 0 : index
    %17 = vector.load %arg6[%c0_12, %c0_13] : memref<384x384xbf16, #tpu.memory_space<vmem>>, vector<384x384xbf16>
    %cst_14 = arith.constant dense<0.000000e+00> : vector<176x384xf32>
    %18 = tpu.matmul %16, %17, %cst_14 {dimension_numbers = #tpu.dot_dimension_numbers<[1], [0], [0], [1], [0, 0, 1, 1], [], []>} : vector<176x384xbf16>, vector<384x384xbf16>, vector<176x384xf32> -> vector<176x384xf32>
    %c0_15 = arith.constant 0 : index
    %c0_16 = arith.constant 0 : index
    %19 = vector.load %arg7[%c0_15, %c0_16] : memref<1x384xf32, #tpu.memory_space<vmem>>, vector<1x384xf32>
    %20 = vector.broadcast %19 : vector<1x384xf32> to vector<176x384xf32>
    %21 = arith.addf %18, %20 : vector<176x384xf32>
    %cst_17 = arith.constant 0.000000e+00 : f32
    %22 = vector.broadcast %cst_17 : f32 to vector<176x384xf32>
    %23 = arith.maximumf %21, %22 : vector<176x384xf32>
    %24 = arith.truncf %23 : vector<176x384xf32> to vector<176x384xbf16>
    %c0_18 = arith.constant 0 : index
    %c0_19 = arith.constant 0 : index
    %25 = vector.load %arg8[%c0_18, %c0_19] : memref<384x384xbf16, #tpu.memory_space<vmem>>, vector<384x384xbf16>
    %cst_20 = arith.constant dense<0.000000e+00> : vector<176x384xf32>
    %26 = tpu.matmul %24, %25, %cst_20 {dimension_numbers = #tpu.dot_dimension_numbers<[1], [0], [0], [1], [0, 0, 1, 1], [], []>} : vector<176x384xbf16>, vector<384x384xbf16>, vector<176x384xf32> -> vector<176x384xf32>
    %c0_21 = arith.constant 0 : index
    %c0_22 = arith.constant 0 : index
    %27 = vector.load %arg9[%c0_21, %c0_22] : memref<1x384xf32, #tpu.memory_space<vmem>>, vector<1x384xf32>
    %28 = vector.broadcast %27 : vector<1x384xf32> to vector<176x384xf32>
    %29 = arith.addf %26, %28 : vector<176x384xf32>
    %cst_23 = arith.constant 0.000000e+00 : f32
    %30 = vector.broadcast %cst_23 : f32 to vector<176x384xf32>
    %31 = arith.maximumf %29, %30 : vector<176x384xf32>
    %32 = arith.truncf %31 : vector<176x384xf32> to vector<176x384xbf16>
    %c0_24 = arith.constant 0 : index
    %c0_25 = arith.constant 0 : index
    %33 = vector.load %arg10[%c0_24, %c0_25] : memref<384x384xbf16, #tpu.memory_space<vmem>>, vector<384x384xbf16>
    %cst_26 = arith.constant dense<0.000000e+00> : vector<176x384xf32>
    %34 = tpu.matmul %32, %33, %cst_26 {dimension_numbers = #tpu.dot_dimension_numbers<[1], [0], [0], [1], [0, 0, 1, 1], [], []>} : vector<176x384xbf16>, vector<384x384xbf16>, vector<176x384xf32> -> vector<176x384xf32>
    %c0_27 = arith.constant 0 : index
    %c0_28 = arith.constant 0 : index
    %35 = vector.load %arg11[%c0_27, %c0_28] : memref<1x384xf32, #tpu.memory_space<vmem>>, vector<1x384xf32>
    %36 = vector.broadcast %35 : vector<1x384xf32> to vector<176x384xf32>
    %37 = arith.addf %34, %36 : vector<176x384xf32>
    %cst_29 = arith.constant 0.000000e+00 : f32
    %38 = vector.broadcast %cst_29 : f32 to vector<176x384xf32>
    %39 = arith.maximumf %37, %38 : vector<176x384xf32>
    %40 = math.tanh %39 : vector<176x384xf32>
    %c0_30 = arith.constant 0 : index
    %c0_31 = arith.constant 0 : index
    %41 = vector.load %arg12[%c0_30, %c0_31] : memref<176x384xf32, #tpu.memory_space<vmem>>, vector<176x384xf32>
    tpu.vector_store %arg12[%c0_30, %c0_31], %40 {strides = array<i32>} : memref<176x384xf32, #tpu.memory_space<vmem>>, vector<176x384xf32>,
    return
  }
  func.func @transform_0(%arg0: i32) -> (i32, i32) {
    %c0_i32 = arith.constant 0 : i32
    %c0_i32_0 = arith.constant 0 : i32
    return %arg0, %c0_i32 : i32, i32
  }
  func.func @transform_1(%arg0: i32) -> (i32, i32) {
    %c0_i32 = arith.constant 0 : i32
    %c0_i32_0 = arith.constant 0 : i32
    %c0_i32_1 = arith.constant 0 : i32
    return %c0_i32, %c0_i32_0 : i32, i32
  }
  func.func @transform_2(%arg0: i32) -> (i32, i32) {
    %c0_i32 = arith.constant 0 : i32
    %c0_i32_0 = arith.constant 0 : i32
    %c0_i32_1 = arith.constant 0 : i32
    return %c0_i32, %c0_i32_0 : i32, i32
  }
  func.func @transform_3(%arg0: i32) -> (i32, i32) {
    %c0_i32 = arith.constant 0 : i32
    %c0_i32_0 = arith.constant 0 : i32
    %c0_i32_1 = arith.constant 0 : i32
    return %c0_i32, %c0_i32_0 : i32, i32
  }
  func.func @transform_4(%arg0: i32) -> (i32, i32) {
    %c0_i32 = arith.constant 0 : i32
    %c0_i32_0 = arith.constant 0 : i32
    %c0_i32_1 = arith.constant 0 : i32
    return %c0_i32, %c0_i32_0 : i32, i32
  }
  func.func @transform_5(%arg0: i32) -> (i32, i32) {
    %c0_i32 = arith.constant 0 : i32
    %c0_i32_0 = arith.constant 0 : i32
    %c0_i32_1 = arith.constant 0 : i32
    return %c0_i32, %c0_i32_0 : i32, i32
  }
  func.func @transform_6(%arg0: i32) -> (i32, i32) {
    %c0_i32 = arith.constant 0 : i32
    %c0_i32_0 = arith.constant 0 : i32
    %c0_i32_1 = arith.constant 0 : i32
    return %c0_i32, %c0_i32_0 : i32, i32
  }
  func.func @transform_7(%arg0: i32) -> (i32, i32) {
    %c0_i32 = arith.constant 0 : i32
    %c0_i32_0 = arith.constant 0 : i32
    %c0_i32_1 = arith.constant 0 : i32
    return %c0_i32, %c0_i32_0 : i32, i32
  }
  func.func @transform_8(%arg0: i32) -> (i32, i32) {
    %c0_i32 = arith.constant 0 : i32
    %c0_i32_0 = arith.constant 0 : i32
    %c0_i32_1 = arith.constant 0 : i32
    return %c0_i32, %c0_i32_0 : i32, i32
  }
  func.func @transform_9(%arg0: i32) -> (i32, i32) {
    %c0_i32 = arith.constant 0 : i32
    %c0_i32_0 = arith.constant 0 : i32
    %c0_i32_1 = arith.constant 0 : i32
    return %c0_i32, %c0_i32_0 : i32, i32
  }
  func.func @transform_10(%arg0: i32) -> (i32, i32) {
    %c0_i32 = arith.constant 0 : i32
    %c0_i32_0 = arith.constant 0 : i32
    %c0_i32_1 = arith.constant 0 : i32
    return %c0_i32, %c0_i32_0 : i32, i32
  }
  func.func @transform_11(%arg0: i32) -> (i32, i32) {
    %c0_i32 = arith.constant 0 : i32
    %c0_i32_0 = arith.constant 0 : i32
    return %arg0, %c0_i32 : i32, i32
  }
}

</mosaic_0001>

<llo_original>
// kernel: model_tanh_forward.1
$region0: #{model_tanh_forward.1}
  #allocation0 [shape = 'u32[]', space=smem, size = 0x4, offset = 0x4, fixed_abs, tag = 'smem constant byte address 0x4 - core index']
  #allocation1 [shape = 'u32[72,128]{1,0:T(1,128)}', space=vmem, size = 0x9000, scoped, tag = 'internal scratch']
  %s0 = inlined_call_operand.vmem [shape: bf16[704,48], index: 0, kind: input, shape index: {}]
  %s1 = inlined_call_operand.vmem [shape: bf16[48,384], index: 1, kind: input, shape index: {}]
  %s2 = inlined_call_operand.vmem [shape: f32[1,384], index: 2, kind: input, shape index: {}]
  %s3 = inlined_call_operand.vmem [shape: bf16[384,384], index: 3, kind: input, shape index: {}]
  %s4 = inlined_call_operand.vmem [shape: f32[1,384], index: 4, kind: input, shape index: {}]
  %s5 = inlined_call_operand.vmem [shape: bf16[384,384], index: 5, kind: input, shape index: {}]
  %s6 = inlined_call_operand.vmem [shape: f32[1,384], index: 6, kind: input, shape index: {}]
  %s7 = inlined_call_operand.vmem [shape: bf16[384,384], index: 7, kind: input, shape index: {}]
  %s8 = inlined_call_operand.vmem [shape: f32[1,384], index: 8, kind: input, shape index: {}]
  %s9 = inlined_call_operand.vmem [shape: bf16[384,384], index: 9, kind: input, shape index: {}]
  %s10 = inlined_call_operand.vmem [shape: f32[1,384], index: 10, kind: input, shape index: {}]
  %s11 = inlined_call_operand.vmem [shape: f32[704,384], index: 11, kind: output, shape index: {}]
  %s12 = sld [smem:[#allocation0]]
  $region77: #{model_tanh_forward.1} parent=0
    _
  %s14 = ssub.s32 1, %s12
  %s15 = scalar_select 0, %s14, %s12
  loop: start=0, step=1, limit=6
  $region2: #{model_tanh_forward.1} parent=0 // loop_pre_header
    _
  $region3: #{model_tanh_forward.1} parent=0 // loop_header
    %s17 = sphi 0, %s21
    %p18 = scmp.ge.s32.totalorder %s17, 6
    %s27 = sphi 0, %s29
    %s30 = sphi 0, %s27
    %s31 = sphi 0, %s30
    %s47 = sphi 0, %s31
    %s51 = sphi 0, %s51
    %s53 = sphi 0, %s51
    %s54 = sphi 0, %s53
    %s68 = sphi 0, %s54
    %s72 = sphi 0, %s72
    %s74 = sphi 0, %s72
    %s75 = sphi 0, %s74
    %s89 = sphi 0, %s75
    %s93 = sphi 0, %s93
    %s95 = sphi 0, %s93
    %s96 = sphi 0, %s95
    %s110 = sphi 0, %s96
    %s114 = sphi 0, %s114
    %s116 = sphi 0, %s114
    %s117 = sphi 0, %s116
    %s131 = sphi 0, %s117
    %s135 = sphi 0, %s135
    %s137 = sphi 0, %s135
    %s138 = sphi 0, %s137
    %s152 = sphi 0, %s138
    %s156 = sphi 0, %s156
    %s158 = sphi 0, %s156
    %s159 = sphi 0, %s158
    %s173 = sphi 0, %s159
    %s177 = sphi 0, %s177
    %s179 = sphi 0, %s177
    %s180 = sphi 0, %s179
    %s194 = sphi 0, %s180
    %s198 = sphi 0, %s198
    %s200 = sphi 0, %s198
    %s201 = sphi 0, %s200
    %s215 = sphi 0, %s201
    %s219 = sphi 0, %s219
    %s221 = sphi 0, %s219
    %s222 = sphi 0, %s221
    %s236 = sphi 0, %s222
    %s240 = sphi 0, %s240
    %s242 = sphi 0, %s240
    %s243 = sphi 0, %s242
    %s257 = sphi 0, %s243
    %s263 = sphi 0, %s265
    %s266 = sphi 0, %s263
    %s267 = sphi 0, %s266
    %s283 = sphi 0, %s267
  $region4: #{model_tanh_forward.1} parent=0 // loop_header_branch
    %20 = sbr.rel (%p18) target = $region8
  $region5: #{model_tanh_forward.1} parent=0 // loop_body
    %s22 = ssub.s32 %s17, 1
    %s23 = ssub.s32 %s17, 2
    %s24 = sadd.s32 %s17, 1
    %s25 = ssub.s32 %s17, %s24
    %p26 = scmp.eq.s32.totalorder %s25, 0
    %s28 = sadd.s32 %s27, 1
    %s29 = scalar_select %p26, %s27, %s28
    %p32 = pneg %p26
    %p33 = scmp.eq.s32.totalorder %s17, 3
    %p34 = por %p32, %p33
    %p35 = scmp.ne.s32.totalorder %s27, %s30
    %p36 = scmp.eq.s32.totalorder %s17, 0
    %p37 = por %p35, %p36
    %p38 = scmp.ne.s32.totalorder %s27, %s30
    %p39 = scmp.eq.s32.totalorder %s22, 3
    %p40 = por %p38, %p39
    %p41 = scmp.ne.s32.totalorder %s30, %s31
    %p42 = scmp.eq.s32.totalorder %s22, 0
    %p43 = por %p41, %p42
    %p44 = scmp.ne.s32.totalorder %s30, %s31
    %p45 = scmp.eq.s32.totalorder %s23, 3
    %p46 = por %p44, %p45
    %p48 = scmp.ne.s32.totalorder %s31, %s47
    %p49 = scmp.eq.s32.totalorder %s23, 0
    %p50 = por %p48, %p49
    %s52 = sadd.s32 %s51, 1
    %p55 = scmp.eq.s32.totalorder %s17, 3
    %p56 = scmp.ne.s32.totalorder %s51, %s53
    %p57 = scmp.eq.s32.totalorder %s17, 0
    %p58 = por %p56, %p57
    %p59 = scmp.ne.s32.totalorder %s51, %s53
    %p60 = scmp.eq.s32.totalorder %s22, 3
    %p61 = por %p59, %p60
    %p62 = scmp.ne.s32.totalorder %s53, %s54
    %p63 = scmp.eq.s32.totalorder %s22, 0
    %p64 = por %p62, %p63
    %p65 = scmp.ne.s32.totalorder %s53, %s54
    %p66 = scmp.eq.s32.totalorder %s23, 3
    %p67 = por %p65, %p66
    %p69 = scmp.ne.s32.totalorder %s54, %s68
    %p70 = scmp.eq.s32.totalorder %s23, 0
    %p71 = por %p69, %p70
    %s73 = sadd.s32 %s72, 1
    %p76 = scmp.eq.s32.totalorder %s17, 3
    %p77 = scmp.ne.s32.totalorder %s72, %s74
    %p78 = scmp.eq.s32.totalorder %s17, 0
    %p79 = por %p77, %p78
    %p80 = scmp.ne.s32.totalorder %s72, %s74
    %p81 = scmp.eq.s32.totalorder %s22, 3
    %p82 = por %p80, %p81
    %p83 = scmp.ne.s32.totalorder %s74, %s75
    %p84 = scmp.eq.s32.totalorder %s22, 0
    %p85 = por %p83, %p84
    %p86 = scmp.ne.s32.totalorder %s74, %s75
    %p87 = scmp.eq.s32.totalorder %s23, 3
    %p88 = por %p86, %p87
    %p90 = scmp.ne.s32.totalorder %s75, %s89
    %p91 = scmp.eq.s32.totalorder %s23, 0
    %p92 = por %p90, %p91
    %s94 = sadd.s32 %s93, 1
    %p97 = scmp.eq.s32.totalorder %s17, 3
    %p98 = scmp.ne.s32.totalorder %s93, %s95
    %p99 = scmp.eq.s32.totalorder %s17, 0
    %p100 = por %p98, %p99
    %p101 = scmp.ne.s32.totalorder %s93, %s95
    %p102 = scmp.eq.s32.totalorder %s22, 3
    %p103 = por %p101, %p102
    %p104 = scmp.ne.s32.totalorder %s95, %s96
    %p105 = scmp.eq.s32.totalorder %s22, 0
    %p106 = por %p104, %p105
    %p107 = scmp.ne.s32.totalorder %s95, %s96
    %p108 = scmp.eq.s32.totalorder %s23, 3
    %p109 = por %p107, %p108
    %p111 = scmp.ne.s32.totalorder %s96, %s110
    %p112 = scmp.eq.s32.totalorder %s23, 0
    %p113 = por %p111, %p112
    %s115 = sadd.s32 %s114, 1
    %p118 = scmp.eq.s32.totalorder %s17, 3
    %p119 = scmp.ne.s32.totalorder %s114, %s116
    %p120 = scmp.eq.s32.totalorder %s17, 0
    %p121 = por %p119, %p120
    %p122 = scmp.ne.s32.totalorder %s114, %s116
    %p123 = scmp.eq.s32.totalorder %s22, 3
    %p124 = por %p122, %p123
    %p125 = scmp.ne.s32.totalorder %s116, %s117
    %p126 = scmp.eq.s32.totalorder %s22, 0
    %p127 = por %p125, %p126
    %p128 = scmp.ne.s32.totalorder %s116, %s117
    %p129 = scmp.eq.s32.totalorder %s23, 3
    %p130 = por %p128, %p129
    %p132 = scmp.ne.s32.totalorder %s117, %s131
    %p133 = scmp.eq.s32.totalorder %s23, 0
    %p134 = por %p132, %p133
    %s136 = sadd.s32 %s135, 1
    %p139 = scmp.eq.s32.totalorder %s17, 3
    %p140 = scmp.ne.s32.totalorder %s135, %s137
    %p141 = scmp.eq.s32.totalorder %s17, 0
    %p142 = por %p140, %p141
    %p143 = scmp.ne.s32.totalorder %s135, %s137
    %p144 = scmp.eq.s32.totalorder %s22, 3
    %p145 = por %p143, %p144
    %p146 = scmp.ne.s32.totalorder %s137, %s138
    %p147 = scmp.eq.s32.totalorder %s22, 0
    %p148 = por %p146, %p147
    %p149 = scmp.ne.s32.totalorder %s137, %s138
    %p150 = scmp.eq.s32.totalorder %s23, 3
    %p151 = por %p149, %p150
    %p153 = scmp.ne.s32.totalorder %s138, %s152
    %p154 = scmp.eq.s32.totalorder %s23, 0
    %p155 = por %p153, %p154
    %s157 = sadd.s32 %s156, 1
    %p160 = scmp.eq.s32.totalorder %s17, 3
    %p161 = scmp.ne.s32.totalorder %s156, %s158
    %p162 = scmp.eq.s32.totalorder %s17, 0
    %p163 = por %p161, %p162
    %p164 = scmp.ne.s32.totalorder %s156, %s158
    %p165 = scmp.eq.s32.totalorder %s22, 3
    %p166 = por %p164, %p165
    %p167 = scmp.ne.s32.totalorder %s158, %s159
    %p168 = scmp.eq.s32.totalorder %s22, 0
    %p169 = por %p167, %p168
    %p170 = scmp.ne.s32.totalorder %s158, %s159
    %p171 = scmp.eq.s32.totalorder %s23, 3
    %p172 = por %p170, %p171
    %p174 = scmp.ne.s32.totalorder %s159, %s173
    %p175 = scmp.eq.s32.totalorder %s23, 0
    %p176 = por %p174, %p175
    %s178 = sadd.s32 %s177, 1
    %p181 = scmp.eq.s32.totalorder %s17, 3
    %p182 = scmp.ne.s32.totalorder %s177, %s179
    %p183 = scmp.eq.s32.totalorder %s17, 0
    %p184 = por %p182, %p183
    %p185 = scmp.ne.s32.totalorder %s177, %s179
    %p186 = scmp.eq.s32.totalorder %s22, 3
    %p187 = por %p185, %p186
    %p188 = scmp.ne.s32.totalorder %s179, %s180
    %p189 = scmp.eq.s32.totalorder %s22, 0
    %p190 = por %p188, %p189
    %p191 = scmp.ne.s32.totalorder %s179, %s180
    %p192 = scmp.eq.s32.totalorder %s23, 3
    %p193 = por %p191, %p192
    %p195 = scmp.ne.s32.totalorder %s180, %s194
    %p196 = scmp.eq.s32.totalorder %s23, 0
    %p197 = por %p195, %p196
    %s199 = sadd.s32 %s198, 1
    %p202 = scmp.eq.s32.totalorder %s17, 3
    %p203 = scmp.ne.s32.totalorder %s198, %s200
    %p204 = scmp.eq.s32.totalorder %s17, 0
    %p205 = por %p203, %p204
    %p206 = scmp.ne.s32.totalorder %s198, %s200
    %p207 = scmp.eq.s32.totalorder %s22, 3
    %p208 = por %p206, %p207
    %p209 = scmp.ne.s32.totalorder %s200, %s201
    %p210 = scmp.eq.s32.totalorder %s22, 0
    %p211 = por %p209, %p210
    %p212 = scmp.ne.s32.totalorder %s200, %s201
    %p213 = scmp.eq.s32.totalorder %s23, 3
    %p214 = por %p212, %p213
    %p216 = scmp.ne.s32.totalorder %s201, %s215
    %p217 = scmp.eq.s32.totalorder %s23, 0
    %p218 = por %p216, %p217
    %s220 = sadd.s32 %s219, 1
    %p223 = scmp.eq.s32.totalorder %s17, 3
    %p224 = scmp.ne.s32.totalorder %s219, %s221
    %p225 = scmp.eq.s32.totalorder %s17, 0
    %p226 = por %p224, %p225
    %p227 = scmp.ne.s32.totalorder %s219, %s221
    %p228 = scmp.eq.s32.totalorder %s22, 3
    %p229 = por %p227, %p228
    %p230 = scmp.ne.s32.totalorder %s221, %s222
    %p231 = scmp.eq.s32.totalorder %s22, 0
    %p232 = por %p230, %p231
    %p233 = scmp.ne.s32.totalorder %s221, %s222
    %p234 = scmp.eq.s32.totalorder %s23, 3
    %p235 = por %p233, %p234
    %p237 = scmp.ne.s32.totalorder %s222, %s236
    %p238 = scmp.eq.s32.totalorder %s23, 0
    %p239 = por %p237, %p238
    %s241 = sadd.s32 %s240, 1
    %p244 = scmp.eq.s32.totalorder %s17, 3
    %p245 = scmp.ne.s32.totalorder %s240, %s242
    %p246 = scmp.eq.s32.totalorder %s17, 0
    %p247 = por %p245, %p246
    %p248 = scmp.ne.s32.totalorder %s240, %s242
    %p249 = scmp.eq.s32.totalorder %s22, 3
    %p250 = por %p248, %p249
    %p251 = scmp.ne.s32.totalorder %s242, %s243
    %p252 = scmp.eq.s32.totalorder %s22, 0
    %p253 = por %p251, %p252
    %p254 = scmp.ne.s32.totalorder %s242, %s243
    %p255 = scmp.eq.s32.totalorder %s23, 3
    %p256 = por %p254, %p255
    %p258 = scmp.ne.s32.totalorder %s243, %s257
    %p259 = scmp.eq.s32.totalorder %s23, 0
    %p260 = por %p258, %p259
    %s261 = ssub.s32 %s17, %s24
    %p262 = scmp.eq.s32.totalorder %s261, 0
    %s264 = sadd.s32 %s263, 1
    %s265 = scalar_select %p262, %s263, %s264
    %p268 = pneg %p262
    %p269 = scmp.eq.s32.totalorder %s17, 3
    %p270 = por %p268, %p269
    %p271 = scmp.ne.s32.totalorder %s263, %s266
    %p272 = scmp.eq.s32.totalorder %s17, 0
    %p273 = por %p271, %p272
    %p274 = scmp.ne.s32.totalorder %s263, %s266
    %p275 = scmp.eq.s32.totalorder %s22, 3
    %p276 = por %p274, %p275
    %p277 = scmp.ne.s32.totalorder %s266, %s267
    %p278 = scmp.eq.s32.totalorder %s22, 0
    %p279 = por %p277, %p278
    %p280 = scmp.ne.s32.totalorder %s266, %s267
    %p281 = scmp.eq.s32.totalorder %s23, 3
    %p282 = por %p280, %p281
    %p284 = scmp.ne.s32.totalorder %s267, %s283
    %p285 = scmp.eq.s32.totalorder %s23, 0
    %p286 = por %p284, %p285
    %p287 = scmp.le.s32.totalorder 1, %s17
    %p288 = scmp.lt.s32.totalorder %s17, 5
    %p289 = pnand %p287, %p288
    %p290 = pneg %p289
    // Predicated region
    $region9: #{model_tanh_forward.1} parent=5 // pred_check
      _
    $region10: #{model_tanh_forward.1} parent=5 // pred_check_branch
      %292 = sbr.rel (%p289) target = $region12
    $region11: #{model_tanh_forward.1} parent=5 // pred_region
      %s293 = ssub.s32 %s17, 1
      // Predicated region
      $region13: #{model_tanh_forward.1} parent=11 // pred_check
        %p294 = pneg %p64
      $region14: #{model_tanh_forward.1} parent=11 // pred_check_branch
        %296 = sbr.rel (%p294) target = $region16
      $region15: #{model_tanh_forward.1} parent=11 // pred_region
        _
      $region16: #{model_tanh_forward.1} parent=11 // pred_fallthru
        _
      // Predicated region
      $region17: #{model_tanh_forward.1} parent=11 // pred_check
        %p297 = pneg %p85
      $region18: #{model_tanh_forward.1} parent=11 // pred_check_branch
        %299 = sbr.rel (%p297) target = $region20
      $region19: #{model_tanh_forward.1} parent=11 // pred_region
        _
      $region20: #{model_tanh_forward.1} parent=11 // pred_fallthru
        _
      // Predicated region
      $region21: #{model_tanh_forward.1} parent=11 // pred_check
        %p300 = pneg %p106
      $region22: #{model_tanh_forward.1} parent=11 // pred_check_branch
        %302 = sbr.rel (%p300) target = $region24
      $region23: #{model_tanh_forward.1} parent=11 // pred_region
        _
      $region24: #{model_tanh_forward.1} parent=11 // pred_fallthru
        _
      // Predicated region
      $region25: #{model_tanh_forward.1} parent=11 // pred_check
        %p303 = pneg %p127
      $region26: #{model_tanh_forward.1} parent=11 // pred_check_branch
        %305 = sbr.rel (%p303) target = $region28
      $region27: #{model_tanh_forward.1} parent=11 // pred_region
        _
      $region28: #{model_tanh_forward.1} parent=11 // pred_fallthru
        _
      // Predicated region
      $region29: #{model_tanh_forward.1} parent=11 // pred_check
        %p306 = pneg %p148
      $region30: #{model_tanh_forward.1} parent=11 // pred_check_branch
        %308 = sbr.rel (%p306) target = $region32
      $region31: #{model_tanh_forward.1} parent=11 // pred_region
        _
      $region32: #{model_tanh_forward.1} parent=11 // pred_fallthru
        _
      // Predicated region
      $region33: #{model_tanh_forward.1} parent=11 // pred_check
        %p309 = pneg %p169
      $region34: #{model_tanh_forward.1} parent=11 // pred_check_branch
        %311 = sbr.rel (%p309) target = $region36
      $region35: #{model_tanh_forward.1} parent=11 // pred_region
        _
      $region36: #{model_tanh_forward.1} parent=11 // pred_fallthru
        _
      // Predicated region
      $region37: #{model_tanh_forward.1} parent=11 // pred_check
        %p312 = pneg %p190
      $region38: #{model_tanh_forward.1} parent=11 // pred_check_branch
        %314 = sbr.rel (%p312) target = $region40
      $region39: #{model_tanh_forward.1} parent=11 // pred_region
        _
      $region40: #{model_tanh_forward.1} parent=11 // pred_fallthru
        _
      // Predicated region
      $region41: #{model_tanh_forward.1} parent=11 // pred_check
        %p315 = pneg %p211
      $region42: #{model_tanh_forward.1} parent=11 // pred_check_branch
        %317 = sbr.rel (%p315) target = $region44
      $region43: #{model_tanh_forward.1} parent=11 // pred_region
        _
      $region44: #{model_tanh_forward.1} parent=11 // pred_fallthru
        _
      // Predicated region
      $region45: #{model_tanh_forward.1} parent=11 // pred_check
        %p318 = pneg %p232
      $region46: #{model_tanh_forward.1} parent=11 // pred_check_branch
        %320 = sbr.rel (%p318) target = $region48
      $region47: #{model_tanh_forward.1} parent=11 // pred_region
        _
      $region48: #{model_tanh_forward.1} parent=11 // pred_fallthru
        _
      // Predicated region
      $region49: #{model_tanh_forward.1} parent=11 // pred_check
        %p321 = pneg %p253
      $region50: #{model_tanh_forward.1} parent=11 // pred_check_branch
        %323 = sbr.rel (%p321) target = $region52
      $region51: #{model_tanh_forward.1} parent=11 // pred_region
        _
      $region52: #{model_tanh_forward.1} parent=11 // pred_fallthru
        _
    $region12: #{model_tanh_forward.1} parent=5 // pred_fallthru
      _
    %p324 = scmp.lt.s32.totalorder %s17, 4
    // Predicated region
    $region53: #{model_tanh_forward.1} parent=5 // pred_check
      %p325 = pneg %p324
    $region54: #{model_tanh_forward.1} parent=5 // pred_check_branch
      %327 = sbr.rel (%p325) target = $region56
    $region55: #{model_tanh_forward.1} parent=5 // pred_region
      // Predicated region
      $region57: #{model_tanh_forward.1} parent=55 // pred_check
        %p328 = pneg %p37
      $region58: #{model_tanh_forward.1} parent=55 // pred_check_branch
        %330 = sbr.rel (%p328) target = $region60
      $region59: #{model_tanh_forward.1} parent=55 // pred_region
        %s331 = smul.u32 22, %s17
        %p332 = scmp.lt.s32.totalorder %s331, 87
        %s333 = scalar_select %p332, %s331, 87
        %s334 = smul.addr %s333, 4
        %s335 = scalar_lea.vmem %s0, %s334
        %s336 = smul.u32 22, %s17
      $region60: #{model_tanh_forward.1} parent=55 // pred_fallthru
        _
    $region56: #{model_tanh_forward.1} parent=5 // pred_fallthru
      _
    %p337 = scmp.le.s32.totalorder 1, %s17
    %p338 = scmp.lt.s32.totalorder %s17, 5
    %p339 = pnand %p337, %p338
    %p340 = pneg %p339
    // Predicated region
    $region61: #{model_tanh_forward.1} parent=5 // pred_check
      _
    $region62: #{model_tanh_forward.1} parent=5 // pred_check_branch
      %342 = sbr.rel (%p339) target = $region64
    $region63: #{model_tanh_forward.1} parent=5 // pred_region
      %s343 = ssub.s32 %s17, 1
      %s344 = smul.u32 22, %s22
      %p345 = scmp.lt.s32.totalorder %s344, 87
      %s346 = scalar_select %p345, %s344, 87
      %s347 = smul.addr %s346, 4
      %s348 = scalar_lea.vmem %s0, %s347
      %p349 = pneg %p43
      %p350 = pneg %p40
      %p351 = pneg %p64
      %p352 = pneg %p61
      %p353 = pneg %p85
      %p354 = pneg %p82
      %p355 = pneg %p106
      %p356 = pneg %p103
      %p357 = pneg %p127
      %p358 = pneg %p124
      %p359 = pneg %p148
      %p360 = pneg %p145
      %p361 = pneg %p169
      %p362 = pneg %p166
      %p363 = pneg %p190
      %p364 = pneg %p187
      %p365 = pneg %p211
      %p366 = pneg %p208
      %p367 = pneg %p232
      %p368 = pneg %p229
      %p369 = pneg %p253
      %p370 = pneg %p250
      %p371 = pneg %p279
      %p372 = pneg %p276
      %s373 = smul.u32 22, %s22
      %p374 = scmp.lt.s32.totalorder %s373, 87
      %s375 = scalar_select %p374, %s373, 87
      %s376 = smul.addr %s375, 3
      %s377 = smul.addr %s376, 8
      %s378 = scalar_lea.vmem %s11, %s377
      %s379 = smul.u32 22, %s22
      %p380 = scmp.lt.s32.totalorder %s379, 87
      %s381 = scalar_select %p380, %s379, 87
      %s382 = smul.addr %s381, 4
      %s383 = scalar_lea.vmem %s0, %s382
      %s384 = smul.u32 22, %s22
      %s385 = smul.u32 22, %s22
      %p386 = scmp.lt.s32.totalorder %s385, 87
      %s387 = scalar_select %p386, %s385, 87
      %s388 = smul.addr %s387, 3
      %s389 = smul.addr %s388, 8
      %s390 = scalar_lea.vmem %s11, %s389
      %s391 = smul.u32 22, %s22
      %v393 = vld [vmem:[%s383] sm:$0xf]
      %v394 = vld [vmem:[%s383 + $0x4] sm:$0xf]
      %v395 = vld [vmem:[%s383 + $0x8] sm:$0xf]
      %v396 = vld [vmem:[%s383 + $0xc] sm:$0xf]
      %v397 = vld [vmem:[%s383 + $0x10] sm:$0xf]
      %v398 = vld [vmem:[%s383 + $0x14] sm:$0xf]
      %v399 = vld [vmem:[%s383 + $0x18] sm:$0xf]
      %v400 = vld [vmem:[%s383 + $0x1c] sm:$0xf]
      %v401 = vld [vmem:[%s383 + $0x20] sm:$0xf]
      %v402 = vld [vmem:[%s383 + $0x24] sm:$0xf]
      %v403 = vld [vmem:[%s383 + $0x28] sm:$0xf]
      %v404 = vld [vmem:[%s383 + $0x2c] sm:$0xf]
      %v405 = vld [vmem:[%s383 + $0x30] sm:$0xf]
      %v406 = vld [vmem:[%s383 + $0x34] sm:$0xf]
      %v407 = vld [vmem:[%s383 + $0x38] sm:$0xf]
      %v408 = vld [vmem:[%s383 + $0x3c] sm:$0xf]
      %v409 = vld [vmem:[%s383 + $0x40] sm:$0xf]
      %v410 = vld [vmem:[%s383 + $0x44] sm:$0xf]
      %v411 = vld [vmem:[%s383 + $0x48] sm:$0xf]
      %v412 = vld [vmem:[%s383 + $0x4c] sm:$0xf]
      %v413 = vld [vmem:[%s383 + $0x50] sm:$0xf]
      %v414 = vld [vmem:[%s383 + $0x54] sm:$0xf]
      %v415 = vld [vmem:[%s1] sm:$0xff]
      %v416 = vld [vmem:[%s1 + $0x8] sm:$0xf]
      %v417 = vld [vmem:[%s1 + $0xc] sm:$0xff]
      %v418 = vld [vmem:[%s1 + $0x14] sm:$0xf]
      %v419 = vld [vmem:[%s1 + $0x18] sm:$0xff]
      %v420 = vld [vmem:[%s1 + $0x20] sm:$0xf]
      %v421 = vld [vmem:[%s1 + $0x24] sm:$0xff]
      %v422 = vld [vmem:[%s1 + $0x2c] sm:$0xf]
      %v423 = vld [vmem:[%s1 + $0x30] sm:$0xff]
      %v424 = vld [vmem:[%s1 + $0x38] sm:$0xf]
      %v425 = vld [vmem:[%s1 + $0x3c] sm:$0xff]
      %v426 = vld [vmem:[%s1 + $0x44] sm:$0xf]
      %v427 = vld [vmem:[%s2] sm:$0x7]
      %v429 = vperm.slane %v427, 0
      %v430 = vperm.slane %v427, 1
      %v431 = vperm.slane %v427, 2
      %v457 = vunpack.c.l.b16 %v393
      %v458 = vunpack.c.l.b16 %v394
      %v459 = vunpack.c.l.b16 %v395
      %v460 = vunpack.c.l.b16 %v396
      %v461 = vunpack.c.l.b16 %v397
      %v462 = vunpack.c.l.b16 %v398
      %v463 = vunpack.c.l.b16 %v399
      %v464 = vunpack.c.l.b16 %v400
      %v465 = vunpack.c.l.b16 %v401
      %v466 = vunpack.c.l.b16 %v402
      %v467 = vunpack.c.l.b16 %v403
      %v468 = vunpack.c.l.b16 %v404
      %v469 = vunpack.c.l.b16 %v405
      %v470 = vunpack.c.l.b16 %v406
      %v471 = vunpack.c.l.b16 %v407
      %v472 = vunpack.c.l.b16 %v408
      %v473 = vunpack.c.l.b16 %v409
      %v474 = vunpack.c.l.b16 %v410
      %v475 = vunpack.c.l.b16 %v411
      %v476 = vunpack.c.l.b16 %v412
      %v477 = vunpack.c.l.b16 %v413
      %v478 = vunpack.c.l.b16 %v414
      %v479 = vpack.c.b16 %v458, %v457
      %v480 = vpack.c.b16 %v460, %v459
      %v481 = vpack.c.b16 %v462, %v461
      %v482 = vpack.c.b16 %v464, %v463
      %v483 = vpack.c.b16 %v466, %v465
      %v484 = vpack.c.b16 %v468, %v467
      %v485 = vpack.c.b16 %v470, %v469
      %v486 = vpack.c.b16 %v472, %v471
      %v487 = vpack.c.b16 %v474, %v473
      %v488 = vpack.c.b16 %v476, %v475
      %v489 = vpack.c.b16 %v478, %v477
      %v502 = vunpack.c.l.b16 %v415
      %v503 = vunpack.c.h.b16 %v415
      %v504 = vunpack.c.l.b16 %v416
      %v505 = vunpack.c.l.b16 %v417
      %v506 = vunpack.c.h.b16 %v417
      %v507 = vunpack.c.l.b16 %v418
      %v508 = vunpack.c.l.b16 %v419
      %v509 = vunpack.c.h.b16 %v419
      %v510 = vunpack.c.l.b16 %v420
      %v511 = vunpack.c.l.b16 %v421
      %v512 = vunpack.c.h.b16 %v421
      %v513 = vunpack.c.l.b16 %v422
      %v514 = vunpack.c.l.b16 %v423
      %v515 = vunpack.c.h.b16 %v423
      %v516 = vunpack.c.l.b16 %v424
      %v517 = vunpack.c.l.b16 %v425
      %v518 = vunpack.c.h.b16 %v425
      %v519 = vunpack.c.l.b16 %v426
      %v520 = vpack.c.b16 %v505, %v502
      %v521 = vpack.c.b16 %v506, %v503
      %v522 = vpack.c.b16 %v507, %v504
      %v523 = vpack.c.b16 %v511, %v508
      %v524 = vpack.c.b16 %v512, %v509
      %v525 = vpack.c.b16 %v513, %v510
      %v526 = vpack.c.b16 %v517, %v514
      %v527 = vpack.c.b16 %v518, %v515
      %v528 = vpack.c.b16 %v519, %v516
      %vm538 = vcmask 392192
      %v540 = vsel %vm538, %v479, 0
      %v543 = vsel %vm538, %v480, 0
      %v546 = vsel %vm538, %v481, 0
      %v549 = vsel %vm538, %v482, 0
      %v552 = vsel %vm538, %v483, 0
      %v555 = vsel %vm538, %v484, 0
      %v558 = vsel %vm538, %v485, 0
      %v561 = vsel %vm538, %v486, 0
      %v564 = vsel %vm538, %v487, 0
      %v567 = vsel %vm538, %v488, 0
      %v570 = vsel %vm538, %v489, 0
      %572 = vmatpush.bf16.msra.mxu0 0
      %573 = vmatpush.bf16.msra.mxu0 0
      %574 = vmatpush.bf16.msra.mxu0 0
      %575 = vmatpush.bf16.msra.mxu0 0
      %576 = vmatpush.bf16.msra.mxu0 0
      %577 = vmatpush.bf16.msra.mxu0 %v526
      %578 = vmatpush.bf16.msra.mxu0 %v523
      %579 = vmatpush.bf16.msra.mxu0 %v520
      %580 = vmatmul.bf16.gmra.mxu0 %v540
      %v581 = vpop.f32.mrf.mxu0
      %v582 = vadd.f32 %v429, %v581
      %v583 = vpop.f32.mrf.mxu0
      %v584 = vadd.f32 %v429, %v583
      %585 = vmatmul.bf16.gmra.mxu0 %v543
      %v586 = vpop.f32.mrf.mxu0
      %v587 = vadd.f32 %v429, %v586
      %v588 = vpop.f32.mrf.mxu0
      %v589 = vadd.f32 %v429, %v588
      %590 = vmatmul.bf16.gmra.mxu0 %v546
      %v591 = vpop.f32.mrf.mxu0
      %v592 = vadd.f32 %v429, %v591
      %v593 = vpop.f32.mrf.mxu0
      %v594 = vadd.f32 %v429, %v593
      %595 = vmatmul.bf16.gmra.mxu0 %v549
      %v596 = vpop.f32.mrf.mxu0
      %v597 = vadd.f32 %v429, %v596
      %v598 = vpop.f32.mrf.mxu0
      %v599 = vadd.f32 %v429, %v598
      %600 = vmatmul.bf16.gmra.mxu0 %v552
      %v601 = vpop.f32.mrf.mxu0
      %v602 = vadd.f32 %v429, %v601
      %v603 = vpop.f32.mrf.mxu0
      %v604 = vadd.f32 %v429, %v603
      %605 = vmatmul.bf16.gmra.mxu0 %v555
      %v606 = vpop.f32.mrf.mxu0
      %v607 = vadd.f32 %v429, %v606
      %v608 = vpop.f32.mrf.mxu0
      %v609 = vadd.f32 %v429, %v608
      %610 = vmatmul.bf16.gmra.mxu0 %v558
      %v611 = vpop.f32.mrf.mxu0
      %v612 = vadd.f32 %v429, %v611
      %v613 = vpop.f32.mrf.mxu0
      %v614 = vadd.f32 %v429, %v613
      %615 = vmatmul.bf16.gmra.mxu0 %v561
      %v616 = vpop.f32.mrf.mxu0
      %v617 = vadd.f32 %v429, %v616
      %v618 = vpop.f32.mrf.mxu0
      %v619 = vadd.f32 %v429, %v618
      %620 = vmatmul.bf16.gmra.mxu0 %v564
      %v621 = vpop.f32.mrf.mxu0
      %v622 = vadd.f32 %v429, %v621
      %v623 = vpop.f32.mrf.mxu0
      %v624 = vadd.f32 %v429, %v623
      %625 = vmatmul.bf16.gmra.mxu0 %v567
      %v626 = vpop.f32.mrf.mxu0
      %v627 = vadd.f32 %v429, %v626
      %v628 = vpop.f32.mrf.mxu0
      %v629 = vadd.f32 %v429, %v628
      %630 = vmatmul.bf16.gmra.mxu0 %v570
      %v631 = vpop.f32.mrf.mxu0
      %v632 = vadd.f32 %v429, %v631
      %v633 = vpop.f32.mrf.mxu0
      %v634 = vadd.f32 %v429, %v633
      %635 = vdwg.mxu0
      %636 = vmatpush.bf16.msra.mxu0 0
      %637 = vmatpush.bf16.msra.mxu0 0
      %638 = vmatpush.bf16.msra.mxu0 0
      %639 = vmatpush.bf16.msra.mxu0 0
      %640 = vmatpush.bf16.msra.mxu0 0
      %641 = vmatpush.bf16.msra.mxu0 %v527
      %642 = vmatpush.bf16.msra.mxu0 %v524
      %643 = vmatpush.bf16.msra.mxu0 %v521
      %644 = vmatmul.bf16.gmra.mxu0 %v540
      %v645 = vpop.f32.mrf.mxu0
      %v646 = vadd.f32 %v430, %v645
      %v647 = vpop.f32.mrf.mxu0
      %v648 = vadd.f32 %v430, %v647
      %649 = vmatmul.bf16.gmra.mxu0 %v543
      %v650 = vpop.f32.mrf.mxu0
      %v651 = vadd.f32 %v430, %v650
      %v652 = vpop.f32.mrf.mxu0
      %v653 = vadd.f32 %v430, %v652
      %654 = vmatmul.bf16.gmra.mxu0 %v546
      %v655 = vpop.f32.mrf.mxu0
      %v656 = vadd.f32 %v430, %v655
      %v657 = vpop.f32.mrf.mxu0
      %v658 = vadd.f32 %v430, %v657
      %659 = vmatmul.bf16.gmra.mxu0 %v549
      %v660 = vpop.f32.mrf.mxu0
      %v661 = vadd.f32 %v430, %v660
      %v662 = vpop.f32.mrf.mxu0
      %v663 = vadd.f32 %v430, %v662
      %664 = vmatmul.bf16.gmra.mxu0 %v552
      %v665 = vpop.f32.mrf.mxu0
      %v666 = vadd.f32 %v430, %v665
      %v667 = vpop.f32.mrf.mxu0
      %v668 = vadd.f32 %v430, %v667
      %669 = vmatmul.bf16.gmra.mxu0 %v555
      %v670 = vpop.f32.mrf.mxu0
      %v671 = vadd.f32 %v430, %v670
      %v672 = vpop.f32.mrf.mxu0
      %v673 = vadd.f32 %v430, %v672
      %674 = vmatmul.bf16.gmra.mxu0 %v558
      %v675 = vpop.f32.mrf.mxu0
      %v676 = vadd.f32 %v430, %v675
      %v677 = vpop.f32.mrf.mxu0
      %v678 = vadd.f32 %v430, %v677
      %679 = vmatmul.bf16.gmra.mxu0 %v561
      %v680 = vpop.f32.mrf.mxu0
      %v681 = vadd.f32 %v430, %v680
      %v682 = vpop.f32.mrf.mxu0
      %v683 = vadd.f32 %v430, %v682
      %684 = vmatmul.bf16.gmra.mxu0 %v564
      %v685 = vpop.f32.mrf.mxu0
      %v686 = vadd.f32 %v430, %v685
      %v687 = vpop.f32.mrf.mxu0
      %v688 = vadd.f32 %v430, %v687
      %689 = vmatmul.bf16.gmra.mxu0 %v567
      %v690 = vpop.f32.mrf.mxu0
      %v691 = vadd.f32 %v430, %v690
      %v692 = vpop.f32.mrf.mxu0
      %v693 = vadd.f32 %v430, %v692
      %694 = vmatmul.bf16.gmra.mxu0 %v570
      %v695 = vpop.f32.mrf.mxu0
      %v696 = vadd.f32 %v430, %v695
      %v697 = vpop.f32.mrf.mxu0
      %v698 = vadd.f32 %v430, %v697
      %699 = vdwg.mxu0
      %700 = vmatpush.bf16.msra.mxu0 0
      %701 = vmatpush.bf16.msra.mxu0 0
      %702 = vmatpush.bf16.msra.mxu0 0
      %703 = vmatpush.bf16.msra.mxu0 0
      %704 = vmatpush.bf16.msra.mxu0 0
      %705 = vmatpush.bf16.msra.mxu0 %v528
      %706 = vmatpush.bf16.msra.mxu0 %v525
      %707 = vmatpush.bf16.msra.mxu0 %v522
      %708 = vmatmul.bf16.gmra.mxu0 %v540
      %v709 = vpop.f32.mrf.mxu0
      %v710 = vadd.f32 %v431, %v709
      %v711 = vpop.f32.mrf.mxu0
      %v712 = vadd.f32 %v431, %v711
      %713 = vmatmul.bf16.gmra.mxu0 %v543
      %v714 = vpop.f32.mrf.mxu0
      %v715 = vadd.f32 %v431, %v714
      %v716 = vpop.f32.mrf.mxu0
      %v717 = vadd.f32 %v431, %v716
      %718 = vmatmul.bf16.gmra.mxu0 %v546
      %v719 = vpop.f32.mrf.mxu0
      %v720 = vadd.f32 %v431, %v719
      %v721 = vpop.f32.mrf.mxu0
      %v722 = vadd.f32 %v431, %v721
      %723 = vmatmul.bf16.gmra.mxu0 %v549
      %v724 = vpop.f32.mrf.mxu0
      %v725 = vadd.f32 %v431, %v724
      %v726 = vpop.f32.mrf.mxu0
      %v727 = vadd.f32 %v431, %v726
      %728 = vmatmul.bf16.gmra.mxu0 %v552
      %v729 = vpop.f32.mrf.mxu0
      %v730 = vadd.f32 %v431, %v729
      %v731 = vpop.f32.mrf.mxu0
      %v732 = vadd.f32 %v431, %v731
      %733 = vmatmul.bf16.gmra.mxu0 %v555
      %v734 = vpop.f32.mrf.mxu0
      %v735 = vadd.f32 %v431, %v734
      %v736 = vpop.f32.mrf.mxu0
      %v737 = vadd.f32 %v431, %v736
      %738 = vmatmul.bf16.gmra.mxu0 %v558
      %v739 = vpop.f32.mrf.mxu0
      %v740 = vadd.f32 %v431, %v739
      %v741 = vpop.f32.mrf.mxu0
      %v742 = vadd.f32 %v431, %v741
      %743 = vmatmul.bf16.gmra.mxu0 %v561
      %v744 = vpop.f32.mrf.mxu0
      %v745 = vadd.f32 %v431, %v744
      %v746 = vpop.f32.mrf.mxu0
      %v747 = vadd.f32 %v431, %v746
      %748 = vmatmul.bf16.gmra.mxu0 %v564
      %v749 = vpop.f32.mrf.mxu0
      %v750 = vadd.f32 %v431, %v749
      %v751 = vpop.f32.mrf.mxu0
      %v752 = vadd.f32 %v431, %v751
      %753 = vmatmul.bf16.gmra.mxu0 %v567
      %v754 = vpop.f32.mrf.mxu0
      %v755 = vadd.f32 %v431, %v754
      %v756 = vpop.f32.mrf.mxu0
      %v757 = vadd.f32 %v431, %v756
      %758 = vmatmul.bf16.gmra.mxu0 %v570
      %v759 = vpop.f32.mrf.mxu0
      %v760 = vadd.f32 %v431, %v759
      %v761 = vpop.f32.mrf.mxu0
      %v762 = vadd.f32 %v431, %v761
      %763 = vdwg.mxu0
      %v764 = vmax.f32 %v582, 0.0
      %v765 = vmax.f32 %v646, 0.0
      %v766 = vmax.f32 %v710, 0.0
      %v767 = vmax.f32 %v584, 0.0
      %v768 = vmax.f32 %v648, 0.0
      %v769 = vmax.f32 %v712, 0.0
      %v770 = vmax.f32 %v587, 0.0
      %v771 = vmax.f32 %v651, 0.0
      %v772 = vmax.f32 %v715, 0.0
      %v773 = vmax.f32 %v589, 0.0
      %v774 = vmax.f32 %v653, 0.0
      %v775 = vmax.f32 %v717, 0.0
      %v776 = vmax.f32 %v592, 0.0
      %v777 = vmax.f32 %v656, 0.0
      %v778 = vmax.f32 %v720, 0.0
      %v779 = vmax.f32 %v594, 0.0
      %v780 = vmax.f32 %v658, 0.0
      %v781 = vmax.f32 %v722, 0.0
      %v782 = vmax.f32 %v597, 0.0
      %v783 = vmax.f32 %v661, 0.0
      %v784 = vmax.f32 %v725, 0.0
      %v785 = vmax.f32 %v599, 0.0
      %v786 = vmax.f32 %v663, 0.0
      %v787 = vmax.f32 %v727, 0.0
      %v788 = vmax.f32 %v602, 0.0
      %v789 = vmax.f32 %v666, 0.0
      %v790 = vmax.f32 %v730, 0.0
      %v791 = vmax.f32 %v604, 0.0
      %v792 = vmax.f32 %v668, 0.0
      %v793 = vmax.f32 %v732, 0.0
      %v794 = vmax.f32 %v607, 0.0
      %v795 = vmax.f32 %v671, 0.0
      %v796 = vmax.f32 %v735, 0.0
      %v797 = vmax.f32 %v609, 0.0
      %v798 = vmax.f32 %v673, 0.0
      %v799 = vmax.f32 %v737, 0.0
      %v800 = vmax.f32 %v612, 0.0
      %v801 = vmax.f32 %v676, 0.0
      %v802 = vmax.f32 %v740, 0.0
      %v803 = vmax.f32 %v614, 0.0
      %v804 = vmax.f32 %v678, 0.0
      %v805 = vmax.f32 %v742, 0.0
      %v806 = vmax.f32 %v617, 0.0
      %v807 = vmax.f32 %v681, 0.0
      %v808 = vmax.f32 %v745, 0.0
      %v809 = vmax.f32 %v619, 0.0
      %v810 = vmax.f32 %v683, 0.0
      %v811 = vmax.f32 %v747, 0.0
      %v812 = vmax.f32 %v622, 0.0
      %v813 = vmax.f32 %v686, 0.0
      %v814 = vmax.f32 %v750, 0.0
      %v815 = vmax.f32 %v624, 0.0
      %v816 = vmax.f32 %v688, 0.0
      %v817 = vmax.f32 %v752, 0.0
      %v818 = vmax.f32 %v627, 0.0
      %v819 = vmax.f32 %v691, 0.0
      %v820 = vmax.f32 %v755, 0.0
      %v821 = vmax.f32 %v629, 0.0
      %v822 = vmax.f32 %v693, 0.0
      %v823 = vmax.f32 %v757, 0.0
      %v824 = vmax.f32 %v632, 0.0
      %v825 = vmax.f32 %v696, 0.0
      %v826 = vmax.f32 %v760, 0.0
      %v827 = vmax.f32 %v634, 0.0
      %v828 = vmax.f32 %v698, 0.0
      %v829 = vmax.f32 %v762, 0.0
      %v830 = vpack.c.bf16 %v767, %v764
      %v831 = vpack.c.bf16 %v768, %v765
      %v832 = vpack.c.bf16 %v769, %v766
      %v833 = vpack.c.bf16 %v773, %v770
      %v834 = vpack.c.bf16 %v774, %v771
      %v835 = vpack.c.bf16 %v775, %v772
      %v836 = vpack.c.bf16 %v779, %v776
      %v837 = vpack.c.bf16 %v780, %v777
      %v838 = vpack.c.bf16 %v781, %v778
      %v839 = vpack.c.bf16 %v785, %v782
      %v840 = vpack.c.bf16 %v786, %v783
      %v841 = vpack.c.bf16 %v787, %v784
      %v842 = vpack.c.bf16 %v791, %v788
      %v843 = vpack.c.bf16 %v792, %v789
      %v844 = vpack.c.bf16 %v793, %v790
      %v845 = vpack.c.bf16 %v797, %v794
      %v846 = vpack.c.bf16 %v798, %v795
      %v847 = vpack.c.bf16 %v799, %v796
      %v848 = vpack.c.bf16 %v803, %v800
      %v849 = vpack.c.bf16 %v804, %v801
      %v850 = vpack.c.bf16 %v805, %v802
      %v851 = vpack.c.bf16 %v809, %v806
      %v852 = vpack.c.bf16 %v810, %v807
      %v853 = vpack.c.bf16 %v811, %v808
      %v854 = vpack.c.bf16 %v815, %v812
      %v855 = vpack.c.bf16 %v816, %v813
      %v856 = vpack.c.bf16 %v817, %v814
      %v857 = vpack.c.bf16 %v821, %v818
      %v858 = vpack.c.bf16 %v822, %v819
      %v859 = vpack.c.bf16 %v823, %v820
      %v860 = vpack.c.bf16 %v827, %v824
      %v861 = vpack.c.bf16 %v828, %v825
      %v862 = vpack.c.bf16 %v829, %v826
      %v863 = vld [vmem:[%s3] sm:$0xff]
      %v864 = vld [vmem:[%s3 + $0x8] sm:$0xf]
      %v865 = vld [vmem:[%s3 + $0xc] sm:$0xff]
      %v866 = vld [vmem:[%s3 + $0x14] sm:$0xf]
      %v867 = vld [vmem:[%s3 + $0x18] sm:$0xff]
      %v868 = vld [vmem:[%s3 + $0x20] sm:$0xf]
      %v869 = vld [vmem:[%s3 + $0x24] sm:$0xff]
      %v870 = vld [vmem:[%s3 + $0x2c] sm:$0xf]
      %v871 = vld [vmem:[%s3 + $0x30] sm:$0xff]
      %v872 = vld [vmem:[%s3 + $0x38] sm:$0xf]
      %v873 = vld [vmem:[%s3 + $0x3c] sm:$0xff]
      %v874 = vld [vmem:[%s3 + $0x44] sm:$0xf]
      %v875 = vld [vmem:[%s3 + $0x48] sm:$0xff]
      %v876 = vld [vmem:[%s3 + $0x50] sm:$0xf]
      %v877 = vld [vmem:[%s3 + $0x54] sm:$0xff]
      %v878 = vld [vmem:[%s3 + $0x5c] sm:$0xf]
      %v879 = vld [vmem:[%s3 + $0x60] sm:$0xff]
      %v880 = vld [vmem:[%s3 + $0x68] sm:$0xf]
      %v881 = vld [vmem:[%s3 + $0x6c] sm:$0xff]
      %v882 = vld [vmem:[%s3 + $0x74] sm:$0xf]
      %v883 = vld [vmem:[%s3 + $0x78] sm:$0xff]
      %v884 = vld [vmem:[%s3 + $0x80] sm:$0xf]
      %v885 = vld [vmem:[%s3 + $0x84] sm:$0xff]
      %v886 = vld [vmem:[%s3 + $0x8c] sm:$0xf]
      %v887 = vld [vmem:[%s3 + $0x90] sm:$0xff]
      %v888 = vld [vmem:[%s3 + $0x98] sm:$0xf]
      %v889 = vld [vmem:[%s3 + $0x9c] sm:$0xff]
      %v890 = vld [vmem:[%s3 + $0xa4] sm:$0xf]
      %v891 = vld [vmem:[%s3 + $0xa8] sm:$0xff]
      %v892 = vld [vmem:[%s3 + $0xb0] sm:$0xf]
      %v893 = vld [vmem:[%s3 + $0xb4] sm:$0xff]
      %v894 = vld [vmem:[%s3 + $0xbc] sm:$0xf]
      %v895 = vld [vmem:[%s3 + $0xc0] sm:$0xff]
      %v896 = vld [vmem:[%s3 + $0xc8] sm:$0xf]
      %v897 = vld [vmem:[%s3 + $0xcc] sm:$0xff]
      %v898 = vld [vmem:[%s3 + $0xd4] sm:$0xf]
      %v899 = vld [vmem:[%s3 + $0xd8] sm:$0xff]
      %v900 = vld [vmem:[%s3 + $0xe0] sm:$0xf]
      %v901 = vld [vmem:[%s3 + $0xe4] sm:$0xff]
      %v902 = vld [vmem:[%s3 + $0xec] sm:$0xf]
      %v903 = vld [vmem:[%s3 + $0xf0] sm:$0xff]
      %v904 = vld [vmem:[%s3 + $0xf8] sm:$0xf]
      %v905 = vld [vmem:[%s3 + $0xfc] sm:$0xff]
      %v906 = vld [vmem:[%s3 + $0x104] sm:$0xf]
      %v907 = vld [vmem:[%s3 + $0x108] sm:$0xff]
      %v908 = vld [vmem:[%s3 + $0x110] sm:$0xf]
      %v909 = vld [vmem:[%s3 + $0x114] sm:$0xff]
      %v910 = vld [vmem:[%s3 + $0x11c] sm:$0xf]
      %v911 = vld [vmem:[%s3 + $0x120] sm:$0xff]
      %v912 = vld [vmem:[%s3 + $0x128] sm:$0xf]
      %v913 = vld [vmem:[%s3 + $0x12c] sm:$0xff]
      %v914 = vld [vmem:[%s3 + $0x134] sm:$0xf]
      %v915 = vld [vmem:[%s3 + $0x138] sm:$0xff]
      %v916 = vld [vmem:[%s3 + $0x140] sm:$0xf]
      %v917 = vld [vmem:[%s3 + $0x144] sm:$0xff]
      %v918 = vld [vmem:[%s3 + $0x14c] sm:$0xf]
      %v919 = vld [vmem:[%s3 + $0x150] sm:$0xff]
      %v920 = vld [vmem:[%s3 + $0x158] sm:$0xf]
      %v921 = vld [vmem:[%s3 + $0x15c] sm:$0xff]
      %v922 = vld [vmem:[%s3 + $0x164] sm:$0xf]
      %v923 = vld [vmem:[%s3 + $0x168] sm:$0xff]
      %v924 = vld [vmem:[%s3 + $0x170] sm:$0xf]
      %v925 = vld [vmem:[%s3 + $0x174] sm:$0xff]
      %v926 = vld [vmem:[%s3 + $0x17c] sm:$0xf]
      %v927 = vld [vmem:[%s3 + $0x180] sm:$0xff]
      %v928 = vld [vmem:[%s3 + $0x188] sm:$0xf]
      %v929 = vld [vmem:[%s3 + $0x18c] sm:$0xff]
      %v930 = vld [vmem:[%s3 + $0x194] sm:$0xf]
      %v931 = vld [vmem:[%s3 + $0x198] sm:$0xff]
      %v932 = vld [vmem:[%s3 + $0x1a0] sm:$0xf]
      %v933 = vld [vmem:[%s3 + $0x1a4] sm:$0xff]
      %v934 = vld [vmem:[%s3 + $0x1ac] sm:$0xf]
      %v935 = vld [vmem:[%s3 + $0x1b0] sm:$0xff]
      %v936 = vld [vmem:[%s3 + $0x1b8] sm:$0xf]
      %v937 = vld [vmem:[%s3 + $0x1bc] sm:$0xff]
      %v938 = vld [vmem:[%s3 + $0x1c4] sm:$0xf]
      %v939 = vld [vmem:[%s3 + $0x1c8] sm:$0xff]
      %v940 = vld [vmem:[%s3 + $0x1d0] sm:$0xf]
      %v941 = vld [vmem:[%s3 + $0x1d4] sm:$0xff]
      %v942 = vld [vmem:[%s3 + $0x1dc] sm:$0xf]
      %v943 = vld [vmem:[%s3 + $0x1e0] sm:$0xff]
      %v944 = vld [vmem:[%s3 + $0x1e8] sm:$0xf]
      %v945 = vld [vmem:[%s3 + $0x1ec] sm:$0xff]
      %v946 = vld [vmem:[%s3 + $0x1f4] sm:$0xf]
      %v947 = vld [vmem:[%s3 + $0x1f8] sm:$0xff]
      %v948 = vld [vmem:[%s3 + $0x200] sm:$0xf]
      %v949 = vld [vmem:[%s3 + $0x204] sm:$0xff]
      %v950 = vld [vmem:[%s3 + $0x20c] sm:$0xf]
      %v951 = vld [vmem:[%s3 + $0x210] sm:$0xff]
      %v952 = vld [vmem:[%s3 + $0x218] sm:$0xf]
      %v953 = vld [vmem:[%s3 + $0x21c] sm:$0xff]
      %v954 = vld [vmem:[%s3 + $0x224] sm:$0xf]
      %v955 = vld [vmem:[%s3 + $0x228] sm:$0xff]
      %v956 = vld [vmem:[%s3 + $0x230] sm:$0xf]
      %v957 = vld [vmem:[%s3 + $0x234] sm:$0xff]
      %v958 = vld [vmem:[%s3 + $0x23c] sm:$0xf]
      %v959 = vld [vmem:[%s4] sm:$0x7]
      %v961 = vperm.slane %v959, 0
      %v962 = vperm.slane %v959, 1
      %v963 = vperm.slane %v959, 2
      %v1063 = vunpack.c.l.b16 %v863
      %v1064 = vunpack.c.h.b16 %v863
      %v1065 = vunpack.c.l.b16 %v864
      %v1066 = vunpack.c.l.b16 %v865
      %v1067 = vunpack.c.h.b16 %v865
      %v1068 = vunpack.c.l.b16 %v866
      %v1069 = vunpack.c.l.b16 %v867
      %v1070 = vunpack.c.h.b16 %v867
      %v1071 = vunpack.c.l.b16 %v868
      %v1072 = vunpack.c.l.b16 %v869
      %v1073 = vunpack.c.h.b16 %v869
      %v1074 = vunpack.c.l.b16 %v870
      %v1075 = vunpack.c.l.b16 %v871
      %v1076 = vunpack.c.h.b16 %v871
      %v1077 = vunpack.c.l.b16 %v872
      %v1078 = vunpack.c.l.b16 %v873
      %v1079 = vunpack.c.h.b16 %v873
      %v1080 = vunpack.c.l.b16 %v874
      %v1081 = vunpack.c.l.b16 %v875
      %v1082 = vunpack.c.h.b16 %v875
      %v1083 = vunpack.c.l.b16 %v876
      %v1084 = vunpack.c.l.b16 %v877
      %v1085 = vunpack.c.h.b16 %v877
      %v1086 = vunpack.c.l.b16 %v878
      %v1087 = vunpack.c.l.b16 %v879
      %v1088 = vunpack.c.h.b16 %v879
      %v1089 = vunpack.c.l.b16 %v880
      %v1090 = vunpack.c.l.b16 %v881
      %v1091 = vunpack.c.h.b16 %v881
      %v1092 = vunpack.c.l.b16 %v882
      %v1093 = vunpack.c.l.b16 %v883
      %v1094 = vunpack.c.h.b16 %v883
      %v1095 = vunpack.c.l.b16 %v884
      %v1096 = vunpack.c.l.b16 %v885
      %v1097 = vunpack.c.h.b16 %v885
      %v1098 = vunpack.c.l.b16 %v886
      %v1099 = vunpack.c.l.b16 %v887
      %v1100 = vunpack.c.h.b16 %v887
      %v1101 = vunpack.c.l.b16 %v888
      %v1102 = vunpack.c.l.b16 %v889
      %v1103 = vunpack.c.h.b16 %v889
      %v1104 = vunpack.c.l.b16 %v890
      %v1105 = vunpack.c.l.b16 %v891
      %v1106 = vunpack.c.h.b16 %v891
      %v1107 = vunpack.c.l.b16 %v892
      %v1108 = vunpack.c.l.b16 %v893
      %v1109 = vunpack.c.h.b16 %v893
      %v1110 = vunpack.c.l.b16 %v894
      %v1111 = vunpack.c.l.b16 %v895
      %v1112 = vunpack.c.h.b16 %v895
      %v1113 = vunpack.c.l.b16 %v896
      %v1114 = vunpack.c.l.b16 %v897
      %v1115 = vunpack.c.h.b16 %v897
      %v1116 = vunpack.c.l.b16 %v898
      %v1117 = vunpack.c.l.b16 %v899
      %v1118 = vunpack.c.h.b16 %v899
      %v1119 = vunpack.c.l.b16 %v900
      %v1120 = vunpack.c.l.b16 %v901
      %v1121 = vunpack.c.h.b16 %v901
      %v1122 = vunpack.c.l.b16 %v902
      %v1123 = vunpack.c.l.b16 %v903
      %v1124 = vunpack.c.h.b16 %v903
      %v1125 = vunpack.c.l.b16 %v904
      %v1126 = vunpack.c.l.b16 %v905
      %v1127 = vunpack.c.h.b16 %v905
      %v1128 = vunpack.c.l.b16 %v906
      %v1129 = vunpack.c.l.b16 %v907
      %v1130 = vunpack.c.h.b16 %v907
      %v1131 = vunpack.c.l.b16 %v908
      %v1132 = vunpack.c.l.b16 %v909
      %v1133 = vunpack.c.h.b16 %v909
      %v1134 = vunpack.c.l.b16 %v910
      %v1135 = vunpack.c.l.b16 %v911
      %v1136 = vunpack.c.h.b16 %v911
      %v1137 = vunpack.c.l.b16 %v912
      %v1138 = vunpack.c.l.b16 %v913
      %v1139 = vunpack.c.h.b16 %v913
      %v1140 = vunpack.c.l.b16 %v914
      %v1141 = vunpack.c.l.b16 %v915
      %v1142 = vunpack.c.h.b16 %v915
      %v1143 = vunpack.c.l.b16 %v916
      %v1144 = vunpack.c.l.b16 %v917
      %v1145 = vunpack.c.h.b16 %v917
      %v1146 = vunpack.c.l.b16 %v918
      %v1147 = vunpack.c.l.b16 %v919
      %v1148 = vunpack.c.h.b16 %v919
      %v1149 = vunpack.c.l.b16 %v920
      %v1150 = vunpack.c.l.b16 %v921
      %v1151 = vunpack.c.h.b16 %v921
      %v1152 = vunpack.c.l.b16 %v922
      %v1153 = vunpack.c.l.b16 %v923
      %v1154 = vunpack.c.h.b16 %v923
      %v1155 = vunpack.c.l.b16 %v924
      %v1156 = vunpack.c.l.b16 %v925
      %v1157 = vunpack.c.h.b16 %v925
      %v1158 = vunpack.c.l.b16 %v926
      %v1159 = vunpack.c.l.b16 %v927
      %v1160 = vunpack.c.h.b16 %v927
      %v1161 = vunpack.c.l.b16 %v928
      %v1162 = vunpack.c.l.b16 %v929
      %v1163 = vunpack.c.h.b16 %v929
      %v1164 = vunpack.c.l.b16 %v930
      %v1165 = vunpack.c.l.b16 %v931
      %v1166 = vunpack.c.h.b16 %v931
      %v1167 = vunpack.c.l.b16 %v932
      %v1168 = vunpack.c.l.b16 %v933
      %v1169 = vunpack.c.h.b16 %v933
      %v1170 = vunpack.c.l.b16 %v934
      %v1171 = vunpack.c.l.b16 %v935
      %v1172 = vunpack.c.h.b16 %v935
      %v1173 = vunpack.c.l.b16 %v936
      %v1174 = vunpack.c.l.b16 %v937
      %v1175 = vunpack.c.h.b16 %v937
      %v1176 = vunpack.c.l.b16 %v938
      %v1177 = vunpack.c.l.b16 %v939
      %v1178 = vunpack.c.h.b16 %v939
      %v1179 = vunpack.c.l.b16 %v940
      %v1180 = vunpack.c.l.b16 %v941
      %v1181 = vunpack.c.h.b16 %v941
      %v1182 = vunpack.c.l.b16 %v942
      %v1183 = vunpack.c.l.b16 %v943
      %v1184 = vunpack.c.h.b16 %v943
      %v1185 = vunpack.c.l.b16 %v944
      %v1186 = vunpack.c.l.b16 %v945
      %v1187 = vunpack.c.h.b16 %v945
      %v1188 = vunpack.c.l.b16 %v946
      %v1189 = vunpack.c.l.b16 %v947
      %v1190 = vunpack.c.h.b16 %v947
      %v1191 = vunpack.c.l.b16 %v948
      %v1192 = vunpack.c.l.b16 %v949
      %v1193 = vunpack.c.h.b16 %v949
      %v1194 = vunpack.c.l.b16 %v950
      %v1195 = vunpack.c.l.b16 %v951
      %v1196 = vunpack.c.h.b16 %v951
      %v1197 = vunpack.c.l.b16 %v952
      %v1198 = vunpack.c.l.b16 %v953
      %v1199 = vunpack.c.h.b16 %v953
      %v1200 = vunpack.c.l.b16 %v954
      %v1201 = vunpack.c.l.b16 %v955
      %v1202 = vunpack.c.h.b16 %v955
      %v1203 = vunpack.c.l.b16 %v956
      %v1204 = vunpack.c.l.b16 %v957
      %v1205 = vunpack.c.h.b16 %v957
      %v1206 = vunpack.c.l.b16 %v958
      %v1207 = vpack.c.b16 %v1066, %v1063
      %v1208 = vpack.c.b16 %v1067, %v1064
      %v1209 = vpack.c.b16 %v1068, %v1065
      %v1210 = vpack.c.b16 %v1072, %v1069
      %v1211 = vpack.c.b16 %v1073, %v1070
      %v1212 = vpack.c.b16 %v1074, %v1071
      %v1213 = vpack.c.b16 %v1078, %v1075
      %v1214 = vpack.c.b16 %v1079, %v1076
      %v1215 = vpack.c.b16 %v1080, %v1077
      %v1216 = vpack.c.b16 %v1084, %v1081
      %v1217 = vpack.c.b16 %v1085, %v1082
      %v1218 = vpack.c.b16 %v1086, %v1083
      %v1219 = vpack.c.b16 %v1090, %v1087
      %v1220 = vpack.c.b16 %v1091, %v1088
      %v1221 = vpack.c.b16 %v1092, %v1089
      %v1222 = vpack.c.b16 %v1096, %v1093
      %v1223 = vpack.c.b16 %v1097, %v1094
      %v1224 = vpack.c.b16 %v1098, %v1095
      %v1225 = vpack.c.b16 %v1102, %v1099
      %v1226 = vpack.c.b16 %v1103, %v1100
      %v1227 = vpack.c.b16 %v1104, %v1101
      %v1228 = vpack.c.b16 %v1108, %v1105
      %v1229 = vpack.c.b16 %v1109, %v1106
      %v1230 = vpack.c.b16 %v1110, %v1107
      %v1231 = vpack.c.b16 %v1114, %v1111
      %v1232 = vpack.c.b16 %v1115, %v1112
      %v1233 = vpack.c.b16 %v1116, %v1113
      %v1234 = vpack.c.b16 %v1120, %v1117
      %v1235 = vpack.c.b16 %v1121, %v1118
      %v1236 = vpack.c.b16 %v1122, %v1119
      %v1237 = vpack.c.b16 %v1126, %v1123
      %v1238 = vpack.c.b16 %v1127, %v1124
      %v1239 = vpack.c.b16 %v1128, %v1125
      %v1240 = vpack.c.b16 %v1132, %v1129
      %v1241 = vpack.c.b16 %v1133, %v1130
      %v1242 = vpack.c.b16 %v1134, %v1131
      %v1243 = vpack.c.b16 %v1138, %v1135
      %v1244 = vpack.c.b16 %v1139, %v1136
      %v1245 = vpack.c.b16 %v1140, %v1137
      %v1246 = vpack.c.b16 %v1144, %v1141
      %v1247 = vpack.c.b16 %v1145, %v1142
      %v1248 = vpack.c.b16 %v1146, %v1143
      %v1249 = vpack.c.b16 %v1150, %v1147
      %v1250 = vpack.c.b16 %v1151, %v1148
      %v1251 = vpack.c.b16 %v1152, %v1149
      %v1252 = vpack.c.b16 %v1156, %v1153
      %v1253 = vpack.c.b16 %v1157, %v1154
      %v1254 = vpack.c.b16 %v1158, %v1155
      %v1255 = vpack.c.b16 %v1162, %v1159
      %v1256 = vpack.c.b16 %v1163, %v1160
      %v1257 = vpack.c.b16 %v1164, %v1161
      %v1258 = vpack.c.b16 %v1168, %v1165
      %v1259 = vpack.c.b16 %v1169, %v1166
      %v1260 = vpack.c.b16 %v1170, %v1167
      %v1261 = vpack.c.b16 %v1174, %v1171
      %v1262 = vpack.c.b16 %v1175, %v1172
      %v1263 = vpack.c.b16 %v1176, %v1173
      %v1264 = vpack.c.b16 %v1180, %v1177
      %v1265 = vpack.c.b16 %v1181, %v1178
      %v1266 = vpack.c.b16 %v1182, %v1179
      %v1267 = vpack.c.b16 %v1186, %v1183
      %v1268 = vpack.c.b16 %v1187, %v1184
      %v1269 = vpack.c.b16 %v1188, %v1185
      %v1270 = vpack.c.b16 %v1192, %v1189
      %v1271 = vpack.c.b16 %v1193, %v1190
      %v1272 = vpack.c.b16 %v1194, %v1191
      %v1273 = vpack.c.b16 %v1198, %v1195
      %v1274 = vpack.c.b16 %v1199, %v1196
      %v1275 = vpack.c.b16 %v1200, %v1197
      %v1276 = vpack.c.b16 %v1204, %v1201
      %v1277 = vpack.c.b16 %v1205, %v1202
      %v1278 = vpack.c.b16 %v1206, %v1203
      %1351 = vmatpush.bf16.msra.mxu0 %v1228
      %1352 = vmatpush.bf16.msra.mxu0 %v1225
      %1353 = vmatpush.bf16.msra.mxu0 %v1222
      %1354 = vmatpush.bf16.msra.mxu0 %v1219
      %1355 = vmatpush.bf16.msra.mxu0 %v1216
      %1356 = vmatpush.bf16.msra.mxu0 %v1213
      %1357 = vmatpush.bf16.msra.mxu0 %v1210
      %1358 = vmatpush.bf16.msra.mxu0 %v1207
      %1359 = vmatmul.bf16.gmra.mxu0 %v830
      %v1360 = vpop.f32.mrf.mxu0
      %v1361 = vadd.f32 %v961, %v1360
      %v1362 = vpop.f32.mrf.mxu0
      %v1363 = vadd.f32 %v961, %v1362
      %1364 = vmatmul.bf16.gmra.mxu0 %v833
      %v1365 = vpop.f32.mrf.mxu0
      %v1366 = vadd.f32 %v961, %v1365
      %v1367 = vpop.f32.mrf.mxu0
      %v1368 = vadd.f32 %v961, %v1367
      %1369 = vmatmul.bf16.gmra.mxu0 %v836
      %v1370 = vpop.f32.mrf.mxu0
      %v1371 = vadd.f32 %v961, %v1370
      %v1372 = vpop.f32.mrf.mxu0
      %v1373 = vadd.f32 %v961, %v1372
      %1374 = vmatmul.bf16.gmra.mxu0 %v839
      %v1375 = vpop.f32.mrf.mxu0
      %v1376 = vadd.f32 %v961, %v1375
      %v1377 = vpop.f32.mrf.mxu0
      %v1378 = vadd.f32 %v961, %v1377
      %1379 = vmatmul.bf16.gmra.mxu0 %v842
      %v1380 = vpop.f32.mrf.mxu0
      %v1381 = vadd.f32 %v961, %v1380
      %v1382 = vpop.f32.mrf.mxu0
      %v1383 = vadd.f32 %v961, %v1382
      %1384 = vmatmul.bf16.gmra.mxu0 %v845
      %v1385 = vpop.f32.mrf.mxu0
      %v1386 = vadd.f32 %v961, %v1385
      %v1387 = vpop.f32.mrf.mxu0
      %v1388 = vadd.f32 %v961, %v1387
      %1389 = vmatmul.bf16.gmra.mxu0 %v848
      %v1390 = vpop.f32.mrf.mxu0
      %v1391 = vadd.f32 %v961, %v1390
      %v1392 = vpop.f32.mrf.mxu0
      %v1393 = vadd.f32 %v961, %v1392
      %1394 = vmatmul.bf16.gmra.mxu0 %v851
      %v1395 = vpop.f32.mrf.mxu0
      %v1396 = vadd.f32 %v961, %v1395
      %v1397 = vpop.f32.mrf.mxu0
      %v1398 = vadd.f32 %v961, %v1397
      %1399 = vmatmul.bf16.gmra.mxu0 %v854
      %v1400 = vpop.f32.mrf.mxu0
      %v1401 = vadd.f32 %v961, %v1400
      %v1402 = vpop.f32.mrf.mxu0
      %v1403 = vadd.f32 %v961, %v1402
      %1404 = vmatmul.bf16.gmra.mxu0 %v857
      %v1405 = vpop.f32.mrf.mxu0
      %v1406 = vadd.f32 %v961, %v1405
      %v1407 = vpop.f32.mrf.mxu0
      %v1408 = vadd.f32 %v961, %v1407
      %1409 = vmatmul.bf16.gmra.mxu0 %v860
      %v1410 = vpop.f32.mrf.mxu0
      %v1411 = vadd.f32 %v961, %v1410
      %v1412 = vpop.f32.mrf.mxu0
      %v1413 = vadd.f32 %v961, %v1412
      %1414 = vdwg.mxu0
      %1415 = vmatpush.bf16.msra.mxu0 %v1252
      %1416 = vmatpush.bf16.msra.mxu0 %v1249
      %1417 = vmatpush.bf16.msra.mxu0 %v1246
      %1418 = vmatpush.bf16.msra.mxu0 %v1243
      %1419 = vmatpush.bf16.msra.mxu0 %v1240
      %1420 = vmatpush.bf16.msra.mxu0 %v1237
      %1421 = vmatpush.bf16.msra.mxu0 %v1234
      %1422 = vmatpush.bf16.msra.mxu0 %v1231
      %1423 = vmatmul.bf16.gmra.mxu0 %v831
      %v1424 = vpop.f32.mrf.mxu0
      %v1425 = vadd.f32 %v1361, %v1424
      %v1426 = vpop.f32.mrf.mxu0
      %v1427 = vadd.f32 %v1363, %v1426
      %1428 = vmatmul.bf16.gmra.mxu0 %v834
      %v1429 = vpop.f32.mrf.mxu0
      %v1430 = vadd.f32 %v1366, %v1429
      %v1431 = vpop.f32.mrf.mxu0
      %v1432 = vadd.f32 %v1368, %v1431
      %1433 = vmatmul.bf16.gmra.mxu0 %v837
      %v1434 = vpop.f32.mrf.mxu0
      %v1435 = vadd.f32 %v1371, %v1434
      %v1436 = vpop.f32.mrf.mxu0
      %v1437 = vadd.f32 %v1373, %v1436
      %1438 = vmatmul.bf16.gmra.mxu0 %v840
      %v1439 = vpop.f32.mrf.mxu0
      %v1440 = vadd.f32 %v1376, %v1439
      %v1441 = vpop.f32.mrf.mxu0
      %v1442 = vadd.f32 %v1378, %v1441
      %1443 = vmatmul.bf16.gmra.mxu0 %v843
      %v1444 = vpop.f32.mrf.mxu0
      %v1445 = vadd.f32 %v1381, %v1444
      %v1446 = vpop.f32.mrf.mxu0
      %v1447 = vadd.f32 %v1383, %v1446
      %1448 = vmatmul.bf16.gmra.mxu0 %v846
      %v1449 = vpop.f32.mrf.mxu0
      %v1450 = vadd.f32 %v1386, %v1449
      %v1451 = vpop.f32.mrf.mxu0
      %v1452 = vadd.f32 %v1388, %v1451
      %1453 = vmatmul.bf16.gmra.mxu0 %v849
      %v1454 = vpop.f32.mrf.mxu0
      %v1455 = vadd.f32 %v1391, %v1454
      %v1456 = vpop.f32.mrf.mxu0
      %v1457 = vadd.f32 %v1393, %v1456
      %1458 = vmatmul.bf16.gmra.mxu0 %v852
      %v1459 = vpop.f32.mrf.mxu0
      %v1460 = vadd.f32 %v1396, %v1459
      %v1461 = vpop.f32.mrf.mxu0
      %v1462 = vadd.f32 %v1398, %v1461
      %1463 = vmatmul.bf16.gmra.mxu0 %v855
      %v1464 = vpop.f32.mrf.mxu0
      %v1465 = vadd.f32 %v1401, %v1464
      %v1466 = vpop.f32.mrf.mxu0
      %v1467 = vadd.f32 %v1403, %v1466
      %1468 = vmatmul.bf16.gmra.mxu0 %v858
      %v1469 = vpop.f32.mrf.mxu0
      %v1470 = vadd.f32 %v1406, %v1469
      %v1471 = vpop.f32.mrf.mxu0
      %v1472 = vadd.f32 %v1408, %v1471
      %1473 = vmatmul.bf16.gmra.mxu0 %v861
      %v1474 = vpop.f32.mrf.mxu0
      %v1475 = vadd.f32 %v1411, %v1474
      %v1476 = vpop.f32.mrf.mxu0
      %v1477 = vadd.f32 %v1413, %v1476
      %1478 = vdwg.mxu0
      %1479 = vmatpush.bf16.msra.mxu0 %v1276
      %1480 = vmatpush.bf16.msra.mxu0 %v1273
      %1481 = vmatpush.bf16.msra.mxu0 %v1270
      %1482 = vmatpush.bf16.msra.mxu0 %v1267
      %1483 = vmatpush.bf16.msra.mxu0 %v1264
      %1484 = vmatpush.bf16.msra.mxu0 %v1261
      %1485 = vmatpush.bf16.msra.mxu0 %v1258
      %1486 = vmatpush.bf16.msra.mxu0 %v1255
      %1487 = vmatmul.bf16.gmra.mxu0 %v832
      %v1488 = vpop.f32.mrf.mxu0
      %v1489 = vadd.f32 %v1425, %v1488
      %v1490 = vpop.f32.mrf.mxu0
      %v1491 = vadd.f32 %v1427, %v1490
      %1492 = vmatmul.bf16.gmra.mxu0 %v835
      %v1493 = vpop.f32.mrf.mxu0
      %v1494 = vadd.f32 %v1430, %v1493
      %v1495 = vpop.f32.mrf.mxu0
      %v1496 = vadd.f32 %v1432, %v1495
      %1497 = vmatmul.bf16.gmra.mxu0 %v838
      %v1498 = vpop.f32.mrf.mxu0
      %v1499 = vadd.f32 %v1435, %v1498
      %v1500 = vpop.f32.mrf.mxu0
      %v1501 = vadd.f32 %v1437, %v1500
      %1502 = vmatmul.bf16.gmra.mxu0 %v841
      %v1503 = vpop.f32.mrf.mxu0
      %v1504 = vadd.f32 %v1440, %v1503
      %v1505 = vpop.f32.mrf.mxu0
      %v1506 = vadd.f32 %v1442, %v1505
      %1507 = vmatmul.bf16.gmra.mxu0 %v844
      %v1508 = vpop.f32.mrf.mxu0
      %v1509 = vadd.f32 %v1445, %v1508
      %v1510 = vpop.f32.mrf.mxu0
      %v1511 = vadd.f32 %v1447, %v1510
      %1512 = vmatmul.bf16.gmra.mxu0 %v847
      %v1513 = vpop.f32.mrf.mxu0
      %v1514 = vadd.f32 %v1450, %v1513
      %v1515 = vpop.f32.mrf.mxu0
      %v1516 = vadd.f32 %v1452, %v1515
      %1517 = vmatmul.bf16.gmra.mxu0 %v850
      %v1518 = vpop.f32.mrf.mxu0
      %v1519 = vadd.f32 %v1455, %v1518
      %v1520 = vpop.f32.mrf.mxu0
      %v1521 = vadd.f32 %v1457, %v1520
      %1522 = vmatmul.bf16.gmra.mxu0 %v853
      %v1523 = vpop.f32.mrf.mxu0
      %v1524 = vadd.f32 %v1460, %v1523
      %v1525 = vpop.f32.mrf.mxu0
      %v1526 = vadd.f32 %v1462, %v1525
      %1527 = vmatmul.bf16.gmra.mxu0 %v856
      %v1528 = vpop.f32.mrf.mxu0
      %v1529 = vadd.f32 %v1465, %v1528
      %v1530 = vpop.f32.mrf.mxu0
      %v1531 = vadd.f32 %v1467, %v1530
      %1532 = vmatmul.bf16.gmra.mxu0 %v859
      %v1533 = vpop.f32.mrf.mxu0
      %v1534 = vadd.f32 %v1470, %v1533
      %v1535 = vpop.f32.mrf.mxu0
      %v1536 = vadd.f32 %v1472, %v1535
      %1537 = vmatmul.bf16.gmra.mxu0 %v862
      %v1538 = vpop.f32.mrf.mxu0
      %v1539 = vadd.f32 %v1475, %v1538
      %v1540 = vpop.f32.mrf.mxu0
      %v1541 = vadd.f32 %v1477, %v1540
      %1542 = vdwg.mxu0
      %1543 = vmatpush.bf16.msra.mxu0 %v1229
      %1544 = vmatpush.bf16.msra.mxu0 %v1226
      %1545 = vmatpush.bf16.msra.mxu0 %v1223
      %1546 = vmatpush.bf16.msra.mxu0 %v1220
      %1547 = vmatpush.bf16.msra.mxu0 %v1217
      %1548 = vmatpush.bf16.msra.mxu0 %v1214
      %1549 = vmatpush.bf16.msra.mxu0 %v1211
      %1550 = vmatpush.bf16.msra.mxu0 %v1208
      %1551 = vmatmul.bf16.gmra.mxu0 %v830
      %v1552 = vpop.f32.mrf.mxu0
      %v1553 = vadd.f32 %v962, %v1552
      %v1554 = vpop.f32.mrf.mxu0
      %v1555 = vadd.f32 %v962, %v1554
      %1556 = vmatmul.bf16.gmra.mxu0 %v833
      %v1557 = vpop.f32.mrf.mxu0
      %v1558 = vadd.f32 %v962, %v1557
      %v1559 = vpop.f32.mrf.mxu0
      %v1560 = vadd.f32 %v962, %v1559
      %1561 = vmatmul.bf16.gmra.mxu0 %v836
      %v1562 = vpop.f32.mrf.mxu0
      %v1563 = vadd.f32 %v962, %v1562
      %v1564 = vpop.f32.mrf.mxu0
      %v1565 = vadd.f32 %v962, %v1564
      %1566 = vmatmul.bf16.gmra.mxu0 %v839
      %v1567 = vpop.f32.mrf.mxu0
      %v1568 = vadd.f32 %v962, %v1567
      %v1569 = vpop.f32.mrf.mxu0
      %v1570 = vadd.f32 %v962, %v1569
      %1571 = vmatmul.bf16.gmra.mxu0 %v842
      %v1572 = vpop.f32.mrf.mxu0
      %v1573 = vadd.f32 %v962, %v1572
      %v1574 = vpop.f32.mrf.mxu0
      %v1575 = vadd.f32 %v962, %v1574
      %1576 = vmatmul.bf16.gmra.mxu0 %v845
      %v1577 = vpop.f32.mrf.mxu0
      %v1578 = vadd.f32 %v962, %v1577
      %v1579 = vpop.f32.mrf.mxu0
      %v1580 = vadd.f32 %v962, %v1579
      %1581 = vmatmul.bf16.gmra.mxu0 %v848
      %v1582 = vpop.f32.mrf.mxu0
      %v1583 = vadd.f32 %v962, %v1582
      %v1584 = vpop.f32.mrf.mxu0
      %v1585 = vadd.f32 %v962, %v1584
      %1586 = vmatmul.bf16.gmra.mxu0 %v851
      %v1587 = vpop.f32.mrf.mxu0
      %v1588 = vadd.f32 %v962, %v1587
      %v1589 = vpop.f32.mrf.mxu0
      %v1590 = vadd.f32 %v962, %v1589
      %1591 = vmatmul.bf16.gmra.mxu0 %v854
      %v1592 = vpop.f32.mrf.mxu0
      %v1593 = vadd.f32 %v962, %v1592
      %v1594 = vpop.f32.mrf.mxu0
      %v1595 = vadd.f32 %v962, %v1594
      %1596 = vmatmul.bf16.gmra.mxu0 %v857
      %v1597 = vpop.f32.mrf.mxu0
      %v1598 = vadd.f32 %v962, %v1597
      %v1599 = vpop.f32.mrf.mxu0
      %v1600 = vadd.f32 %v962, %v1599
      %1601 = vmatmul.bf16.gmra.mxu0 %v860
      %v1602 = vpop.f32.mrf.mxu0
      %v1603 = vadd.f32 %v962, %v1602
      %v1604 = vpop.f32.mrf.mxu0
      %v1605 = vadd.f32 %v962, %v1604
      %1606 = vdwg.mxu0
      %1607 = vmatpush.bf16.msra.mxu0 %v1253
      %1608 = vmatpush.bf16.msra.mxu0 %v1250
      %1609 = vmatpush.bf16.msra.mxu0 %v1247
      %1610 = vmatpush.bf16.msra.mxu0 %v1244
      %1611 = vmatpush.bf16.msra.mxu0 %v1241
      %1612 = vmatpush.bf16.msra.mxu0 %v1238
      %1613 = vmatpush.bf16.msra.mxu0 %v1235
      %1614 = vmatpush.bf16.msra.mxu0 %v1232
      %1615 = vmatmul.bf16.gmra.mxu0 %v831
      %v1616 = vpop.f32.mrf.mxu0
      %v1617 = vadd.f32 %v1553, %v1616
      %v1618 = vpop.f32.mrf.mxu0
      %v1619 = vadd.f32 %v1555, %v1618
      %1620 = vmatmul.bf16.gmra.mxu0 %v834
      %v1621 = vpop.f32.mrf.mxu0
      %v1622 = vadd.f32 %v1558, %v1621
      %v1623 = vpop.f32.mrf.mxu0
      %v1624 = vadd.f32 %v1560, %v1623
      %1625 = vmatmul.bf16.gmra.mxu0 %v837
      %v1626 = vpop.f32.mrf.mxu0
      %v1627 = vadd.f32 %v1563, %v1626
      %v1628 = vpop.f32.mrf.mxu0
      %v1629 = vadd.f32 %v1565, %v1628
      %1630 = vmatmul.bf16.gmra.mxu0 %v840
      %v1631 = vpop.f32.mrf.mxu0
      %v1632 = vadd.f32 %v1568, %v1631
      %v1633 = vpop.f32.mrf.mxu0
      %v1634 = vadd.f32 %v1570, %v1633
      %1635 = vmatmul.bf16.gmra.mxu0 %v843
      %v1636 = vpop.f32.mrf.mxu0
      %v1637 = vadd.f32 %v1573, %v1636
      %v1638 = vpop.f32.mrf.mxu0
      %v1639 = vadd.f32 %v1575, %v1638
      %1640 = vmatmul.bf16.gmra.mxu0 %v846
      %v1641 = vpop.f32.mrf.mxu0
      %v1642 = vadd.f32 %v1578, %v1641
      %v1643 = vpop.f32.mrf.mxu0
      %v1644 = vadd.f32 %v1580, %v1643
      %1645 = vmatmul.bf16.gmra.mxu0 %v849
      %v1646 = vpop.f32.mrf.mxu0
      %v1647 = vadd.f32 %v1583, %v1646
      %v1648 = vpop.f32.mrf.mxu0
      %v1649 = vadd.f32 %v1585, %v1648
      %1650 = vmatmul.bf16.gmra.mxu0 %v852
      %v1651 = vpop.f32.mrf.mxu0
      %v1652 = vadd.f32 %v1588, %v1651
      %v1653 = vpop.f32.mrf.mxu0
      %v1654 = vadd.f32 %v1590, %v1653
      %1655 = vmatmul.bf16.gmra.mxu0 %v855
      %v1656 = vpop.f32.mrf.mxu0
      %v1657 = vadd.f32 %v1593, %v1656
      %v1658 = vpop.f32.mrf.mxu0
      %v1659 = vadd.f32 %v1595, %v1658
      %1660 = vmatmul.bf16.gmra.mxu0 %v858
      %v1661 = vpop.f32.mrf.mxu0
      %v1662 = vadd.f32 %v1598, %v1661
      %v1663 = vpop.f32.mrf.mxu0
      %v1664 = vadd.f32 %v1600, %v1663
      %1665 = vmatmul.bf16.gmra.mxu0 %v861
      %v1666 = vpop.f32.mrf.mxu0
      %v1667 = vadd.f32 %v1603, %v1666
      %v1668 = vpop.f32.mrf.mxu0
      %v1669 = vadd.f32 %v1605, %v1668
      %1670 = vdwg.mxu0
      %1671 = vmatpush.bf16.msra.mxu0 %v1277
      %1672 = vmatpush.bf16.msra.mxu0 %v1274
      %1673 = vmatpush.bf16.msra.mxu0 %v1271
      %1674 = vmatpush.bf16.msra.mxu0 %v1268
      %1675 = vmatpush.bf16.msra.mxu0 %v1265
      %1676 = vmatpush.bf16.msra.mxu0 %v1262
      %1677 = vmatpush.bf16.msra.mxu0 %v1259
      %1678 = vmatpush.bf16.msra.mxu0 %v1256
      %1679 = vmatmul.bf16.gmra.mxu0 %v832
      %v1680 = vpop.f32.mrf.mxu0
      %v1681 = vadd.f32 %v1617, %v1680
      %v1682 = vpop.f32.mrf.mxu0
      %v1683 = vadd.f32 %v1619, %v1682
      %1684 = vmatmul.bf16.gmra.mxu0 %v835
      %v1685 = vpop.f32.mrf.mxu0
      %v1686 = vadd.f32 %v1622, %v1685
      %v1687 = vpop.f32.mrf.mxu0
      %v1688 = vadd.f32 %v1624, %v1687
      %1689 = vmatmul.bf16.gmra.mxu0 %v838
      %v1690 = vpop.f32.mrf.mxu0
      %v1691 = vadd.f32 %v1627, %v1690
      %v1692 = vpop.f32.mrf.mxu0
      %v1693 = vadd.f32 %v1629, %v1692
      %1694 = vmatmul.bf16.gmra.mxu0 %v841
      %v1695 = vpop.f32.mrf.mxu0
      %v1696 = vadd.f32 %v1632, %v1695
      %v1697 = vpop.f32.mrf.mxu0
      %v1698 = vadd.f32 %v1634, %v1697
      %1699 = vmatmul.bf16.gmra.mxu0 %v844
      %v1700 = vpop.f32.mrf.mxu0
      %v1701 = vadd.f32 %v1637, %v1700
      %v1702 = vpop.f32.mrf.mxu0
      %v1703 = vadd.f32 %v1639, %v1702
      %1704 = vmatmul.bf16.gmra.mxu0 %v847
      %v1705 = vpop.f32.mrf.mxu0
      %v1706 = vadd.f32 %v1642, %v1705
      %v1707 = vpop.f32.mrf.mxu0
      %v1708 = vadd.f32 %v1644, %v1707
      %1709 = vmatmul.bf16.gmra.mxu0 %v850
      %v1710 = vpop.f32.mrf.mxu0
      %v1711 = vadd.f32 %v1647, %v1710
      %v1712 = vpop.f32.mrf.mxu0
      %v1713 = vadd.f32 %v1649, %v1712
      %1714 = vmatmul.bf16.gmra.mxu0 %v853
      %v1715 = vpop.f32.mrf.mxu0
      %v1716 = vadd.f32 %v1652, %v1715
      %v1717 = vpop.f32.mrf.mxu0
      %v1718 = vadd.f32 %v1654, %v1717
      %1719 = vmatmul.bf16.gmra.mxu0 %v856
      %v1720 = vpop.f32.mrf.mxu0
      %v1721 = vadd.f32 %v1657, %v1720
      %v1722 = vpop.f32.mrf.mxu0
      %v1723 = vadd.f32 %v1659, %v1722
      %1724 = vmatmul.bf16.gmra.mxu0 %v859
      %v1725 = vpop.f32.mrf.mxu0
      %v1726 = vadd.f32 %v1662, %v1725
      %v1727 = vpop.f32.mrf.mxu0
      %v1728 = vadd.f32 %v1664, %v1727
      %1729 = vmatmul.bf16.gmra.mxu0 %v862
      %v1730 = vpop.f32.mrf.mxu0
      %v1731 = vadd.f32 %v1667, %v1730
      %v1732 = vpop.f32.mrf.mxu0
      %v1733 = vadd.f32 %v1669, %v1732
      %1734 = vdwg.mxu0
      %1735 = vmatpush.bf16.msra.mxu0 %v1230
      %1736 = vmatpush.bf16.msra.mxu0 %v1227
      %1737 = vmatpush.bf16.msra.mxu0 %v1224
      %1738 = vmatpush.bf16.msra.mxu0 %v1221
      %1739 = vmatpush.bf16.msra.mxu0 %v1218
      %1740 = vmatpush.bf16.msra.mxu0 %v1215
      %1741 = vmatpush.bf16.msra.mxu0 %v1212
      %1742 = vmatpush.bf16.msra.mxu0 %v1209
      %1743 = vmatmul.bf16.gmra.mxu0 %v830
      %v1744 = vpop.f32.mrf.mxu0
      %v1745 = vadd.f32 %v963, %v1744
      %v1746 = vpop.f32.mrf.mxu0
      %v1747 = vadd.f32 %v963, %v1746
      %1748 = vmatmul.bf16.gmra.mxu0 %v833
      %v1749 = vpop.f32.mrf.mxu0
      %v1750 = vadd.f32 %v963, %v1749
      %v1751 = vpop.f32.mrf.mxu0
      %v1752 = vadd.f32 %v963, %v1751
      %1753 = vmatmul.bf16.gmra.mxu0 %v836
      %v1754 = vpop.f32.mrf.mxu0
      %v1755 = vadd.f32 %v963, %v1754
      %v1756 = vpop.f32.mrf.mxu0
      %v1757 = vadd.f32 %v963, %v1756
      %1758 = vmatmul.bf16.gmra.mxu0 %v839
      %v1759 = vpop.f32.mrf.mxu0
      %v1760 = vadd.f32 %v963, %v1759
      %v1761 = vpop.f32.mrf.mxu0
      %v1762 = vadd.f32 %v963, %v1761
      %1763 = vmatmul.bf16.gmra.mxu0 %v842
      %v1764 = vpop.f32.mrf.mxu0
      %v1765 = vadd.f32 %v963, %v1764
      %v1766 = vpop.f32.mrf.mxu0
      %v1767 = vadd.f32 %v963, %v1766
      %1768 = vmatmul.bf16.gmra.mxu0 %v845
      %v1769 = vpop.f32.mrf.mxu0
      %v1770 = vadd.f32 %v963, %v1769
      %v1771 = vpop.f32.mrf.mxu0
      %v1772 = vadd.f32 %v963, %v1771
      %1773 = vmatmul.bf16.gmra.mxu0 %v848
      %v1774 = vpop.f32.mrf.mxu0
      %v1775 = vadd.f32 %v963, %v1774
      %v1776 = vpop.f32.mrf.mxu0
      %v1777 = vadd.f32 %v963, %v1776
      %1778 = vmatmul.bf16.gmra.mxu0 %v851
      %v1779 = vpop.f32.mrf.mxu0
      %v1780 = vadd.f32 %v963, %v1779
      %v1781 = vpop.f32.mrf.mxu0
      %v1782 = vadd.f32 %v963, %v1781
      %1783 = vmatmul.bf16.gmra.mxu0 %v854
      %v1784 = vpop.f32.mrf.mxu0
      %v1785 = vadd.f32 %v963, %v1784
      %v1786 = vpop.f32.mrf.mxu0
      %v1787 = vadd.f32 %v963, %v1786
      %1788 = vmatmul.bf16.gmra.mxu0 %v857
      %v1789 = vpop.f32.mrf.mxu0
      %v1790 = vadd.f32 %v963, %v1789
      %v1791 = vpop.f32.mrf.mxu0
      %v1792 = vadd.f32 %v963, %v1791
      %1793 = vmatmul.bf16.gmra.mxu0 %v860
      %v1794 = vpop.f32.mrf.mxu0
      %v1795 = vadd.f32 %v963, %v1794
      %v1796 = vpop.f32.mrf.mxu0
      %v1797 = vadd.f32 %v963, %v1796
      %1798 = vdwg.mxu0
      %1799 = vmatpush.bf16.msra.mxu0 %v1254
      %1800 = vmatpush.bf16.msra.mxu0 %v1251
      %1801 = vmatpush.bf16.msra.mxu0 %v1248
      %1802 = vmatpush.bf16.msra.mxu0 %v1245
      %1803 = vmatpush.bf16.msra.mxu0 %v1242
      %1804 = vmatpush.bf16.msra.mxu0 %v1239
      %1805 = vmatpush.bf16.msra.mxu0 %v1236
      %1806 = vmatpush.bf16.msra.mxu0 %v1233
      %1807 = vmatmul.bf16.gmra.mxu0 %v831
      %v1808 = vpop.f32.mrf.mxu0
      %v1809 = vadd.f32 %v1745, %v1808
      %v1810 = vpop.f32.mrf.mxu0
      %v1811 = vadd.f32 %v1747, %v1810
      %1812 = vmatmul.bf16.gmra.mxu0 %v834
      %v1813 = vpop.f32.mrf.mxu0
      %v1814 = vadd.f32 %v1750, %v1813
      %v1815 = vpop.f32.mrf.mxu0
      %v1816 = vadd.f32 %v1752, %v1815
      %1817 = vmatmul.bf16.gmra.mxu0 %v837
      %v1818 = vpop.f32.mrf.mxu0
      %v1819 = vadd.f32 %v1755, %v1818
      %v1820 = vpop.f32.mrf.mxu0
      %v1821 = vadd.f32 %v1757, %v1820
      %1822 = vmatmul.bf16.gmra.mxu0 %v840
      %v1823 = vpop.f32.mrf.mxu0
      %v1824 = vadd.f32 %v1760, %v1823
      %v1825 = vpop.f32.mrf.mxu0
      %v1826 = vadd.f32 %v1762, %v1825
      %1827 = vmatmul.bf16.gmra.mxu0 %v843
      %v1828 = vpop.f32.mrf.mxu0
      %v1829 = vadd.f32 %v1765, %v1828
      %v1830 = vpop.f32.mrf.mxu0
      %v1831 = vadd.f32 %v1767, %v1830
      %1832 = vmatmul.bf16.gmra.mxu0 %v846
      %v1833 = vpop.f32.mrf.mxu0
      %v1834 = vadd.f32 %v1770, %v1833
      %v1835 = vpop.f32.mrf.mxu0
      %v1836 = vadd.f32 %v1772, %v1835
      %1837 = vmatmul.bf16.gmra.mxu0 %v849
      %v1838 = vpop.f32.mrf.mxu0
      %v1839 = vadd.f32 %v1775, %v1838
      %v1840 = vpop.f32.mrf.mxu0
      %v1841 = vadd.f32 %v1777, %v1840
      %1842 = vmatmul.bf16.gmra.mxu0 %v852
      %v1843 = vpop.f32.mrf.mxu0
      %v1844 = vadd.f32 %v1780, %v1843
      %v1845 = vpop.f32.mrf.mxu0
      %v1846 = vadd.f32 %v1782, %v1845
      %1847 = vmatmul.bf16.gmra.mxu0 %v855
      %v1848 = vpop.f32.mrf.mxu0
      %v1849 = vadd.f32 %v1785, %v1848
      %v1850 = vpop.f32.mrf.mxu0
      %v1851 = vadd.f32 %v1787, %v1850
      %1852 = vmatmul.bf16.gmra.mxu0 %v858
      %v1853 = vpop.f32.mrf.mxu0
      %v1854 = vadd.f32 %v1790, %v1853
      %v1855 = vpop.f32.mrf.mxu0
      %v1856 = vadd.f32 %v1792, %v1855
      %1857 = vmatmul.bf16.gmra.mxu0 %v861
      %v1858 = vpop.f32.mrf.mxu0
      %v1859 = vadd.f32 %v1795, %v1858
      %v1860 = vpop.f32.mrf.mxu0
      %v1861 = vadd.f32 %v1797, %v1860
      %1862 = vdwg.mxu0
      %1863 = vmatpush.bf16.msra.mxu0 %v1278
      %1864 = vmatpush.bf16.msra.mxu0 %v1275
      %1865 = vmatpush.bf16.msra.mxu0 %v1272
      %1866 = vmatpush.bf16.msra.mxu0 %v1269
      %1867 = vmatpush.bf16.msra.mxu0 %v1266
      %1868 = vmatpush.bf16.msra.mxu0 %v1263
      %1869 = vmatpush.bf16.msra.mxu0 %v1260
      %1870 = vmatpush.bf16.msra.mxu0 %v1257
      %1871 = vmatmul.bf16.gmra.mxu0 %v832
      %v1872 = vpop.f32.mrf.mxu0
      %v1873 = vadd.f32 %v1809, %v1872
      %v1874 = vpop.f32.mrf.mxu0
      %v1875 = vadd.f32 %v1811, %v1874
      %1876 = vmatmul.bf16.gmra.mxu0 %v835
      %v1877 = vpop.f32.mrf.mxu0
      %v1878 = vadd.f32 %v1814, %v1877
      %v1879 = vpop.f32.mrf.mxu0
      %v1880 = vadd.f32 %v1816, %v1879
      %1881 = vmatmul.bf16.gmra.mxu0 %v838
      %v1882 = vpop.f32.mrf.mxu0
      %v1883 = vadd.f32 %v1819, %v1882
      %v1884 = vpop.f32.mrf.mxu0
      %v1885 = vadd.f32 %v1821, %v1884
      %1886 = vmatmul.bf16.gmra.mxu0 %v841
      %v1887 = vpop.f32.mrf.mxu0
      %v1888 = vadd.f32 %v1824, %v1887
      %v1889 = vpop.f32.mrf.mxu0
      %v1890 = vadd.f32 %v1826, %v1889
      %1891 = vmatmul.bf16.gmra.mxu0 %v844
      %v1892 = vpop.f32.mrf.mxu0
      %v1893 = vadd.f32 %v1829, %v1892
      %v1894 = vpop.f32.mrf.mxu0
      %v1895 = vadd.f32 %v1831, %v1894
      %1896 = vmatmul.bf16.gmra.mxu0 %v847
      %v1897 = vpop.f32.mrf.mxu0
      %v1898 = vadd.f32 %v1834, %v1897
      %v1899 = vpop.f32.mrf.mxu0
      %v1900 = vadd.f32 %v1836, %v1899
      %1901 = vmatmul.bf16.gmra.mxu0 %v850
      %v1902 = vpop.f32.mrf.mxu0
      %v1903 = vadd.f32 %v1839, %v1902
      %v1904 = vpop.f32.mrf.mxu0
      %v1905 = vadd.f32 %v1841, %v1904
      %1906 = vmatmul.bf16.gmra.mxu0 %v853
      %v1907 = vpop.f32.mrf.mxu0
      %v1908 = vadd.f32 %v1844, %v1907
      %v1909 = vpop.f32.mrf.mxu0
      %v1910 = vadd.f32 %v1846, %v1909
      %1911 = vmatmul.bf16.gmra.mxu0 %v856
      %v1912 = vpop.f32.mrf.mxu0
      %v1913 = vadd.f32 %v1849, %v1912
      %v1914 = vpop.f32.mrf.mxu0
      %v1915 = vadd.f32 %v1851, %v1914
      %1916 = vmatmul.bf16.gmra.mxu0 %v859
      %v1917 = vpop.f32.mrf.mxu0
      %v1918 = vadd.f32 %v1854, %v1917
      %v1919 = vpop.f32.mrf.mxu0
      %v1920 = vadd.f32 %v1856, %v1919
      %1921 = vmatmul.bf16.gmra.mxu0 %v862
      %v1922 = vpop.f32.mrf.mxu0
      %v1923 = vadd.f32 %v1859, %v1922
      %v1924 = vpop.f32.mrf.mxu0
      %v1925 = vadd.f32 %v1861, %v1924
      %1926 = vdwg.mxu0
      %v1927 = vmax.f32 %v1489, 0.0
      %v1928 = vmax.f32 %v1681, 0.0
      %v1929 = vmax.f32 %v1873, 0.0
      %v1930 = vmax.f32 %v1491, 0.0
      %v1931 = vmax.f32 %v1683, 0.0
      %v1932 = vmax.f32 %v1875, 0.0
      %v1933 = vmax.f32 %v1494, 0.0
      %v1934 = vmax.f32 %v1686, 0.0
      %v1935 = vmax.f32 %v1878, 0.0
      %v1936 = vmax.f32 %v1496, 0.0
      %v1937 = vmax.f32 %v1688, 0.0
      %v1938 = vmax.f32 %v1880, 0.0
      %v1939 = vmax.f32 %v1499, 0.0
      %v1940 = vmax.f32 %v1691, 0.0
      %v1941 = vmax.f32 %v1883, 0.0
      %v1942 = vmax.f32 %v1501, 0.0
      %v1943 = vmax.f32 %v1693, 0.0
      %v1944 = vmax.f32 %v1885, 0.0
      %v1945 = vmax.f32 %v1504, 0.0
      %v1946 = vmax.f32 %v1696, 0.0
      %v1947 = vmax.f32 %v1888, 0.0
      %v1948 = vmax.f32 %v1506, 0.0
      %v1949 = vmax.f32 %v1698, 0.0
      %v1950 = vmax.f32 %v1890, 0.0
      %v1951 = vmax.f32 %v1509, 0.0
      %v1952 = vmax.f32 %v1701, 0.0
      %v1953 = vmax.f32 %v1893, 0.0
      %v1954 = vmax.f32 %v1511, 0.0
      %v1955 = vmax.f32 %v1703, 0.0
      %v1956 = vmax.f32 %v1895, 0.0
      %v1957 = vmax.f32 %v1514, 0.0
      %v1958 = vmax.f32 %v1706, 0.0
      %v1959 = vmax.f32 %v1898, 0.0
      %v1960 = vmax.f32 %v1516, 0.0
      %v1961 = vmax.f32 %v1708, 0.0
      %v1962 = vmax.f32 %v1900, 0.0
      %v1963 = vmax.f32 %v1519, 0.0
      %v1964 = vmax.f32 %v1711, 0.0
      %v1965 = vmax.f32 %v1903, 0.0
      %v1966 = vmax.f32 %v1521, 0.0
      %v1967 = vmax.f32 %v1713, 0.0
      %v1968 = vmax.f32 %v1905, 0.0
      %v1969 = vmax.f32 %v1524, 0.0
      %v1970 = vmax.f32 %v1716, 0.0
      %v1971 = vmax.f32 %v1908, 0.0
      %v1972 = vmax.f32 %v1526, 0.0
      %v1973 = vmax.f32 %v1718, 0.0
      %v1974 = vmax.f32 %v1910, 0.0
      %v1975 = vmax.f32 %v1529, 0.0
      %v1976 = vmax.f32 %v1721, 0.0
      %v1977 = vmax.f32 %v1913, 0.0
      %v1978 = vmax.f32 %v1531, 0.0
      %v1979 = vmax.f32 %v1723, 0.0
      %v1980 = vmax.f32 %v1915, 0.0
      %v1981 = vmax.f32 %v1534, 0.0
      %v1982 = vmax.f32 %v1726, 0.0
      %v1983 = vmax.f32 %v1918, 0.0
      %v1984 = vmax.f32 %v1536, 0.0
      %v1985 = vmax.f32 %v1728, 0.0
      %v1986 = vmax.f32 %v1920, 0.0
      %v1987 = vmax.f32 %v1539, 0.0
      %v1988 = vmax.f32 %v1731, 0.0
      %v1989 = vmax.f32 %v1923, 0.0
      %v1990 = vmax.f32 %v1541, 0.0
      %v1991 = vmax.f32 %v1733, 0.0
      %v1992 = vmax.f32 %v1925, 0.0
      %v1993 = vpack.c.bf16 %v1930, %v1927
      %v1994 = vpack.c.bf16 %v1931, %v1928
      %v1995 = vpack.c.bf16 %v1932, %v1929
      %v1996 = vpack.c.bf16 %v1936, %v1933
      %v1997 = vpack.c.bf16 %v1937, %v1934
      %v1998 = vpack.c.bf16 %v1938, %v1935
      %v1999 = vpack.c.bf16 %v1942, %v1939
      %v2000 = vpack.c.bf16 %v1943, %v1940
      %v2001 = vpack.c.bf16 %v1944, %v1941
      %v2002 = vpack.c.bf16 %v1948, %v1945
      %v2003 = vpack.c.bf16 %v1949, %v1946
      %v2004 = vpack.c.bf16 %v1950, %v1947
      %v2005 = vpack.c.bf16 %v1954, %v1951
      %v2006 = vpack.c.bf16 %v1955, %v1952
      %v2007 = vpack.c.bf16 %v1956, %v1953
      %v2008 = vpack.c.bf16 %v1960, %v1957
      %v2009 = vpack.c.bf16 %v1961, %v1958
      %v2010 = vpack.c.bf16 %v1962, %v1959
      %v2011 = vpack.c.bf16 %v1966, %v1963
      %v2012 = vpack.c.bf16 %v1967, %v1964
      %v2013 = vpack.c.bf16 %v1968, %v1965
      %v2014 = vpack.c.bf16 %v1972, %v1969
      %v2015 = vpack.c.bf16 %v1973, %v1970
      %v2016 = vpack.c.bf16 %v1974, %v1971
      %v2017 = vpack.c.bf16 %v1978, %v1975
      %v2018 = vpack.c.bf16 %v1979, %v1976
      %v2019 = vpack.c.bf16 %v1980, %v1977
      %v2020 = vpack.c.bf16 %v1984, %v1981
      %v2021 = vpack.c.bf16 %v1985, %v1982
      %v2022 = vpack.c.bf16 %v1986, %v1983
      %v2023 = vpack.c.bf16 %v1990, %v1987
      %v2024 = vpack.c.bf16 %v1991, %v1988
      %v2025 = vpack.c.bf16 %v1992, %v1989
      %v2026 = vld [vmem:[%s5] sm:$0xff]
      %v2027 = vld [vmem:[%s5 + $0x8] sm:$0xf]
      %v2028 = vld [vmem:[%s5 + $0xc] sm:$0xff]
      %v2029 = vld [vmem:[%s5 + $0x14] sm:$0xf]
      %v2030 = vld [vmem:[%s5 + $0x18] sm:$0xff]
      %v2031 = vld [vmem:[%s5 + $0x20] sm:$0xf]
      %v2032 = vld [vmem:[%s5 + $0x24] sm:$0xff]
      %v2033 = vld [vmem:[%s5 + $0x2c] sm:$0xf]
      %v2034 = vld [vmem:[%s5 + $0x30] sm:$0xff]
      %v2035 = vld [vmem:[%s5 + $0x38] sm:$0xf]
      %v2036 = vld [vmem:[%s5 + $0x3c] sm:$0xff]
      %v2037 = vld [vmem:[%s5 + $0x44] sm:$0xf]
      %v2038 = vld [vmem:[%s5 + $0x48] sm:$0xff]
      %v2039 = vld [vmem:[%s5 + $0x50] sm:$0xf]
      %v2040 = vld [vmem:[%s5 + $0x54] sm:$0xff]
      %v2041 = vld [vmem:[%s5 + $0x5c] sm:$0xf]
      %v2042 = vld [vmem:[%s5 + $0x60] sm:$0xff]
      %v2043 = vld [vmem:[%s5 + $0x68] sm:$0xf]
      %v2044 = vld [vmem:[%s5 + $0x6c] sm:$0xff]
      %v2045 = vld [vmem:[%s5 + $0x74] sm:$0xf]
      %v2046 = vld [vmem:[%s5 + $0x78] sm:$0xff]
      %v2047 = vld [vmem:[%s5 + $0x80] sm:$0xf]
      %v2048 = vld [vmem:[%s5 + $0x84] sm:$0xff]
      %v2049 = vld [vmem:[%s5 + $0x8c] sm:$0xf]
      %v2050 = vld [vmem:[%s5 + $0x90] sm:$0xff]
      %v2051 = vld [vmem:[%s5 + $0x98] sm:$0xf]
      %v2052 = vld [vmem:[%s5 + $0x9c] sm:$0xff]
      %v2053 = vld [vmem:[%s5 + $0xa4] sm:$0xf]
      %v2054 = vld [vmem:[%s5 + $0xa8] sm:$0xff]
      %v2055 = vld [vmem:[%s5 + $0xb0] sm:$0xf]
      %v2056 = vld [vmem:[%s5 + $0xb4] sm:$0xff]
      %v2057 = vld [vmem:[%s5 + $0xbc] sm:$0xf]
      %v2058 = vld [vmem:[%s5 + $0xc0] sm:$0xff]
      %v2059 = vld [vmem:[%s5 + $0xc8] sm:$0xf]
      %v2060 = vld [vmem:[%s5 + $0xcc] sm:$0xff]
      %v2061 = vld [vmem:[%s5 + $0xd4] sm:$0xf]
      %v2062 = vld [vmem:[%s5 + $0xd8] sm:$0xff]
      %v2063 = vld [vmem:[%s5 + $0xe0] sm:$0xf]
      %v2064 = vld [vmem:[%s5 + $0xe4] sm:$0xff]
      %v2065 = vld [vmem:[%s5 + $0xec] sm:$0xf]
      %v2066 = vld [vmem:[%s5 + $0xf0] sm:$0xff]
      %v2067 = vld [vmem:[%s5 + $0xf8] sm:$0xf]
      %v2068 = vld [vmem:[%s5 + $0xfc] sm:$0xff]
      %v2069 = vld [vmem:[%s5 + $0x104] sm:$0xf]
      %v2070 = vld [vmem:[%s5 + $0x108] sm:$0xff]
      %v2071 = vld [vmem:[%s5 + $0x110] sm:$0xf]
      %v2072 = vld [vmem:[%s5 + $0x114] sm:$0xff]
      %v2073 = vld [vmem:[%s5 + $0x11c] sm:$0xf]
      %v2074 = vld [vmem:[%s5 + $0x120] sm:$0xff]
      %v2075 = vld [vmem:[%s5 + $0x128] sm:$0xf]
      %v2076 = vld [vmem:[%s5 + $0x12c] sm:$0xff]
      %v2077 = vld [vmem:[%s5 + $0x134] sm:$0xf]
      %v2078 = vld [vmem:[%s5 + $0x138] sm:$0xff]
      %v2079 = vld [vmem:[%s5 + $0x140] sm:$0xf]
      %v2080 = vld [vmem:[%s5 + $0x144] sm:$0xff]
      %v2081 = vld [vmem:[%s5 + $0x14c] sm:$0xf]
      %v2082 = vld [vmem:[%s5 + $0x150] sm:$0xff]
      %v2083 = vld [vmem:[%s5 + $0x158] sm:$0xf]
      %v2084 = vld [vmem:[%s5 + $0x15c] sm:$0xff]
      %v2085 = vld [vmem:[%s5 + $0x164] sm:$0xf]
      %v2086 = vld [vmem:[%s5 + $0x168] sm:$0xff]
      %v2087 = vld [vmem:[%s5 + $0x170] sm:$0xf]
      %v2088 = vld [vmem:[%s5 + $0x174] sm:$0xff]
      %v2089 = vld [vmem:[%s5 + $0x17c] sm:$0xf]
      %v2090 = vld [vmem:[%s5 + $0x180] sm:$0xff]
      %v2091 = vld [vmem:[%s5 + $0x188] sm:$0xf]
      %v2092 = vld [vmem:[%s5 + $0x18c] sm:$0xff]
      %v2093 = vld [vmem:[%s5 + $0x194] sm:$0xf]
      %v2094 = vld [vmem:[%s5 + $0x198] sm:$0xff]
      %v2095 = vld [vmem:[%s5 + $0x1a0] sm:$0xf]
      %v2096 = vld [vmem:[%s5 + $0x1a4] sm:$0xff]
      %v2097 = vld [vmem:[%s5 + $0x1ac] sm:$0xf]
      %v2098 = vld [vmem:[%s5 + $0x1b0] sm:$0xff]
      %v2099 = vld [vmem:[%s5 + $0x1b8] sm:$0xf]
      %v2100 = vld [vmem:[%s5 + $0x1bc] sm:$0xff]
      %v2101 = vld [vmem:[%s5 + $0x1c4] sm:$0xf]
      %v2102 = vld [vmem:[%s5 + $0x1c8] sm:$0xff]
      %v2103 = vld [vmem:[%s5 + $0x1d0] sm:$0xf]
      %v2104 = vld [vmem:[%s5 + $0x1d4] sm:$0xff]
      %v2105 = vld [vmem:[%s5 + $0x1dc] sm:$0xf]
      %v2106 = vld [vmem:[%s5 + $0x1e0] sm:$0xff]
      %v2107 = vld [vmem:[%s5 + $0x1e8] sm:$0xf]
      %v2108 = vld [vmem:[%s5 + $0x1ec] sm:$0xff]
      %v2109 = vld [vmem:[%s5 + $0x1f4] sm:$0xf]
      %v2110 = vld [vmem:[%s5 + $0x1f8] sm:$0xff]
      %v2111 = vld [vmem:[%s5 + $0x200] sm:$0xf]
      %v2112 = vld [vmem:[%s5 + $0x204] sm:$0xff]
      %v2113 = vld [vmem:[%s5 + $0x20c] sm:$0xf]
      %v2114 = vld [vmem:[%s5 + $0x210] sm:$0xff]
      %v2115 = vld [vmem:[%s5 + $0x218] sm:$0xf]
      %v2116 = vld [vmem:[%s5 + $0x21c] sm:$0xff]
      %v2117 = vld [vmem:[%s5 + $0x224] sm:$0xf]
      %v2118 = vld [vmem:[%s5 + $0x228] sm:$0xff]
      %v2119 = vld [vmem:[%s5 + $0x230] sm:$0xf]
      %v2120 = vld [vmem:[%s5 + $0x234] sm:$0xff]
      %v2121 = vld [vmem:[%s5 + $0x23c] sm:$0xf]
      %v2122 = vld [vmem:[%s6] sm:$0x7]
      %v2124 = vperm.slane %v2122, 0
      %v2125 = vperm.slane %v2122, 1
      %v2126 = vperm.slane %v2122, 2
      %v2226 = vunpack.c.l.b16 %v2026
      %v2227 = vunpack.c.h.b16 %v2026
      %v2228 = vunpack.c.l.b16 %v2027
      %v2229 = vunpack.c.l.b16 %v2028
      %v2230 = vunpack.c.h.b16 %v2028
      %v2231 = vunpack.c.l.b16 %v2029
      %v2232 = vunpack.c.l.b16 %v2030
      %v2233 = vunpack.c.h.b16 %v2030
      %v2234 = vunpack.c.l.b16 %v2031
      %v2235 = vunpack.c.l.b16 %v2032
      %v2236 = vunpack.c.h.b16 %v2032
      %v2237 = vunpack.c.l.b16 %v2033
      %v2238 = vunpack.c.l.b16 %v2034
      %v2239 = vunpack.c.h.b16 %v2034
      %v2240 = vunpack.c.l.b16 %v2035
      %v2241 = vunpack.c.l.b16 %v2036
      %v2242 = vunpack.c.h.b16 %v2036
      %v2243 = vunpack.c.l.b16 %v2037
      %v2244 = vunpack.c.l.b16 %v2038
      %v2245 = vunpack.c.h.b16 %v2038
      %v2246 = vunpack.c.l.b16 %v2039
      %v2247 = vunpack.c.l.b16 %v2040
      %v2248 = vunpack.c.h.b16 %v2040
      %v2249 = vunpack.c.l.b16 %v2041
      %v2250 = vunpack.c.l.b16 %v2042
      %v2251 = vunpack.c.h.b16 %v2042
      %v2252 = vunpack.c.l.b16 %v2043
      %v2253 = vunpack.c.l.b16 %v2044
      %v2254 = vunpack.c.h.b16 %v2044
      %v2255 = vunpack.c.l.b16 %v2045
      %v2256 = vunpack.c.l.b16 %v2046
      %v2257 = vunpack.c.h.b16 %v2046
      %v2258 = vunpack.c.l.b16 %v2047
      %v2259 = vunpack.c.l.b16 %v2048
      %v2260 = vunpack.c.h.b16 %v2048
      %v2261 = vunpack.c.l.b16 %v2049
      %v2262 = vunpack.c.l.b16 %v2050
      %v2263 = vunpack.c.h.b16 %v2050
      %v2264 = vunpack.c.l.b16 %v2051
      %v2265 = vunpack.c.l.b16 %v2052
      %v2266 = vunpack.c.h.b16 %v2052
      %v2267 = vunpack.c.l.b16 %v2053
      %v2268 = vunpack.c.l.b16 %v2054
      %v2269 = vunpack.c.h.b16 %v2054
      %v2270 = vunpack.c.l.b16 %v2055
      %v2271 = vunpack.c.l.b16 %v2056
      %v2272 = vunpack.c.h.b16 %v2056
      %v2273 = vunpack.c.l.b16 %v2057
      %v2274 = vunpack.c.l.b16 %v2058
      %v2275 = vunpack.c.h.b16 %v2058
      %v2276 = vunpack.c.l.b16 %v2059
      %v2277 = vunpack.c.l.b16 %v2060
      %v2278 = vunpack.c.h.b16 %v2060
      %v2279 = vunpack.c.l.b16 %v2061
      %v2280 = vunpack.c.l.b16 %v2062
      %v2281 = vunpack.c.h.b16 %v2062
      %v2282 = vunpack.c.l.b16 %v2063
      %v2283 = vunpack.c.l.b16 %v2064
      %v2284 = vunpack.c.h.b16 %v2064
      %v2285 = vunpack.c.l.b16 %v2065
      %v2286 = vunpack.c.l.b16 %v2066
      %v2287 = vunpack.c.h.b16 %v2066
      %v2288 = vunpack.c.l.b16 %v2067
      %v2289 = vunpack.c.l.b16 %v2068
      %v2290 = vunpack.c.h.b16 %v2068
      %v2291 = vunpack.c.l.b16 %v2069
      %v2292 = vunpack.c.l.b16 %v2070
      %v2293 = vunpack.c.h.b16 %v2070
      %v2294 = vunpack.c.l.b16 %v2071
      %v2295 = vunpack.c.l.b16 %v2072
      %v2296 = vunpack.c.h.b16 %v2072
      %v2297 = vunpack.c.l.b16 %v2073
      %v2298 = vunpack.c.l.b16 %v2074
      %v2299 = vunpack.c.h.b16 %v2074
      %v2300 = vunpack.c.l.b16 %v2075
      %v2301 = vunpack.c.l.b16 %v2076
      %v2302 = vunpack.c.h.b16 %v2076
      %v2303 = vunpack.c.l.b16 %v2077
      %v2304 = vunpack.c.l.b16 %v2078
      %v2305 = vunpack.c.h.b16 %v2078
      %v2306 = vunpack.c.l.b16 %v2079
      %v2307 = vunpack.c.l.b16 %v2080
      %v2308 = vunpack.c.h.b16 %v2080
      %v2309 = vunpack.c.l.b16 %v2081
      %v2310 = vunpack.c.l.b16 %v2082
      %v2311 = vunpack.c.h.b16 %v2082
      %v2312 = vunpack.c.l.b16 %v2083
      %v2313 = vunpack.c.l.b16 %v2084
      %v2314 = vunpack.c.h.b16 %v2084
      %v2315 = vunpack.c.l.b16 %v2085
      %v2316 = vunpack.c.l.b16 %v2086
      %v2317 = vunpack.c.h.b16 %v2086
      %v2318 = vunpack.c.l.b16 %v2087
      %v2319 = vunpack.c.l.b16 %v2088
      %v2320 = vunpack.c.h.b16 %v2088
      %v2321 = vunpack.c.l.b16 %v2089
      %v2322 = vunpack.c.l.b16 %v2090
      %v2323 = vunpack.c.h.b16 %v2090
      %v2324 = vunpack.c.l.b16 %v2091
      %v2325 = vunpack.c.l.b16 %v2092
      %v2326 = vunpack.c.h.b16 %v2092
      %v2327 = vunpack.c.l.b16 %v2093
      %v2328 = vunpack.c.l.b16 %v2094
      %v2329 = vunpack.c.h.b16 %v2094
      %v2330 = vunpack.c.l.b16 %v2095
      %v2331 = vunpack.c.l.b16 %v2096
      %v2332 = vunpack.c.h.b16 %v2096
      %v2333 = vunpack.c.l.b16 %v2097
      %v2334 = vunpack.c.l.b16 %v2098
      %v2335 = vunpack.c.h.b16 %v2098
      %v2336 = vunpack.c.l.b16 %v2099
      %v2337 = vunpack.c.l.b16 %v2100
      %v2338 = vunpack.c.h.b16 %v2100
      %v2339 = vunpack.c.l.b16 %v2101
      %v2340 = vunpack.c.l.b16 %v2102
      %v2341 = vunpack.c.h.b16 %v2102
      %v2342 = vunpack.c.l.b16 %v2103
      %v2343 = vunpack.c.l.b16 %v2104
      %v2344 = vunpack.c.h.b16 %v2104
      %v2345 = vunpack.c.l.b16 %v2105
      %v2346 = vunpack.c.l.b16 %v2106
      %v2347 = vunpack.c.h.b16 %v2106
      %v2348 = vunpack.c.l.b16 %v2107
      %v2349 = vunpack.c.l.b16 %v2108
      %v2350 = vunpack.c.h.b16 %v2108
      %v2351 = vunpack.c.l.b16 %v2109
      %v2352 = vunpack.c.l.b16 %v2110
      %v2353 = vunpack.c.h.b16 %v2110
      %v2354 = vunpack.c.l.b16 %v2111
      %v2355 = vunpack.c.l.b16 %v2112
      %v2356 = vunpack.c.h.b16 %v2112
      %v2357 = vunpack.c.l.b16 %v2113
      %v2358 = vunpack.c.l.b16 %v2114
      %v2359 = vunpack.c.h.b16 %v2114
      %v2360 = vunpack.c.l.b16 %v2115
      %v2361 = vunpack.c.l.b16 %v2116
      %v2362 = vunpack.c.h.b16 %v2116
      %v2363 = vunpack.c.l.b16 %v2117
      %v2364 = vunpack.c.l.b16 %v2118
      %v2365 = vunpack.c.h.b16 %v2118
      %v2366 = vunpack.c.l.b16 %v2119
      %v2367 = vunpack.c.l.b16 %v2120
      %v2368 = vunpack.c.h.b16 %v2120
      %v2369 = vunpack.c.l.b16 %v2121
      %v2370 = vpack.c.b16 %v2229, %v2226
      %v2371 = vpack.c.b16 %v2230, %v2227
      %v2372 = vpack.c.b16 %v2231, %v2228
      %v2373 = vpack.c.b16 %v2235, %v2232
      %v2374 = vpack.c.b16 %v2236, %v2233
      %v2375 = vpack.c.b16 %v2237, %v2234
      %v2376 = vpack.c.b16 %v2241, %v2238
      %v2377 = vpack.c.b16 %v2242, %v2239
      %v2378 = vpack.c.b16 %v2243, %v2240
      %v2379 = vpack.c.b16 %v2247, %v2244
      %v2380 = vpack.c.b16 %v2248, %v2245
      %v2381 = vpack.c.b16 %v2249, %v2246
      %v2382 = vpack.c.b16 %v2253, %v2250
      %v2383 = vpack.c.b16 %v2254, %v2251
      %v2384 = vpack.c.b16 %v2255, %v2252
      %v2385 = vpack.c.b16 %v2259, %v2256
      %v2386 = vpack.c.b16 %v2260, %v2257
      %v2387 = vpack.c.b16 %v2261, %v2258
      %v2388 = vpack.c.b16 %v2265, %v2262
      %v2389 = vpack.c.b16 %v2266, %v2263
      %v2390 = vpack.c.b16 %v2267, %v2264
      %v2391 = vpack.c.b16 %v2271, %v2268
      %v2392 = vpack.c.b16 %v2272, %v2269
      %v2393 = vpack.c.b16 %v2273, %v2270
      %v2394 = vpack.c.b16 %v2277, %v2274
      %v2395 = vpack.c.b16 %v2278, %v2275
      %v2396 = vpack.c.b16 %v2279, %v2276
      %v2397 = vpack.c.b16 %v2283, %v2280
      %v2398 = vpack.c.b16 %v2284, %v2281
      %v2399 = vpack.c.b16 %v2285, %v2282
      %v2400 = vpack.c.b16 %v2289, %v2286
      %v2401 = vpack.c.b16 %v2290, %v2287
      %v2402 = vpack.c.b16 %v2291, %v2288
      %v2403 = vpack.c.b16 %v2295, %v2292
      %v2404 = vpack.c.b16 %v2296, %v2293
      %v2405 = vpack.c.b16 %v2297, %v2294
      %v2406 = vpack.c.b16 %v2301, %v2298
      %v2407 = vpack.c.b16 %v2302, %v2299
      %v2408 = vpack.c.b16 %v2303, %v2300
      %v2409 = vpack.c.b16 %v2307, %v2304
      %v2410 = vpack.c.b16 %v2308, %v2305
      %v2411 = vpack.c.b16 %v2309, %v2306
      %v2412 = vpack.c.b16 %v2313, %v2310
      %v2413 = vpack.c.b16 %v2314, %v2311
      %v2414 = vpack.c.b16 %v2315, %v2312
      %v2415 = vpack.c.b16 %v2319, %v2316
      %v2416 = vpack.c.b16 %v2320, %v2317
      %v2417 = vpack.c.b16 %v2321, %v2318
      %v2418 = vpack.c.b16 %v2325, %v2322
      %v2419 = vpack.c.b16 %v2326, %v2323
      %v2420 = vpack.c.b16 %v2327, %v2324
      %v2421 = vpack.c.b16 %v2331, %v2328
      %v2422 = vpack.c.b16 %v2332, %v2329
      %v2423 = vpack.c.b16 %v2333, %v2330
      %v2424 = vpack.c.b16 %v2337, %v2334
      %v2425 = vpack.c.b16 %v2338, %v2335
      %v2426 = vpack.c.b16 %v2339, %v2336
      %v2427 = vpack.c.b16 %v2343, %v2340
      %v2428 = vpack.c.b16 %v2344, %v2341
      %v2429 = vpack.c.b16 %v2345, %v2342
      %v2430 = vpack.c.b16 %v2349, %v2346
      %v2431 = vpack.c.b16 %v2350, %v2347
      %v2432 = vpack.c.b16 %v2351, %v2348
      %v2433 = vpack.c.b16 %v2355, %v2352
      %v2434 = vpack.c.b16 %v2356, %v2353
      %v2435 = vpack.c.b16 %v2357, %v2354
      %v2436 = vpack.c.b16 %v2361, %v2358
      %v2437 = vpack.c.b16 %v2362, %v2359
      %v2438 = vpack.c.b16 %v2363, %v2360
      %v2439 = vpack.c.b16 %v2367, %v2364
      %v2440 = vpack.c.b16 %v2368, %v2365
      %v2441 = vpack.c.b16 %v2369, %v2366
      %2514 = vmatpush.bf16.msra.mxu0 %v2391
      %2515 = vmatpush.bf16.msra.mxu0 %v2388
      %2516 = vmatpush.bf16.msra.mxu0 %v2385
      %2517 = vmatpush.bf16.msra.mxu0 %v2382
      %2518 = vmatpush.bf16.msra.mxu0 %v2379
      %2519 = vmatpush.bf16.msra.mxu0 %v2376
      %2520 = vmatpush.bf16.msra.mxu0 %v2373
      %2521 = vmatpush.bf16.msra.mxu0 %v2370
      %2522 = vmatmul.bf16.gmra.mxu0 %v1993
      %v2523 = vpop.f32.mrf.mxu0
      %v2524 = vadd.f32 %v2124, %v2523
      %v2525 = vpop.f32.mrf.mxu0
      %v2526 = vadd.f32 %v2124, %v2525
      %2527 = vmatmul.bf16.gmra.mxu0 %v1996
      %v2528 = vpop.f32.mrf.mxu0
      %v2529 = vadd.f32 %v2124, %v2528
      %v2530 = vpop.f32.mrf.mxu0
      %v2531 = vadd.f32 %v2124, %v2530
      %2532 = vmatmul.bf16.gmra.mxu0 %v1999
      %v2533 = vpop.f32.mrf.mxu0
      %v2534 = vadd.f32 %v2124, %v2533
      %v2535 = vpop.f32.mrf.mxu0
      %v2536 = vadd.f32 %v2124, %v2535
      %2537 = vmatmul.bf16.gmra.mxu0 %v2002
      %v2538 = vpop.f32.mrf.mxu0
      %v2539 = vadd.f32 %v2124, %v2538
      %v2540 = vpop.f32.mrf.mxu0
      %v2541 = vadd.f32 %v2124, %v2540
      %2542 = vmatmul.bf16.gmra.mxu0 %v2005
      %v2543 = vpop.f32.mrf.mxu0
      %v2544 = vadd.f32 %v2124, %v2543
      %v2545 = vpop.f32.mrf.mxu0
      %v2546 = vadd.f32 %v2124, %v2545
      %2547 = vmatmul.bf16.gmra.mxu0 %v2008
      %v2548 = vpop.f32.mrf.mxu0
      %v2549 = vadd.f32 %v2124, %v2548
      %v2550 = vpop.f32.mrf.mxu0
      %v2551 = vadd.f32 %v2124, %v2550
      %2552 = vmatmul.bf16.gmra.mxu0 %v2011
      %v2553 = vpop.f32.mrf.mxu0
      %v2554 = vadd.f32 %v2124, %v2553
      %v2555 = vpop.f32.mrf.mxu0
      %v2556 = vadd.f32 %v2124, %v2555
      %2557 = vmatmul.bf16.gmra.mxu0 %v2014
      %v2558 = vpop.f32.mrf.mxu0
      %v2559 = vadd.f32 %v2124, %v2558
      %v2560 = vpop.f32.mrf.mxu0
      %v2561 = vadd.f32 %v2124, %v2560
      %2562 = vmatmul.bf16.gmra.mxu0 %v2017
      %v2563 = vpop.f32.mrf.mxu0
      %v2564 = vadd.f32 %v2124, %v2563
      %v2565 = vpop.f32.mrf.mxu0
      %v2566 = vadd.f32 %v2124, %v2565
      %2567 = vmatmul.bf16.gmra.mxu0 %v2020
      %v2568 = vpop.f32.mrf.mxu0
      %v2569 = vadd.f32 %v2124, %v2568
      %v2570 = vpop.f32.mrf.mxu0
      %v2571 = vadd.f32 %v2124, %v2570
      %2572 = vmatmul.bf16.gmra.mxu0 %v2023
      %v2573 = vpop.f32.mrf.mxu0
      %v2574 = vadd.f32 %v2124, %v2573
      %v2575 = vpop.f32.mrf.mxu0
      %v2576 = vadd.f32 %v2124, %v2575
      %2577 = vdwg.mxu0
      %2578 = vmatpush.bf16.msra.mxu0 %v2415
      %2579 = vmatpush.bf16.msra.mxu0 %v2412
      %2580 = vmatpush.bf16.msra.mxu0 %v2409
      %2581 = vmatpush.bf16.msra.mxu0 %v2406
      %2582 = vmatpush.bf16.msra.mxu0 %v2403
      %2583 = vmatpush.bf16.msra.mxu0 %v2400
      %2584 = vmatpush.bf16.msra.mxu0 %v2397
      %2585 = vmatpush.bf16.msra.mxu0 %v2394
      %2586 = vmatmul.bf16.gmra.mxu0 %v1994
      %v2587 = vpop.f32.mrf.mxu0
      %v2588 = vadd.f32 %v2524, %v2587
      %v2589 = vpop.f32.mrf.mxu0
      %v2590 = vadd.f32 %v2526, %v2589
      %2591 = vmatmul.bf16.gmra.mxu0 %v1997
      %v2592 = vpop.f32.mrf.mxu0
      %v2593 = vadd.f32 %v2529, %v2592
      %v2594 = vpop.f32.mrf.mxu0
      %v2595 = vadd.f32 %v2531, %v2594
      %2596 = vmatmul.bf16.gmra.mxu0 %v2000
      %v2597 = vpop.f32.mrf.mxu0
      %v2598 = vadd.f32 %v2534, %v2597
      %v2599 = vpop.f32.mrf.mxu0
      %v2600 = vadd.f32 %v2536, %v2599
      %2601 = vmatmul.bf16.gmra.mxu0 %v2003
      %v2602 = vpop.f32.mrf.mxu0
      %v2603 = vadd.f32 %v2539, %v2602
      %v2604 = vpop.f32.mrf.mxu0
      %v2605 = vadd.f32 %v2541, %v2604
      %2606 = vmatmul.bf16.gmra.mxu0 %v2006
      %v2607 = vpop.f32.mrf.mxu0
      %v2608 = vadd.f32 %v2544, %v2607
      %v2609 = vpop.f32.mrf.mxu0
      %v2610 = vadd.f32 %v2546, %v2609
      %2611 = vmatmul.bf16.gmra.mxu0 %v2009
      %v2612 = vpop.f32.mrf.mxu0
      %v2613 = vadd.f32 %v2549, %v2612
      %v2614 = vpop.f32.mrf.mxu0
      %v2615 = vadd.f32 %v2551, %v2614
      %2616 = vmatmul.bf16.gmra.mxu0 %v2012
      %v2617 = vpop.f32.mrf.mxu0
      %v2618 = vadd.f32 %v2554, %v2617
      %v2619 = vpop.f32.mrf.mxu0
      %v2620 = vadd.f32 %v2556, %v2619
      %2621 = vmatmul.bf16.gmra.mxu0 %v2015
      %v2622 = vpop.f32.mrf.mxu0
      %v2623 = vadd.f32 %v2559, %v2622
      %v2624 = vpop.f32.mrf.mxu0
      %v2625 = vadd.f32 %v2561, %v2624
      %2626 = vmatmul.bf16.gmra.mxu0 %v2018
      %v2627 = vpop.f32.mrf.mxu0
      %v2628 = vadd.f32 %v2564, %v2627
      %v2629 = vpop.f32.mrf.mxu0
      %v2630 = vadd.f32 %v2566, %v2629
      %2631 = vmatmul.bf16.gmra.mxu0 %v2021
      %v2632 = vpop.f32.mrf.mxu0
      %v2633 = vadd.f32 %v2569, %v2632
      %v2634 = vpop.f32.mrf.mxu0
      %v2635 = vadd.f32 %v2571, %v2634
      %2636 = vmatmul.bf16.gmra.mxu0 %v2024
      %v2637 = vpop.f32.mrf.mxu0
      %v2638 = vadd.f32 %v2574, %v2637
      %v2639 = vpop.f32.mrf.mxu0
      %v2640 = vadd.f32 %v2576, %v2639
      %2641 = vdwg.mxu0
      %2642 = vmatpush.bf16.msra.mxu0 %v2439
      %2643 = vmatpush.bf16.msra.mxu0 %v2436
      %2644 = vmatpush.bf16.msra.mxu0 %v2433
      %2645 = vmatpush.bf16.msra.mxu0 %v2430
      %2646 = vmatpush.bf16.msra.mxu0 %v2427
      %2647 = vmatpush.bf16.msra.mxu0 %v2424
      %2648 = vmatpush.bf16.msra.mxu0 %v2421
      %2649 = vmatpush.bf16.msra.mxu0 %v2418
      %2650 = vmatmul.bf16.gmra.mxu0 %v1995
      %v2651 = vpop.f32.mrf.mxu0
      %v2652 = vadd.f32 %v2588, %v2651
      %v2653 = vpop.f32.mrf.mxu0
      %v2654 = vadd.f32 %v2590, %v2653
      %2655 = vmatmul.bf16.gmra.mxu0 %v1998
      %v2656 = vpop.f32.mrf.mxu0
      %v2657 = vadd.f32 %v2593, %v2656
      %v2658 = vpop.f32.mrf.mxu0
      %v2659 = vadd.f32 %v2595, %v2658
      %2660 = vmatmul.bf16.gmra.mxu0 %v2001
      %v2661 = vpop.f32.mrf.mxu0
      %v2662 = vadd.f32 %v2598, %v2661
      %v2663 = vpop.f32.mrf.mxu0
      %v2664 = vadd.f32 %v2600, %v2663
      %2665 = vmatmul.bf16.gmra.mxu0 %v2004
      %v2666 = vpop.f32.mrf.mxu0
      %v2667 = vadd.f32 %v2603, %v2666
      %v2668 = vpop.f32.mrf.mxu0
      %v2669 = vadd.f32 %v2605, %v2668
      %2670 = vmatmul.bf16.gmra.mxu0 %v2007
      %v2671 = vpop.f32.mrf.mxu0
      %v2672 = vadd.f32 %v2608, %v2671
      %v2673 = vpop.f32.mrf.mxu0
      %v2674 = vadd.f32 %v2610, %v2673
      %2675 = vmatmul.bf16.gmra.mxu0 %v2010
      %v2676 = vpop.f32.mrf.mxu0
      %v2677 = vadd.f32 %v2613, %v2676
      %v2678 = vpop.f32.mrf.mxu0
      %v2679 = vadd.f32 %v2615, %v2678
      %2680 = vmatmul.bf16.gmra.mxu0 %v2013
      %v2681 = vpop.f32.mrf.mxu0
      %v2682 = vadd.f32 %v2618, %v2681
      %v2683 = vpop.f32.mrf.mxu0
      %v2684 = vadd.f32 %v2620, %v2683
      %2685 = vmatmul.bf16.gmra.mxu0 %v2016
      %v2686 = vpop.f32.mrf.mxu0
      %v2687 = vadd.f32 %v2623, %v2686
      %v2688 = vpop.f32.mrf.mxu0
      %v2689 = vadd.f32 %v2625, %v2688
      %2690 = vmatmul.bf16.gmra.mxu0 %v2019
      %v2691 = vpop.f32.mrf.mxu0
      %v2692 = vadd.f32 %v2628, %v2691
      %v2693 = vpop.f32.mrf.mxu0
      %v2694 = vadd.f32 %v2630, %v2693
      %2695 = vmatmul.bf16.gmra.mxu0 %v2022
      %v2696 = vpop.f32.mrf.mxu0
      %v2697 = vadd.f32 %v2633, %v2696
      %v2698 = vpop.f32.mrf.mxu0
      %v2699 = vadd.f32 %v2635, %v2698
      %2700 = vmatmul.bf16.gmra.mxu0 %v2025
      %v2701 = vpop.f32.mrf.mxu0
      %v2702 = vadd.f32 %v2638, %v2701
      %v2703 = vpop.f32.mrf.mxu0
      %v2704 = vadd.f32 %v2640, %v2703
      %2705 = vdwg.mxu0
      %2706 = vmatpush.bf16.msra.mxu0 %v2392
      %2707 = vmatpush.bf16.msra.mxu0 %v2389
      %2708 = vmatpush.bf16.msra.mxu0 %v2386
      %2709 = vmatpush.bf16.msra.mxu0 %v2383
      %2710 = vmatpush.bf16.msra.mxu0 %v2380
      %2711 = vmatpush.bf16.msra.mxu0 %v2377
      %2712 = vmatpush.bf16.msra.mxu0 %v2374
      %2713 = vmatpush.bf16.msra.mxu0 %v2371
      %2714 = vmatmul.bf16.gmra.mxu0 %v1993
      %v2715 = vpop.f32.mrf.mxu0
      %v2716 = vadd.f32 %v2125, %v2715
      %v2717 = vpop.f32.mrf.mxu0
      %v2718 = vadd.f32 %v2125, %v2717
      %2719 = vmatmul.bf16.gmra.mxu0 %v1996
      %v2720 = vpop.f32.mrf.mxu0
      %v2721 = vadd.f32 %v2125, %v2720
      %v2722 = vpop.f32.mrf.mxu0
      %v2723 = vadd.f32 %v2125, %v2722
      %2724 = vmatmul.bf16.gmra.mxu0 %v1999
      %v2725 = vpop.f32.mrf.mxu0
      %v2726 = vadd.f32 %v2125, %v2725
      %v2727 = vpop.f32.mrf.mxu0
      %v2728 = vadd.f32 %v2125, %v2727
      %2729 = vmatmul.bf16.gmra.mxu0 %v2002
      %v2730 = vpop.f32.mrf.mxu0
      %v2731 = vadd.f32 %v2125, %v2730
      %v2732 = vpop.f32.mrf.mxu0
      %v2733 = vadd.f32 %v2125, %v2732
      %2734 = vmatmul.bf16.gmra.mxu0 %v2005
      %v2735 = vpop.f32.mrf.mxu0
      %v2736 = vadd.f32 %v2125, %v2735
      %v2737 = vpop.f32.mrf.mxu0
      %v2738 = vadd.f32 %v2125, %v2737
      %2739 = vmatmul.bf16.gmra.mxu0 %v2008
      %v2740 = vpop.f32.mrf.mxu0
      %v2741 = vadd.f32 %v2125, %v2740
      %v2742 = vpop.f32.mrf.mxu0
      %v2743 = vadd.f32 %v2125, %v2742
      %2744 = vmatmul.bf16.gmra.mxu0 %v2011
      %v2745 = vpop.f32.mrf.mxu0
      %v2746 = vadd.f32 %v2125, %v2745
      %v2747 = vpop.f32.mrf.mxu0
      %v2748 = vadd.f32 %v2125, %v2747
      %2749 = vmatmul.bf16.gmra.mxu0 %v2014
      %v2750 = vpop.f32.mrf.mxu0
      %v2751 = vadd.f32 %v2125, %v2750
      %v2752 = vpop.f32.mrf.mxu0
      %v2753 = vadd.f32 %v2125, %v2752
      %2754 = vmatmul.bf16.gmra.mxu0 %v2017
      %v2755 = vpop.f32.mrf.mxu0
      %v2756 = vadd.f32 %v2125, %v2755
      %v2757 = vpop.f32.mrf.mxu0
      %v2758 = vadd.f32 %v2125, %v2757
      %2759 = vmatmul.bf16.gmra.mxu0 %v2020
      %v2760 = vpop.f32.mrf.mxu0
      %v2761 = vadd.f32 %v2125, %v2760
      %v2762 = vpop.f32.mrf.mxu0
      %v2763 = vadd.f32 %v2125, %v2762
      %2764 = vmatmul.bf16.gmra.mxu0 %v2023
      %v2765 = vpop.f32.mrf.mxu0
      %v2766 = vadd.f32 %v2125, %v2765
      %v2767 = vpop.f32.mrf.mxu0
      %v2768 = vadd.f32 %v2125, %v2767
      %2769 = vdwg.mxu0
      %2770 = vmatpush.bf16.msra.mxu0 %v2416
      %2771 = vmatpush.bf16.msra.mxu0 %v2413
      %2772 = vmatpush.bf16.msra.mxu0 %v2410
      %2773 = vmatpush.bf16.msra.mxu0 %v2407
      %2774 = vmatpush.bf16.msra.mxu0 %v2404
      %2775 = vmatpush.bf16.msra.mxu0 %v2401
      %2776 = vmatpush.bf16.msra.mxu0 %v2398
      %2777 = vmatpush.bf16.msra.mxu0 %v2395
      %2778 = vmatmul.bf16.gmra.mxu0 %v1994
      %v2779 = vpop.f32.mrf.mxu0
      %v2780 = vadd.f32 %v2716, %v2779
      %v2781 = vpop.f32.mrf.mxu0
      %v2782 = vadd.f32 %v2718, %v2781
      %2783 = vmatmul.bf16.gmra.mxu0 %v1997
      %v2784 = vpop.f32.mrf.mxu0
      %v2785 = vadd.f32 %v2721, %v2784
      %v2786 = vpop.f32.mrf.mxu0
      %v2787 = vadd.f32 %v2723, %v2786
      %2788 = vmatmul.bf16.gmra.mxu0 %v2000
      %v2789 = vpop.f32.mrf.mxu0
      %v2790 = vadd.f32 %v2726, %v2789
      %v2791 = vpop.f32.mrf.mxu0
      %v2792 = vadd.f32 %v2728, %v2791
      %2793 = vmatmul.bf16.gmra.mxu0 %v2003
      %v2794 = vpop.f32.mrf.mxu0
      %v2795 = vadd.f32 %v2731, %v2794
      %v2796 = vpop.f32.mrf.mxu0
      %v2797 = vadd.f32 %v2733, %v2796
      %2798 = vmatmul.bf16.gmra.mxu0 %v2006
      %v2799 = vpop.f32.mrf.mxu0
      %v2800 = vadd.f32 %v2736, %v2799
      %v2801 = vpop.f32.mrf.mxu0
      %v2802 = vadd.f32 %v2738, %v2801
      %2803 = vmatmul.bf16.gmra.mxu0 %v2009
      %v2804 = vpop.f32.mrf.mxu0
      %v2805 = vadd.f32 %v2741, %v2804
      %v2806 = vpop.f32.mrf.mxu0
      %v2807 = vadd.f32 %v2743, %v2806
      %2808 = vmatmul.bf16.gmra.mxu0 %v2012
      %v2809 = vpop.f32.mrf.mxu0
      %v2810 = vadd.f32 %v2746, %v2809
      %v2811 = vpop.f32.mrf.mxu0
      %v2812 = vadd.f32 %v2748, %v2811
      %2813 = vmatmul.bf16.gmra.mxu0 %v2015
      %v2814 = vpop.f32.mrf.mxu0
      %v2815 = vadd.f32 %v2751, %v2814
      %v2816 = vpop.f32.mrf.mxu0
      %v2817 = vadd.f32 %v2753, %v2816
      %2818 = vmatmul.bf16.gmra.mxu0 %v2018
      %v2819 = vpop.f32.mrf.mxu0
      %v2820 = vadd.f32 %v2756, %v2819
      %v2821 = vpop.f32.mrf.mxu0
      %v2822 = vadd.f32 %v2758, %v2821
      %2823 = vmatmul.bf16.gmra.mxu0 %v2021
      %v2824 = vpop.f32.mrf.mxu0
      %v2825 = vadd.f32 %v2761, %v2824
      %v2826 = vpop.f32.mrf.mxu0
      %v2827 = vadd.f32 %v2763, %v2826
      %2828 = vmatmul.bf16.gmra.mxu0 %v2024
      %v2829 = vpop.f32.mrf.mxu0
      %v2830 = vadd.f32 %v2766, %v2829
      %v2831 = vpop.f32.mrf.mxu0
      %v2832 = vadd.f32 %v2768, %v2831
      %2833 = vdwg.mxu0
      %2834 = vmatpush.bf16.msra.mxu0 %v2440
      %2835 = vmatpush.bf16.msra.mxu0 %v2437
      %2836 = vmatpush.bf16.msra.mxu0 %v2434
      %2837 = vmatpush.bf16.msra.mxu0 %v2431
      %2838 = vmatpush.bf16.msra.mxu0 %v2428
      %2839 = vmatpush.bf16.msra.mxu0 %v2425
      %2840 = vmatpush.bf16.msra.mxu0 %v2422
      %2841 = vmatpush.bf16.msra.mxu0 %v2419
      %2842 = vmatmul.bf16.gmra.mxu0 %v1995
      %v2843 = vpop.f32.mrf.mxu0
      %v2844 = vadd.f32 %v2780, %v2843
      %v2845 = vpop.f32.mrf.mxu0
      %v2846 = vadd.f32 %v2782, %v2845
      %2847 = vmatmul.bf16.gmra.mxu0 %v1998
      %v2848 = vpop.f32.mrf.mxu0
      %v2849 = vadd.f32 %v2785, %v2848
      %v2850 = vpop.f32.mrf.mxu0
      %v2851 = vadd.f32 %v2787, %v2850
      %2852 = vmatmul.bf16.gmra.mxu0 %v2001
      %v2853 = vpop.f32.mrf.mxu0
      %v2854 = vadd.f32 %v2790, %v2853
      %v2855 = vpop.f32.mrf.mxu0
      %v2856 = vadd.f32 %v2792, %v2855
      %2857 = vmatmul.bf16.gmra.mxu0 %v2004
      %v2858 = vpop.f32.mrf.mxu0
      %v2859 = vadd.f32 %v2795, %v2858
      %v2860 = vpop.f32.mrf.mxu0
      %v2861 = vadd.f32 %v2797, %v2860
      %2862 = vmatmul.bf16.gmra.mxu0 %v2007
      %v2863 = vpop.f32.mrf.mxu0
      %v2864 = vadd.f32 %v2800, %v2863
      %v2865 = vpop.f32.mrf.mxu0
      %v2866 = vadd.f32 %v2802, %v2865
      %2867 = vmatmul.bf16.gmra.mxu0 %v2010
      %v2868 = vpop.f32.mrf.mxu0
      %v2869 = vadd.f32 %v2805, %v2868
      %v2870 = vpop.f32.mrf.mxu0
      %v2871 = vadd.f32 %v2807, %v2870
      %2872 = vmatmul.bf16.gmra.mxu0 %v2013
      %v2873 = vpop.f32.mrf.mxu0
      %v2874 = vadd.f32 %v2810, %v2873
      %v2875 = vpop.f32.mrf.mxu0
      %v2876 = vadd.f32 %v2812, %v2875
      %2877 = vmatmul.bf16.gmra.mxu0 %v2016
      %v2878 = vpop.f32.mrf.mxu0
      %v2879 = vadd.f32 %v2815, %v2878
      %v2880 = vpop.f32.mrf.mxu0
      %v2881 = vadd.f32 %v2817, %v2880
      %2882 = vmatmul.bf16.gmra.mxu0 %v2019
      %v2883 = vpop.f32.mrf.mxu0
      %v2884 = vadd.f32 %v2820, %v2883
      %v2885 = vpop.f32.mrf.mxu0
      %v2886 = vadd.f32 %v2822, %v2885
      %2887 = vmatmul.bf16.gmra.mxu0 %v2022
      %v2888 = vpop.f32.mrf.mxu0
      %v2889 = vadd.f32 %v2825, %v2888
      %v2890 = vpop.f32.mrf.mxu0
      %v2891 = vadd.f32 %v2827, %v2890
      %2892 = vmatmul.bf16.gmra.mxu0 %v2025
      %v2893 = vpop.f32.mrf.mxu0
      %v2894 = vadd.f32 %v2830, %v2893
      %v2895 = vpop.f32.mrf.mxu0
      %v2896 = vadd.f32 %v2832, %v2895
      %2897 = vdwg.mxu0
      %2898 = vmatpush.bf16.msra.mxu0 %v2393
      %2899 = vmatpush.bf16.msra.mxu0 %v2390
      %2900 = vmatpush.bf16.msra.mxu0 %v2387
      %2901 = vmatpush.bf16.msra.mxu0 %v2384
      %2902 = vmatpush.bf16.msra.mxu0 %v2381
      %2903 = vmatpush.bf16.msra.mxu0 %v2378
      %2904 = vmatpush.bf16.msra.mxu0 %v2375
      %2905 = vmatpush.bf16.msra.mxu0 %v2372
      %2906 = vmatmul.bf16.gmra.mxu0 %v1993
      %v2907 = vpop.f32.mrf.mxu0
      %v2908 = vadd.f32 %v2126, %v2907
      %v2909 = vpop.f32.mrf.mxu0
      %v2910 = vadd.f32 %v2126, %v2909
      %2911 = vmatmul.bf16.gmra.mxu0 %v1996
      %v2912 = vpop.f32.mrf.mxu0
      %v2913 = vadd.f32 %v2126, %v2912
      %v2914 = vpop.f32.mrf.mxu0
      %v2915 = vadd.f32 %v2126, %v2914
      %2916 = vmatmul.bf16.gmra.mxu0 %v1999
      %v2917 = vpop.f32.mrf.mxu0
      %v2918 = vadd.f32 %v2126, %v2917
      %v2919 = vpop.f32.mrf.mxu0
      %v2920 = vadd.f32 %v2126, %v2919
      %2921 = vmatmul.bf16.gmra.mxu0 %v2002
      %v2922 = vpop.f32.mrf.mxu0
      %v2923 = vadd.f32 %v2126, %v2922
      %v2924 = vpop.f32.mrf.mxu0
      %v2925 = vadd.f32 %v2126, %v2924
      %2926 = vmatmul.bf16.gmra.mxu0 %v2005
      %v2927 = vpop.f32.mrf.mxu0
      %v2928 = vadd.f32 %v2126, %v2927
      %v2929 = vpop.f32.mrf.mxu0
      %v2930 = vadd.f32 %v2126, %v2929
      %2931 = vmatmul.bf16.gmra.mxu0 %v2008
      %v2932 = vpop.f32.mrf.mxu0
      %v2933 = vadd.f32 %v2126, %v2932
      %v2934 = vpop.f32.mrf.mxu0
      %v2935 = vadd.f32 %v2126, %v2934
      %2936 = vmatmul.bf16.gmra.mxu0 %v2011
      %v2937 = vpop.f32.mrf.mxu0
      %v2938 = vadd.f32 %v2126, %v2937
      %v2939 = vpop.f32.mrf.mxu0
      %v2940 = vadd.f32 %v2126, %v2939
      %2941 = vmatmul.bf16.gmra.mxu0 %v2014
      %v2942 = vpop.f32.mrf.mxu0
      %v2943 = vadd.f32 %v2126, %v2942
      %v2944 = vpop.f32.mrf.mxu0
      %v2945 = vadd.f32 %v2126, %v2944
      %2946 = vmatmul.bf16.gmra.mxu0 %v2017
      %v2947 = vpop.f32.mrf.mxu0
      %v2948 = vadd.f32 %v2126, %v2947
      %v2949 = vpop.f32.mrf.mxu0
      %v2950 = vadd.f32 %v2126, %v2949
      %2951 = vmatmul.bf16.gmra.mxu0 %v2020
      %v2952 = vpop.f32.mrf.mxu0
      %v2953 = vadd.f32 %v2126, %v2952
      %v2954 = vpop.f32.mrf.mxu0
      %v2955 = vadd.f32 %v2126, %v2954
      %2956 = vmatmul.bf16.gmra.mxu0 %v2023
      %v2957 = vpop.f32.mrf.mxu0
      %v2958 = vadd.f32 %v2126, %v2957
      %v2959 = vpop.f32.mrf.mxu0
      %v2960 = vadd.f32 %v2126, %v2959
      %2961 = vdwg.mxu0
      %2962 = vmatpush.bf16.msra.mxu0 %v2417
      %2963 = vmatpush.bf16.msra.mxu0 %v2414
      %2964 = vmatpush.bf16.msra.mxu0 %v2411
      %2965 = vmatpush.bf16.msra.mxu0 %v2408
      %2966 = vmatpush.bf16.msra.mxu0 %v2405
      %2967 = vmatpush.bf16.msra.mxu0 %v2402
      %2968 = vmatpush.bf16.msra.mxu0 %v2399
      %2969 = vmatpush.bf16.msra.mxu0 %v2396
      %2970 = vmatmul.bf16.gmra.mxu0 %v1994
      %v2971 = vpop.f32.mrf.mxu0
      %v2972 = vadd.f32 %v2908, %v2971
      %v2973 = vpop.f32.mrf.mxu0
      %v2974 = vadd.f32 %v2910, %v2973
      %2975 = vmatmul.bf16.gmra.mxu0 %v1997
      %v2976 = vpop.f32.mrf.mxu0
      %v2977 = vadd.f32 %v2913, %v2976
      %v2978 = vpop.f32.mrf.mxu0
      %v2979 = vadd.f32 %v2915, %v2978
      %2980 = vmatmul.bf16.gmra.mxu0 %v2000
      %v2981 = vpop.f32.mrf.mxu0
      %v2982 = vadd.f32 %v2918, %v2981
      %v2983 = vpop.f32.mrf.mxu0
      %v2984 = vadd.f32 %v2920, %v2983
      %2985 = vmatmul.bf16.gmra.mxu0 %v2003
      %v2986 = vpop.f32.mrf.mxu0
      %v2987 = vadd.f32 %v2923, %v2986
      %v2988 = vpop.f32.mrf.mxu0
      %v2989 = vadd.f32 %v2925, %v2988
      %2990 = vmatmul.bf16.gmra.mxu0 %v2006
      %v2991 = vpop.f32.mrf.mxu0
      %v2992 = vadd.f32 %v2928, %v2991
      %v2993 = vpop.f32.mrf.mxu0
      %v2994 = vadd.f32 %v2930, %v2993
      %2995 = vmatmul.bf16.gmra.mxu0 %v2009
      %v2996 = vpop.f32.mrf.mxu0
      %v2997 = vadd.f32 %v2933, %v2996
      %v2998 = vpop.f32.mrf.mxu0
      %v2999 = vadd.f32 %v2935, %v2998
      %3000 = vmatmul.bf16.gmra.mxu0 %v2012
      %v3001 = vpop.f32.mrf.mxu0
      %v3002 = vadd.f32 %v2938, %v3001
      %v3003 = vpop.f32.mrf.mxu0
      %v3004 = vadd.f32 %v2940, %v3003
      %3005 = vmatmul.bf16.gmra.mxu0 %v2015
      %v3006 = vpop.f32.mrf.mxu0
      %v3007 = vadd.f32 %v2943, %v3006
      %v3008 = vpop.f32.mrf.mxu0
      %v3009 = vadd.f32 %v2945, %v3008
      %3010 = vmatmul.bf16.gmra.mxu0 %v2018
      %v3011 = vpop.f32.mrf.mxu0
      %v3012 = vadd.f32 %v2948, %v3011
      %v3013 = vpop.f32.mrf.mxu0
      %v3014 = vadd.f32 %v2950, %v3013
      %3015 = vmatmul.bf16.gmra.mxu0 %v2021
      %v3016 = vpop.f32.mrf.mxu0
      %v3017 = vadd.f32 %v2953, %v3016
      %v3018 = vpop.f32.mrf.mxu0
      %v3019 = vadd.f32 %v2955, %v3018
      %3020 = vmatmul.bf16.gmra.mxu0 %v2024
      %v3021 = vpop.f32.mrf.mxu0
      %v3022 = vadd.f32 %v2958, %v3021
      %v3023 = vpop.f32.mrf.mxu0
      %v3024 = vadd.f32 %v2960, %v3023
      %3025 = vdwg.mxu0
      %3026 = vmatpush.bf16.msra.mxu0 %v2441
      %3027 = vmatpush.bf16.msra.mxu0 %v2438
      %3028 = vmatpush.bf16.msra.mxu0 %v2435
      %3029 = vmatpush.bf16.msra.mxu0 %v2432
      %3030 = vmatpush.bf16.msra.mxu0 %v2429
      %3031 = vmatpush.bf16.msra.mxu0 %v2426
      %3032 = vmatpush.bf16.msra.mxu0 %v2423
      %3033 = vmatpush.bf16.msra.mxu0 %v2420
      %3034 = vmatmul.bf16.gmra.mxu0 %v1995
      %v3035 = vpop.f32.mrf.mxu0
      %v3036 = vadd.f32 %v2972, %v3035
      %v3037 = vpop.f32.mrf.mxu0
      %v3038 = vadd.f32 %v2974, %v3037
      %3039 = vmatmul.bf16.gmra.mxu0 %v1998
      %v3040 = vpop.f32.mrf.mxu0
      %v3041 = vadd.f32 %v2977, %v3040
      %v3042 = vpop.f32.mrf.mxu0
      %v3043 = vadd.f32 %v2979, %v3042
      %3044 = vmatmul.bf16.gmra.mxu0 %v2001
      %v3045 = vpop.f32.mrf.mxu0
      %v3046 = vadd.f32 %v2982, %v3045
      %v3047 = vpop.f32.mrf.mxu0
      %v3048 = vadd.f32 %v2984, %v3047
      %3049 = vmatmul.bf16.gmra.mxu0 %v2004
      %v3050 = vpop.f32.mrf.mxu0
      %v3051 = vadd.f32 %v2987, %v3050
      %v3052 = vpop.f32.mrf.mxu0
      %v3053 = vadd.f32 %v2989, %v3052
      %3054 = vmatmul.bf16.gmra.mxu0 %v2007
      %v3055 = vpop.f32.mrf.mxu0
      %v3056 = vadd.f32 %v2992, %v3055
      %v3057 = vpop.f32.mrf.mxu0
      %v3058 = vadd.f32 %v2994, %v3057
      %3059 = vmatmul.bf16.gmra.mxu0 %v2010
      %v3060 = vpop.f32.mrf.mxu0
      %v3061 = vadd.f32 %v2997, %v3060
      %v3062 = vpop.f32.mrf.mxu0
      %v3063 = vadd.f32 %v2999, %v3062
      %3064 = vmatmul.bf16.gmra.mxu0 %v2013
      %v3065 = vpop.f32.mrf.mxu0
      %v3066 = vadd.f32 %v3002, %v3065
      %v3067 = vpop.f32.mrf.mxu0
      %v3068 = vadd.f32 %v3004, %v3067
      %3069 = vmatmul.bf16.gmra.mxu0 %v2016
      %v3070 = vpop.f32.mrf.mxu0
      %v3071 = vadd.f32 %v3007, %v3070
      %v3072 = vpop.f32.mrf.mxu0
      %v3073 = vadd.f32 %v3009, %v3072
      %3074 = vmatmul.bf16.gmra.mxu0 %v2019
      %v3075 = vpop.f32.mrf.mxu0
      %v3076 = vadd.f32 %v3012, %v3075
      %v3077 = vpop.f32.mrf.mxu0
      %v3078 = vadd.f32 %v3014, %v3077
      %3079 = vmatmul.bf16.gmra.mxu0 %v2022
      %v3080 = vpop.f32.mrf.mxu0
      %v3081 = vadd.f32 %v3017, %v3080
      %v3082 = vpop.f32.mrf.mxu0
      %v3083 = vadd.f32 %v3019, %v3082
      %3084 = vmatmul.bf16.gmra.mxu0 %v2025
      %v3085 = vpop.f32.mrf.mxu0
      %v3086 = vadd.f32 %v3022, %v3085
      %v3087 = vpop.f32.mrf.mxu0
      %v3088 = vadd.f32 %v3024, %v3087
      %3089 = vdwg.mxu0
      %v3090 = vmax.f32 %v2652, 0.0
      %v3091 = vmax.f32 %v2844, 0.0
      %v3092 = vmax.f32 %v3036, 0.0
      %v3093 = vmax.f32 %v2654, 0.0
      %v3094 = vmax.f32 %v2846, 0.0
      %v3095 = vmax.f32 %v3038, 0.0
      %v3096 = vmax.f32 %v2657, 0.0
      %v3097 = vmax.f32 %v2849, 0.0
      %v3098 = vmax.f32 %v3041, 0.0
      %v3099 = vmax.f32 %v2659, 0.0
      %v3100 = vmax.f32 %v2851, 0.0
      %v3101 = vmax.f32 %v3043, 0.0
      %v3102 = vmax.f32 %v2662, 0.0
      %v3103 = vmax.f32 %v2854, 0.0
      %v3104 = vmax.f32 %v3046, 0.0
      %v3105 = vmax.f32 %v2664, 0.0
      %v3106 = vmax.f32 %v2856, 0.0
      %v3107 = vmax.f32 %v3048, 0.0
      %v3108 = vmax.f32 %v2667, 0.0
      %v3109 = vmax.f32 %v2859, 0.0
      %v3110 = vmax.f32 %v3051, 0.0
      %v3111 = vmax.f32 %v2669, 0.0
      %v3112 = vmax.f32 %v2861, 0.0
      %v3113 = vmax.f32 %v3053, 0.0
      %v3114 = vmax.f32 %v2672, 0.0
      %v3115 = vmax.f32 %v2864, 0.0
      %v3116 = vmax.f32 %v3056, 0.0
      %v3117 = vmax.f32 %v2674, 0.0
      %v3118 = vmax.f32 %v2866, 0.0
      %v3119 = vmax.f32 %v3058, 0.0
      %v3120 = vmax.f32 %v2677, 0.0
      %v3121 = vmax.f32 %v2869, 0.0
      %v3122 = vmax.f32 %v3061, 0.0
      %v3123 = vmax.f32 %v2679, 0.0
      %v3124 = vmax.f32 %v2871, 0.0
      %v3125 = vmax.f32 %v3063, 0.0
      %v3126 = vmax.f32 %v2682, 0.0
      %v3127 = vmax.f32 %v2874, 0.0
      %v3128 = vmax.f32 %v3066, 0.0
      %v3129 = vmax.f32 %v2684, 0.0
      %v3130 = vmax.f32 %v2876, 0.0
      %v3131 = vmax.f32 %v3068, 0.0
      %v3132 = vmax.f32 %v2687, 0.0
      %v3133 = vmax.f32 %v2879, 0.0
      %v3134 = vmax.f32 %v3071, 0.0
      %v3135 = vmax.f32 %v2689, 0.0
      %v3136 = vmax.f32 %v2881, 0.0
      %v3137 = vmax.f32 %v3073, 0.0
      %v3138 = vmax.f32 %v2692, 0.0
      %v3139 = vmax.f32 %v2884, 0.0
      %v3140 = vmax.f32 %v3076, 0.0
      %v3141 = vmax.f32 %v2694, 0.0
      %v3142 = vmax.f32 %v2886, 0.0
      %v3143 = vmax.f32 %v3078, 0.0
      %v3144 = vmax.f32 %v2697, 0.0
      %v3145 = vmax.f32 %v2889, 0.0
      %v3146 = vmax.f32 %v3081, 0.0
      %v3147 = vmax.f32 %v2699, 0.0
      %v3148 = vmax.f32 %v2891, 0.0
      %v3149 = vmax.f32 %v3083, 0.0
      %v3150 = vmax.f32 %v2702, 0.0
      %v3151 = vmax.f32 %v2894, 0.0
      %v3152 = vmax.f32 %v3086, 0.0
      %v3153 = vmax.f32 %v2704, 0.0
      %v3154 = vmax.f32 %v2896, 0.0
      %v3155 = vmax.f32 %v3088, 0.0
      %v3156 = vpack.c.bf16 %v3093, %v3090
      %v3157 = vpack.c.bf16 %v3094, %v3091
      %v3158 = vpack.c.bf16 %v3095, %v3092
      %v3159 = vpack.c.bf16 %v3099, %v3096
      %v3160 = vpack.c.bf16 %v3100, %v3097
      %v3161 = vpack.c.bf16 %v3101, %v3098
      %v3162 = vpack.c.bf16 %v3105, %v3102
      %v3163 = vpack.c.bf16 %v3106, %v3103
      %v3164 = vpack.c.bf16 %v3107, %v3104
      %v3165 = vpack.c.bf16 %v3111, %v3108
      %v3166 = vpack.c.bf16 %v3112, %v3109
      %v3167 = vpack.c.bf16 %v3113, %v3110
      %v3168 = vpack.c.bf16 %v3117, %v3114
      %v3169 = vpack.c.bf16 %v3118, %v3115
      %v3170 = vpack.c.bf16 %v3119, %v3116
      %v3171 = vpack.c.bf16 %v3123, %v3120
      %v3172 = vpack.c.bf16 %v3124, %v3121
      %v3173 = vpack.c.bf16 %v3125, %v3122
      %v3174 = vpack.c.bf16 %v3129, %v3126
      %v3175 = vpack.c.bf16 %v3130, %v3127
      %v3176 = vpack.c.bf16 %v3131, %v3128
      %v3177 = vpack.c.bf16 %v3135, %v3132
      %v3178 = vpack.c.bf16 %v3136, %v3133
      %v3179 = vpack.c.bf16 %v3137, %v3134
      %v3180 = vpack.c.bf16 %v3141, %v3138
      %v3181 = vpack.c.bf16 %v3142, %v3139
      %v3182 = vpack.c.bf16 %v3143, %v3140
      %v3183 = vpack.c.bf16 %v3147, %v3144
      %v3184 = vpack.c.bf16 %v3148, %v3145
      %v3185 = vpack.c.bf16 %v3149, %v3146
      %v3186 = vpack.c.bf16 %v3153, %v3150
      %v3187 = vpack.c.bf16 %v3154, %v3151
      %v3188 = vpack.c.bf16 %v3155, %v3152
      %v3189 = vld [vmem:[%s7] sm:$0xff]
      %v3190 = vld [vmem:[%s7 + $0x8] sm:$0xf]
      %v3191 = vld [vmem:[%s7 + $0xc] sm:$0xff]
      %v3192 = vld [vmem:[%s7 + $0x14] sm:$0xf]
      %v3193 = vld [vmem:[%s7 + $0x18] sm:$0xff]
      %v3194 = vld [vmem:[%s7 + $0x20] sm:$0xf]
      %v3195 = vld [vmem:[%s7 + $0x24] sm:$0xff]
      %v3196 = vld [vmem:[%s7 + $0x2c] sm:$0xf]
      %v3197 = vld [vmem:[%s7 + $0x30] sm:$0xff]
      %v3198 = vld [vmem:[%s7 + $0x38] sm:$0xf]
      %v3199 = vld [vmem:[%s7 + $0x3c] sm:$0xff]
      %v3200 = vld [vmem:[%s7 + $0x44] sm:$0xf]
      %v3201 = vld [vmem:[%s7 + $0x48] sm:$0xff]
      %v3202 = vld [vmem:[%s7 + $0x50] sm:$0xf]
      %v3203 = vld [vmem:[%s7 + $0x54] sm:$0xff]
      %v3204 = vld [vmem:[%s7 + $0x5c] sm:$0xf]
      %v3205 = vld [vmem:[%s7 + $0x60] sm:$0xff]
      %v3206 = vld [vmem:[%s7 + $0x68] sm:$0xf]
      %v3207 = vld [vmem:[%s7 + $0x6c] sm:$0xff]
      %v3208 = vld [vmem:[%s7 + $0x74] sm:$0xf]
      %v3209 = vld [vmem:[%s7 + $0x78] sm:$0xff]
      %v3210 = vld [vmem:[%s7 + $0x80] sm:$0xf]
      %v3211 = vld [vmem:[%s7 + $0x84] sm:$0xff]
      %v3212 = vld [vmem:[%s7 + $0x8c] sm:$0xf]
      %v3213 = vld [vmem:[%s7 + $0x90] sm:$0xff]
      %v3214 = vld [vmem:[%s7 + $0x98] sm:$0xf]
      %v3215 = vld [vmem:[%s7 + $0x9c] sm:$0xff]
      %v3216 = vld [vmem:[%s7 + $0xa4] sm:$0xf]
      %v3217 = vld [vmem:[%s7 + $0xa8] sm:$0xff]
      %v3218 = vld [vmem:[%s7 + $0xb0] sm:$0xf]
      %v3219 = vld [vmem:[%s7 + $0xb4] sm:$0xff]
      %v3220 = vld [vmem:[%s7 + $0xbc] sm:$0xf]
      %v3221 = vld [vmem:[%s7 + $0xc0] sm:$0xff]
      %v3222 = vld [vmem:[%s7 + $0xc8] sm:$0xf]
      %v3223 = vld [vmem:[%s7 + $0xcc] sm:$0xff]
      %v3224 = vld [vmem:[%s7 + $0xd4] sm:$0xf]
      %v3225 = vld [vmem:[%s7 + $0xd8] sm:$0xff]
      %v3226 = vld [vmem:[%s7 + $0xe0] sm:$0xf]
      %v3227 = vld [vmem:[%s7 + $0xe4] sm:$0xff]
      %v3228 = vld [vmem:[%s7 + $0xec] sm:$0xf]
      %v3229 = vld [vmem:[%s7 + $0xf0] sm:$0xff]
      %v3230 = vld [vmem:[%s7 + $0xf8] sm:$0xf]
      %v3231 = vld [vmem:[%s7 + $0xfc] sm:$0xff]
      %v3232 = vld [vmem:[%s7 + $0x104] sm:$0xf]
      %v3233 = vld [vmem:[%s7 + $0x108] sm:$0xff]
      %v3234 = vld [vmem:[%s7 + $0x110] sm:$0xf]
      %v3235 = vld [vmem:[%s7 + $0x114] sm:$0xff]
      %v3236 = vld [vmem:[%s7 + $0x11c] sm:$0xf]
      %v3237 = vld [vmem:[%s7 + $0x120] sm:$0xff]
      %v3238 = vld [vmem:[%s7 + $0x128] sm:$0xf]
      %v3239 = vld [vmem:[%s7 + $0x12c] sm:$0xff]
      %v3240 = vld [vmem:[%s7 + $0x134] sm:$0xf]
      %v3241 = vld [vmem:[%s7 + $0x138] sm:$0xff]
      %v3242 = vld [vmem:[%s7 + $0x140] sm:$0xf]
      %v3243 = vld [vmem:[%s7 + $0x144] sm:$0xff]
      %v3244 = vld [vmem:[%s7 + $0x14c] sm:$0xf]
      %v3245 = vld [vmem:[%s7 + $0x150] sm:$0xff]
      %v3246 = vld [vmem:[%s7 + $0x158] sm:$0xf]
      %v3247 = vld [vmem:[%s7 + $0x15c] sm:$0xff]
      %v3248 = vld [vmem:[%s7 + $0x164] sm:$0xf]
      %v3249 = vld [vmem:[%s7 + $0x168] sm:$0xff]
      %v3250 = vld [vmem:[%s7 + $0x170] sm:$0xf]
      %v3251 = vld [vmem:[%s7 + $0x174] sm:$0xff]
      %v3252 = vld [vmem:[%s7 + $0x17c] sm:$0xf]
      %v3253 = vld [vmem:[%s7 + $0x180] sm:$0xff]
      %v3254 = vld [vmem:[%s7 + $0x188] sm:$0xf]
      %v3255 = vld [vmem:[%s7 + $0x18c] sm:$0xff]
      %v3256 = vld [vmem:[%s7 + $0x194] sm:$0xf]
      %v3257 = vld [vmem:[%s7 + $0x198] sm:$0xff]
      %v3258 = vld [vmem:[%s7 + $0x1a0] sm:$0xf]
      %v3259 = vld [vmem:[%s7 + $0x1a4] sm:$0xff]
      %v3260 = vld [vmem:[%s7 + $0x1ac] sm:$0xf]
      %v3261 = vld [vmem:[%s7 + $0x1b0] sm:$0xff]
      %v3262 = vld [vmem:[%s7 + $0x1b8] sm:$0xf]
      %v3263 = vld [vmem:[%s7 + $0x1bc] sm:$0xff]
      %v3264 = vld [vmem:[%s7 + $0x1c4] sm:$0xf]
      %v3265 = vld [vmem:[%s7 + $0x1c8] sm:$0xff]
      %v3266 = vld [vmem:[%s7 + $0x1d0] sm:$0xf]
      %v3267 = vld [vmem:[%s7 + $0x1d4] sm:$0xff]
      %v3268 = vld [vmem:[%s7 + $0x1dc] sm:$0xf]
      %v3269 = vld [vmem:[%s7 + $0x1e0] sm:$0xff]
      %v3270 = vld [vmem:[%s7 + $0x1e8] sm:$0xf]
      %v3271 = vld [vmem:[%s7 + $0x1ec] sm:$0xff]
      %v3272 = vld [vmem:[%s7 + $0x1f4] sm:$0xf]
      %v3273 = vld [vmem:[%s7 + $0x1f8] sm:$0xff]
      %v3274 = vld [vmem:[%s7 + $0x200] sm:$0xf]
      %v3275 = vld [vmem:[%s7 + $0x204] sm:$0xff]
      %v3276 = vld [vmem:[%s7 + $0x20c] sm:$0xf]
      %v3277 = vld [vmem:[%s7 + $0x210] sm:$0xff]
      %v3278 = vld [vmem:[%s7 + $0x218] sm:$0xf]
      %v3279 = vld [vmem:[%s7 + $0x21c] sm:$0xff]
      %v3280 = vld [vmem:[%s7 + $0x224] sm:$0xf]
      %v3281 = vld [vmem:[%s7 + $0x228] sm:$0xff]
      %v3282 = vld [vmem:[%s7 + $0x230] sm:$0xf]
      %v3283 = vld [vmem:[%s7 + $0x234] sm:$0xff]
      %v3284 = vld [vmem:[%s7 + $0x23c] sm:$0xf]
      %v3285 = vld [vmem:[%s8] sm:$0x7]
      %v3287 = vperm.slane %v3285, 0
      %v3288 = vperm.slane %v3285, 1
      %v3289 = vperm.slane %v3285, 2
      %v3389 = vunpack.c.l.b16 %v3189
      %v3390 = vunpack.c.h.b16 %v3189
      %v3391 = vunpack.c.l.b16 %v3190
      %v3392 = vunpack.c.l.b16 %v3191
      %v3393 = vunpack.c.h.b16 %v3191
      %v3394 = vunpack.c.l.b16 %v3192
      %v3395 = vunpack.c.l.b16 %v3193
      %v3396 = vunpack.c.h.b16 %v3193
      %v3397 = vunpack.c.l.b16 %v3194
      %v3398 = vunpack.c.l.b16 %v3195
      %v3399 = vunpack.c.h.b16 %v3195
      %v3400 = vunpack.c.l.b16 %v3196
      %v3401 = vunpack.c.l.b16 %v3197
      %v3402 = vunpack.c.h.b16 %v3197
      %v3403 = vunpack.c.l.b16 %v3198
      %v3404 = vunpack.c.l.b16 %v3199
      %v3405 = vunpack.c.h.b16 %v3199
      %v3406 = vunpack.c.l.b16 %v3200
      %v3407 = vunpack.c.l.b16 %v3201
      %v3408 = vunpack.c.h.b16 %v3201
      %v3409 = vunpack.c.l.b16 %v3202
      %v3410 = vunpack.c.l.b16 %v3203
      %v3411 = vunpack.c.h.b16 %v3203
      %v3412 = vunpack.c.l.b16 %v3204
      %v3413 = vunpack.c.l.b16 %v3205
      %v3414 = vunpack.c.h.b16 %v3205
      %v3415 = vunpack.c.l.b16 %v3206
      %v3416 = vunpack.c.l.b16 %v3207
      %v3417 = vunpack.c.h.b16 %v3207
      %v3418 = vunpack.c.l.b16 %v3208
      %v3419 = vunpack.c.l.b16 %v3209
      %v3420 = vunpack.c.h.b16 %v3209
      %v3421 = vunpack.c.l.b16 %v3210
      %v3422 = vunpack.c.l.b16 %v3211
      %v3423 = vunpack.c.h.b16 %v3211
      %v3424 = vunpack.c.l.b16 %v3212
      %v3425 = vunpack.c.l.b16 %v3213
      %v3426 = vunpack.c.h.b16 %v3213
      %v3427 = vunpack.c.l.b16 %v3214
      %v3428 = vunpack.c.l.b16 %v3215
      %v3429 = vunpack.c.h.b16 %v3215
      %v3430 = vunpack.c.l.b16 %v3216
      %v3431 = vunpack.c.l.b16 %v3217
      %v3432 = vunpack.c.h.b16 %v3217
      %v3433 = vunpack.c.l.b16 %v3218
      %v3434 = vunpack.c.l.b16 %v3219
      %v3435 = vunpack.c.h.b16 %v3219
      %v3436 = vunpack.c.l.b16 %v3220
      %v3437 = vunpack.c.l.b16 %v3221
      %v3438 = vunpack.c.h.b16 %v3221
      %v3439 = vunpack.c.l.b16 %v3222
      %v3440 = vunpack.c.l.b16 %v3223
      %v3441 = vunpack.c.h.b16 %v3223
      %v3442 = vunpack.c.l.b16 %v3224
      %v3443 = vunpack.c.l.b16 %v3225
      %v3444 = vunpack.c.h.b16 %v3225
      %v3445 = vunpack.c.l.b16 %v3226
      %v3446 = vunpack.c.l.b16 %v3227
      %v3447 = vunpack.c.h.b16 %v3227
      %v3448 = vunpack.c.l.b16 %v3228
      %v3449 = vunpack.c.l.b16 %v3229
      %v3450 = vunpack.c.h.b16 %v3229
      %v3451 = vunpack.c.l.b16 %v3230
      %v3452 = vunpack.c.l.b16 %v3231
      %v3453 = vunpack.c.h.b16 %v3231
      %v3454 = vunpack.c.l.b16 %v3232
      %v3455 = vunpack.c.l.b16 %v3233
      %v3456 = vunpack.c.h.b16 %v3233
      %v3457 = vunpack.c.l.b16 %v3234
      %v3458 = vunpack.c.l.b16 %v3235
      %v3459 = vunpack.c.h.b16 %v3235
      %v3460 = vunpack.c.l.b16 %v3236
      %v3461 = vunpack.c.l.b16 %v3237
      %v3462 = vunpack.c.h.b16 %v3237
      %v3463 = vunpack.c.l.b16 %v3238
      %v3464 = vunpack.c.l.b16 %v3239
      %v3465 = vunpack.c.h.b16 %v3239
      %v3466 = vunpack.c.l.b16 %v3240
      %v3467 = vunpack.c.l.b16 %v3241
      %v3468 = vunpack.c.h.b16 %v3241
      %v3469 = vunpack.c.l.b16 %v3242
      %v3470 = vunpack.c.l.b16 %v3243
      %v3471 = vunpack.c.h.b16 %v3243
      %v3472 = vunpack.c.l.b16 %v3244
      %v3473 = vunpack.c.l.b16 %v3245
      %v3474 = vunpack.c.h.b16 %v3245
      %v3475 = vunpack.c.l.b16 %v3246
      %v3476 = vunpack.c.l.b16 %v3247
      %v3477 = vunpack.c.h.b16 %v3247
      %v3478 = vunpack.c.l.b16 %v3248
      %v3479 = vunpack.c.l.b16 %v3249
      %v3480 = vunpack.c.h.b16 %v3249
      %v3481 = vunpack.c.l.b16 %v3250
      %v3482 = vunpack.c.l.b16 %v3251
      %v3483 = vunpack.c.h.b16 %v3251
      %v3484 = vunpack.c.l.b16 %v3252
      %v3485 = vunpack.c.l.b16 %v3253
      %v3486 = vunpack.c.h.b16 %v3253
      %v3487 = vunpack.c.l.b16 %v3254
      %v3488 = vunpack.c.l.b16 %v3255
      %v3489 = vunpack.c.h.b16 %v3255
      %v3490 = vunpack.c.l.b16 %v3256
      %v3491 = vunpack.c.l.b16 %v3257
      %v3492 = vunpack.c.h.b16 %v3257
      %v3493 = vunpack.c.l.b16 %v3258
      %v3494 = vunpack.c.l.b16 %v3259
      %v3495 = vunpack.c.h.b16 %v3259
      %v3496 = vunpack.c.l.b16 %v3260
      %v3497 = vunpack.c.l.b16 %v3261
      %v3498 = vunpack.c.h.b16 %v3261
      %v3499 = vunpack.c.l.b16 %v3262
      %v3500 = vunpack.c.l.b16 %v3263
      %v3501 = vunpack.c.h.b16 %v3263
      %v3502 = vunpack.c.l.b16 %v3264
      %v3503 = vunpack.c.l.b16 %v3265
      %v3504 = vunpack.c.h.b16 %v3265
      %v3505 = vunpack.c.l.b16 %v3266
      %v3506 = vunpack.c.l.b16 %v3267
      %v3507 = vunpack.c.h.b16 %v3267
      %v3508 = vunpack.c.l.b16 %v3268
      %v3509 = vunpack.c.l.b16 %v3269
      %v3510 = vunpack.c.h.b16 %v3269
      %v3511 = vunpack.c.l.b16 %v3270
      %v3512 = vunpack.c.l.b16 %v3271
      %v3513 = vunpack.c.h.b16 %v3271
      %v3514 = vunpack.c.l.b16 %v3272
      %v3515 = vunpack.c.l.b16 %v3273
      %v3516 = vunpack.c.h.b16 %v3273
      %v3517 = vunpack.c.l.b16 %v3274
      %v3518 = vunpack.c.l.b16 %v3275
      %v3519 = vunpack.c.h.b16 %v3275
      %v3520 = vunpack.c.l.b16 %v3276
      %v3521 = vunpack.c.l.b16 %v3277
      %v3522 = vunpack.c.h.b16 %v3277
      %v3523 = vunpack.c.l.b16 %v3278
      %v3524 = vunpack.c.l.b16 %v3279
      %v3525 = vunpack.c.h.b16 %v3279
      %v3526 = vunpack.c.l.b16 %v3280
      %v3527 = vunpack.c.l.b16 %v3281
      %v3528 = vunpack.c.h.b16 %v3281
      %v3529 = vunpack.c.l.b16 %v3282
      %v3530 = vunpack.c.l.b16 %v3283
      %v3531 = vunpack.c.h.b16 %v3283
      %v3532 = vunpack.c.l.b16 %v3284
      %v3533 = vpack.c.b16 %v3392, %v3389
      %v3534 = vpack.c.b16 %v3393, %v3390
      %v3535 = vpack.c.b16 %v3394, %v3391
      %v3536 = vpack.c.b16 %v3398, %v3395
      %v3537 = vpack.c.b16 %v3399, %v3396
      %v3538 = vpack.c.b16 %v3400, %v3397
      %v3539 = vpack.c.b16 %v3404, %v3401
      %v3540 = vpack.c.b16 %v3405, %v3402
      %v3541 = vpack.c.b16 %v3406, %v3403
      %v3542 = vpack.c.b16 %v3410, %v3407
      %v3543 = vpack.c.b16 %v3411, %v3408
      %v3544 = vpack.c.b16 %v3412, %v3409
      %v3545 = vpack.c.b16 %v3416, %v3413
      %v3546 = vpack.c.b16 %v3417, %v3414
      %v3547 = vpack.c.b16 %v3418, %v3415
      %v3548 = vpack.c.b16 %v3422, %v3419
      %v3549 = vpack.c.b16 %v3423, %v3420
      %v3550 = vpack.c.b16 %v3424, %v3421
      %v3551 = vpack.c.b16 %v3428, %v3425
      %v3552 = vpack.c.b16 %v3429, %v3426
      %v3553 = vpack.c.b16 %v3430, %v3427
      %v3554 = vpack.c.b16 %v3434, %v3431
      %v3555 = vpack.c.b16 %v3435, %v3432
      %v3556 = vpack.c.b16 %v3436, %v3433
      %v3557 = vpack.c.b16 %v3440, %v3437
      %v3558 = vpack.c.b16 %v3441, %v3438
      %v3559 = vpack.c.b16 %v3442, %v3439
      %v3560 = vpack.c.b16 %v3446, %v3443
      %v3561 = vpack.c.b16 %v3447, %v3444
      %v3562 = vpack.c.b16 %v3448, %v3445
      %v3563 = vpack.c.b16 %v3452, %v3449
      %v3564 = vpack.c.b16 %v3453, %v3450
      %v3565 = vpack.c.b16 %v3454, %v3451
      %v3566 = vpack.c.b16 %v3458, %v3455
      %v3567 = vpack.c.b16 %v3459, %v3456
      %v3568 = vpack.c.b16 %v3460, %v3457
      %v3569 = vpack.c.b16 %v3464, %v3461
      %v3570 = vpack.c.b16 %v3465, %v3462
      %v3571 = vpack.c.b16 %v3466, %v3463
      %v3572 = vpack.c.b16 %v3470, %v3467
      %v3573 = vpack.c.b16 %v3471, %v3468
      %v3574 = vpack.c.b16 %v3472, %v3469
      %v3575 = vpack.c.b16 %v3476, %v3473
      %v3576 = vpack.c.b16 %v3477, %v3474
      %v3577 = vpack.c.b16 %v3478, %v3475
      %v3578 = vpack.c.b16 %v3482, %v3479
      %v3579 = vpack.c.b16 %v3483, %v3480
      %v3580 = vpack.c.b16 %v3484, %v3481
      %v3581 = vpack.c.b16 %v3488, %v3485
      %v3582 = vpack.c.b16 %v3489, %v3486
      %v3583 = vpack.c.b16 %v3490, %v3487
      %v3584 = vpack.c.b16 %v3494, %v3491
      %v3585 = vpack.c.b16 %v3495, %v3492
      %v3586 = vpack.c.b16 %v3496, %v3493
      %v3587 = vpack.c.b16 %v3500, %v3497
      %v3588 = vpack.c.b16 %v3501, %v3498
      %v3589 = vpack.c.b16 %v3502, %v3499
      %v3590 = vpack.c.b16 %v3506, %v3503
      %v3591 = vpack.c.b16 %v3507, %v3504
      %v3592 = vpack.c.b16 %v3508, %v3505
      %v3593 = vpack.c.b16 %v3512, %v3509
      %v3594 = vpack.c.b16 %v3513, %v3510
      %v3595 = vpack.c.b16 %v3514, %v3511
      %v3596 = vpack.c.b16 %v3518, %v3515
      %v3597 = vpack.c.b16 %v3519, %v3516
      %v3598 = vpack.c.b16 %v3520, %v3517
      %v3599 = vpack.c.b16 %v3524, %v3521
      %v3600 = vpack.c.b16 %v3525, %v3522
      %v3601 = vpack.c.b16 %v3526, %v3523
      %v3602 = vpack.c.b16 %v3530, %v3527
      %v3603 = vpack.c.b16 %v3531, %v3528
      %v3604 = vpack.c.b16 %v3532, %v3529
      %3677 = vmatpush.bf16.msra.mxu0 %v3554
      %3678 = vmatpush.bf16.msra.mxu0 %v3551
      %3679 = vmatpush.bf16.msra.mxu0 %v3548
      %3680 = vmatpush.bf16.msra.mxu0 %v3545
      %3681 = vmatpush.bf16.msra.mxu0 %v3542
      %3682 = vmatpush.bf16.msra.mxu0 %v3539
      %3683 = vmatpush.bf16.msra.mxu0 %v3536
      %3684 = vmatpush.bf16.msra.mxu0 %v3533
      %3685 = vmatmul.bf16.gmra.mxu0 %v3156
      %v3686 = vpop.f32.mrf.mxu0
      %v3687 = vadd.f32 %v3287, %v3686
      %v3688 = vpop.f32.mrf.mxu0
      %v3689 = vadd.f32 %v3287, %v3688
      %3690 = vmatmul.bf16.gmra.mxu0 %v3159
      %v3691 = vpop.f32.mrf.mxu0
      %v3692 = vadd.f32 %v3287, %v3691
      %v3693 = vpop.f32.mrf.mxu0
      %v3694 = vadd.f32 %v3287, %v3693
      %3695 = vmatmul.bf16.gmra.mxu0 %v3162
      %v3696 = vpop.f32.mrf.mxu0
      %v3697 = vadd.f32 %v3287, %v3696
      %v3698 = vpop.f32.mrf.mxu0
      %v3699 = vadd.f32 %v3287, %v3698
      %3700 = vmatmul.bf16.gmra.mxu0 %v3165
      %v3701 = vpop.f32.mrf.mxu0
      %v3702 = vadd.f32 %v3287, %v3701
      %v3703 = vpop.f32.mrf.mxu0
      %v3704 = vadd.f32 %v3287, %v3703
      %3705 = vmatmul.bf16.gmra.mxu0 %v3168
      %v3706 = vpop.f32.mrf.mxu0
      %v3707 = vadd.f32 %v3287, %v3706
      %v3708 = vpop.f32.mrf.mxu0
      %v3709 = vadd.f32 %v3287, %v3708
      %3710 = vmatmul.bf16.gmra.mxu0 %v3171
      %v3711 = vpop.f32.mrf.mxu0
      %v3712 = vadd.f32 %v3287, %v3711
      %v3713 = vpop.f32.mrf.mxu0
      %v3714 = vadd.f32 %v3287, %v3713
      %3715 = vmatmul.bf16.gmra.mxu0 %v3174
      %v3716 = vpop.f32.mrf.mxu0
      %v3717 = vadd.f32 %v3287, %v3716
      %v3718 = vpop.f32.mrf.mxu0
      %v3719 = vadd.f32 %v3287, %v3718
      %3720 = vmatmul.bf16.gmra.mxu0 %v3177
      %v3721 = vpop.f32.mrf.mxu0
      %v3722 = vadd.f32 %v3287, %v3721
      %v3723 = vpop.f32.mrf.mxu0
      %v3724 = vadd.f32 %v3287, %v3723
      %3725 = vmatmul.bf16.gmra.mxu0 %v3180
      %v3726 = vpop.f32.mrf.mxu0
      %v3727 = vadd.f32 %v3287, %v3726
      %v3728 = vpop.f32.mrf.mxu0
      %v3729 = vadd.f32 %v3287, %v3728
      %3730 = vmatmul.bf16.gmra.mxu0 %v3183
      %v3731 = vpop.f32.mrf.mxu0
      %v3732 = vadd.f32 %v3287, %v3731
      %v3733 = vpop.f32.mrf.mxu0
      %v3734 = vadd.f32 %v3287, %v3733
      %3735 = vmatmul.bf16.gmra.mxu0 %v3186
      %v3736 = vpop.f32.mrf.mxu0
      %v3737 = vadd.f32 %v3287, %v3736
      %v3738 = vpop.f32.mrf.mxu0
      %v3739 = vadd.f32 %v3287, %v3738
      %3740 = vdwg.mxu0
      %3741 = vmatpush.bf16.msra.mxu0 %v3578
      %3742 = vmatpush.bf16.msra.mxu0 %v3575
      %3743 = vmatpush.bf16.msra.mxu0 %v3572
      %3744 = vmatpush.bf16.msra.mxu0 %v3569
      %3745 = vmatpush.bf16.msra.mxu0 %v3566
      %3746 = vmatpush.bf16.msra.mxu0 %v3563
      %3747 = vmatpush.bf16.msra.mxu0 %v3560
      %3748 = vmatpush.bf16.msra.mxu0 %v3557
      %3749 = vmatmul.bf16.gmra.mxu0 %v3157
      %v3750 = vpop.f32.mrf.mxu0
      %v3751 = vadd.f32 %v3687, %v3750
      %v3752 = vpop.f32.mrf.mxu0
      %v3753 = vadd.f32 %v3689, %v3752
      %3754 = vmatmul.bf16.gmra.mxu0 %v3160
      %v3755 = vpop.f32.mrf.mxu0
      %v3756 = vadd.f32 %v3692, %v3755
      %v3757 = vpop.f32.mrf.mxu0
      %v3758 = vadd.f32 %v3694, %v3757
      %3759 = vmatmul.bf16.gmra.mxu0 %v3163
      %v3760 = vpop.f32.mrf.mxu0
      %v3761 = vadd.f32 %v3697, %v3760
      %v3762 = vpop.f32.mrf.mxu0
      %v3763 = vadd.f32 %v3699, %v3762
      %3764 = vmatmul.bf16.gmra.mxu0 %v3166
      %v3765 = vpop.f32.mrf.mxu0
      %v3766 = vadd.f32 %v3702, %v3765
      %v3767 = vpop.f32.mrf.mxu0
      %v3768 = vadd.f32 %v3704, %v3767
      %3769 = vmatmul.bf16.gmra.mxu0 %v3169
      %v3770 = vpop.f32.mrf.mxu0
      %v3771 = vadd.f32 %v3707, %v3770
      %v3772 = vpop.f32.mrf.mxu0
      %v3773 = vadd.f32 %v3709, %v3772
      %3774 = vmatmul.bf16.gmra.mxu0 %v3172
      %v3775 = vpop.f32.mrf.mxu0
      %v3776 = vadd.f32 %v3712, %v3775
      %v3777 = vpop.f32.mrf.mxu0
      %v3778 = vadd.f32 %v3714, %v3777
      %3779 = vmatmul.bf16.gmra.mxu0 %v3175
      %v3780 = vpop.f32.mrf.mxu0
      %v3781 = vadd.f32 %v3717, %v3780
      %v3782 = vpop.f32.mrf.mxu0
      %v3783 = vadd.f32 %v3719, %v3782
      %3784 = vmatmul.bf16.gmra.mxu0 %v3178
      %v3785 = vpop.f32.mrf.mxu0
      %v3786 = vadd.f32 %v3722, %v3785
      %v3787 = vpop.f32.mrf.mxu0
      %v3788 = vadd.f32 %v3724, %v3787
      %3789 = vmatmul.bf16.gmra.mxu0 %v3181
      %v3790 = vpop.f32.mrf.mxu0
      %v3791 = vadd.f32 %v3727, %v3790
      %v3792 = vpop.f32.mrf.mxu0
      %v3793 = vadd.f32 %v3729, %v3792
      %3794 = vmatmul.bf16.gmra.mxu0 %v3184
      %v3795 = vpop.f32.mrf.mxu0
      %v3796 = vadd.f32 %v3732, %v3795
      %v3797 = vpop.f32.mrf.mxu0
      %v3798 = vadd.f32 %v3734, %v3797
      %3799 = vmatmul.bf16.gmra.mxu0 %v3187
      %v3800 = vpop.f32.mrf.mxu0
      %v3801 = vadd.f32 %v3737, %v3800
      %v3802 = vpop.f32.mrf.mxu0
      %v3803 = vadd.f32 %v3739, %v3802
      %3804 = vdwg.mxu0
      %3805 = vmatpush.bf16.msra.mxu0 %v3602
      %3806 = vmatpush.bf16.msra.mxu0 %v3599
      %3807 = vmatpush.bf16.msra.mxu0 %v3596
      %3808 = vmatpush.bf16.msra.mxu0 %v3593
      %3809 = vmatpush.bf16.msra.mxu0 %v3590
      %3810 = vmatpush.bf16.msra.mxu0 %v3587
      %3811 = vmatpush.bf16.msra.mxu0 %v3584
      %3812 = vmatpush.bf16.msra.mxu0 %v3581
      %3813 = vmatmul.bf16.gmra.mxu0 %v3158
      %v3814 = vpop.f32.mrf.mxu0
      %v3815 = vadd.f32 %v3751, %v3814
      %v3816 = vpop.f32.mrf.mxu0
      %v3817 = vadd.f32 %v3753, %v3816
      %3818 = vmatmul.bf16.gmra.mxu0 %v3161
      %v3819 = vpop.f32.mrf.mxu0
      %v3820 = vadd.f32 %v3756, %v3819
      %v3821 = vpop.f32.mrf.mxu0
      %v3822 = vadd.f32 %v3758, %v3821
      %3823 = vmatmul.bf16.gmra.mxu0 %v3164
      %v3824 = vpop.f32.mrf.mxu0
      %v3825 = vadd.f32 %v3761, %v3824
      %v3826 = vpop.f32.mrf.mxu0
      %v3827 = vadd.f32 %v3763, %v3826
      %3828 = vmatmul.bf16.gmra.mxu0 %v3167
      %v3829 = vpop.f32.mrf.mxu0
      %v3830 = vadd.f32 %v3766, %v3829
      %v3831 = vpop.f32.mrf.mxu0
      %v3832 = vadd.f32 %v3768, %v3831
      %3833 = vmatmul.bf16.gmra.mxu0 %v3170
      %v3834 = vpop.f32.mrf.mxu0
      %v3835 = vadd.f32 %v3771, %v3834
      %v3836 = vpop.f32.mrf.mxu0
      %v3837 = vadd.f32 %v3773, %v3836
      %3838 = vmatmul.bf16.gmra.mxu0 %v3173
      %v3839 = vpop.f32.mrf.mxu0
      %v3840 = vadd.f32 %v3776, %v3839
      %v3841 = vpop.f32.mrf.mxu0
      %v3842 = vadd.f32 %v3778, %v3841
      %3843 = vmatmul.bf16.gmra.mxu0 %v3176
      %v3844 = vpop.f32.mrf.mxu0
      %v3845 = vadd.f32 %v3781, %v3844
      %v3846 = vpop.f32.mrf.mxu0
      %v3847 = vadd.f32 %v3783, %v3846
      %3848 = vmatmul.bf16.gmra.mxu0 %v3179
      %v3849 = vpop.f32.mrf.mxu0
      %v3850 = vadd.f32 %v3786, %v3849
      %v3851 = vpop.f32.mrf.mxu0
      %v3852 = vadd.f32 %v3788, %v3851
      %3853 = vmatmul.bf16.gmra.mxu0 %v3182
      %v3854 = vpop.f32.mrf.mxu0
      %v3855 = vadd.f32 %v3791, %v3854
      %v3856 = vpop.f32.mrf.mxu0
      %v3857 = vadd.f32 %v3793, %v3856
      %3858 = vmatmul.bf16.gmra.mxu0 %v3185
      %v3859 = vpop.f32.mrf.mxu0
      %v3860 = vadd.f32 %v3796, %v3859
      %v3861 = vpop.f32.mrf.mxu0
      %v3862 = vadd.f32 %v3798, %v3861
      %3863 = vmatmul.bf16.gmra.mxu0 %v3188
      %v3864 = vpop.f32.mrf.mxu0
      %v3865 = vadd.f32 %v3801, %v3864
      %v3866 = vpop.f32.mrf.mxu0
      %v3867 = vadd.f32 %v3803, %v3866
      %3868 = vdwg.mxu0
      %3869 = vmatpush.bf16.msra.mxu0 %v3555
      %3870 = vmatpush.bf16.msra.mxu0 %v3552
      %3871 = vmatpush.bf16.msra.mxu0 %v3549
      %3872 = vmatpush.bf16.msra.mxu0 %v3546
      %3873 = vmatpush.bf16.msra.mxu0 %v3543
      %3874 = vmatpush.bf16.msra.mxu0 %v3540
      %3875 = vmatpush.bf16.msra.mxu0 %v3537
      %3876 = vmatpush.bf16.msra.mxu0 %v3534
      %3877 = vmatmul.bf16.gmra.mxu0 %v3156
      %v3878 = vpop.f32.mrf.mxu0
      %v3879 = vadd.f32 %v3288, %v3878
      %v3880 = vpop.f32.mrf.mxu0
      %v3881 = vadd.f32 %v3288, %v3880
      %3882 = vmatmul.bf16.gmra.mxu0 %v3159
      %v3883 = vpop.f32.mrf.mxu0
      %v3884 = vadd.f32 %v3288, %v3883
      %v3885 = vpop.f32.mrf.mxu0
      %v3886 = vadd.f32 %v3288, %v3885
      %3887 = vmatmul.bf16.gmra.mxu0 %v3162
      %v3888 = vpop.f32.mrf.mxu0
      %v3889 = vadd.f32 %v3288, %v3888
      %v3890 = vpop.f32.mrf.mxu0
      %v3891 = vadd.f32 %v3288, %v3890
      %3892 = vmatmul.bf16.gmra.mxu0 %v3165
      %v3893 = vpop.f32.mrf.mxu0
      %v3894 = vadd.f32 %v3288, %v3893
      %v3895 = vpop.f32.mrf.mxu0
      %v3896 = vadd.f32 %v3288, %v3895
      %3897 = vmatmul.bf16.gmra.mxu0 %v3168
      %v3898 = vpop.f32.mrf.mxu0
      %v3899 = vadd.f32 %v3288, %v3898
      %v3900 = vpop.f32.mrf.mxu0
      %v3901 = vadd.f32 %v3288, %v3900
      %3902 = vmatmul.bf16.gmra.mxu0 %v3171
      %v3903 = vpop.f32.mrf.mxu0
      %v3904 = vadd.f32 %v3288, %v3903
      %v3905 = vpop.f32.mrf.mxu0
      %v3906 = vadd.f32 %v3288, %v3905
      %3907 = vmatmul.bf16.gmra.mxu0 %v3174
      %v3908 = vpop.f32.mrf.mxu0
      %v3909 = vadd.f32 %v3288, %v3908
      %v3910 = vpop.f32.mrf.mxu0
      %v3911 = vadd.f32 %v3288, %v3910
      %3912 = vmatmul.bf16.gmra.mxu0 %v3177
      %v3913 = vpop.f32.mrf.mxu0
      %v3914 = vadd.f32 %v3288, %v3913
      %v3915 = vpop.f32.mrf.mxu0
      %v3916 = vadd.f32 %v3288, %v3915
      %3917 = vmatmul.bf16.gmra.mxu0 %v3180
      %v3918 = vpop.f32.mrf.mxu0
      %v3919 = vadd.f32 %v3288, %v3918
      %v3920 = vpop.f32.mrf.mxu0
      %v3921 = vadd.f32 %v3288, %v3920
      %3922 = vmatmul.bf16.gmra.mxu0 %v3183
      %v3923 = vpop.f32.mrf.mxu0
      %v3924 = vadd.f32 %v3288, %v3923
      %v3925 = vpop.f32.mrf.mxu0
      %v3926 = vadd.f32 %v3288, %v3925
      %3927 = vmatmul.bf16.gmra.mxu0 %v3186
      %v3928 = vpop.f32.mrf.mxu0
      %v3929 = vadd.f32 %v3288, %v3928
      %v3930 = vpop.f32.mrf.mxu0
      %v3931 = vadd.f32 %v3288, %v3930
      %3932 = vdwg.mxu0
      %3933 = vmatpush.bf16.msra.mxu0 %v3579
      %3934 = vmatpush.bf16.msra.mxu0 %v3576
      %3935 = vmatpush.bf16.msra.mxu0 %v3573
      %3936 = vmatpush.bf16.msra.mxu0 %v3570
      %3937 = vmatpush.bf16.msra.mxu0 %v3567
      %3938 = vmatpush.bf16.msra.mxu0 %v3564
      %3939 = vmatpush.bf16.msra.mxu0 %v3561
      %3940 = vmatpush.bf16.msra.mxu0 %v3558
      %3941 = vmatmul.bf16.gmra.mxu0 %v3157
      %v3942 = vpop.f32.mrf.mxu0
      %v3943 = vadd.f32 %v3879, %v3942
      %v3944 = vpop.f32.mrf.mxu0
      %v3945 = vadd.f32 %v3881, %v3944
      %3946 = vmatmul.bf16.gmra.mxu0 %v3160
      %v3947 = vpop.f32.mrf.mxu0
      %v3948 = vadd.f32 %v3884, %v3947
      %v3949 = vpop.f32.mrf.mxu0
      %v3950 = vadd.f32 %v3886, %v3949
      %3951 = vmatmul.bf16.gmra.mxu0 %v3163
      %v3952 = vpop.f32.mrf.mxu0
      %v3953 = vadd.f32 %v3889, %v3952
      %v3954 = vpop.f32.mrf.mxu0
      %v3955 = vadd.f32 %v3891, %v3954
      %3956 = vmatmul.bf16.gmra.mxu0 %v3166
      %v3957 = vpop.f32.mrf.mxu0
      %v3958 = vadd.f32 %v3894, %v3957
      %v3959 = vpop.f32.mrf.mxu0
      %v3960 = vadd.f32 %v3896, %v3959
      %3961 = vmatmul.bf16.gmra.mxu0 %v3169
      %v3962 = vpop.f32.mrf.mxu0
      %v3963 = vadd.f32 %v3899, %v3962
      %v3964 = vpop.f32.mrf.mxu0
      %v3965 = vadd.f32 %v3901, %v3964
      %3966 = vmatmul.bf16.gmra.mxu0 %v3172
      %v3967 = vpop.f32.mrf.mxu0
      %v3968 = vadd.f32 %v3904, %v3967
      %v3969 = vpop.f32.mrf.mxu0
      %v3970 = vadd.f32 %v3906, %v3969
      %3971 = vmatmul.bf16.gmra.mxu0 %v3175
      %v3972 = vpop.f32.mrf.mxu0
      %v3973 = vadd.f32 %v3909, %v3972
      %v3974 = vpop.f32.mrf.mxu0
      %v3975 = vadd.f32 %v3911, %v3974
      %3976 = vmatmul.bf16.gmra.mxu0 %v3178
      %v3977 = vpop.f32.mrf.mxu0
      %v3978 = vadd.f32 %v3914, %v3977
      %v3979 = vpop.f32.mrf.mxu0
      %v3980 = vadd.f32 %v3916, %v3979
      %3981 = vmatmul.bf16.gmra.mxu0 %v3181
      %v3982 = vpop.f32.mrf.mxu0
      %v3983 = vadd.f32 %v3919, %v3982
      %v3984 = vpop.f32.mrf.mxu0
      %v3985 = vadd.f32 %v3921, %v3984
      %3986 = vmatmul.bf16.gmra.mxu0 %v3184
      %v3987 = vpop.f32.mrf.mxu0
      %v3988 = vadd.f32 %v3924, %v3987
      %v3989 = vpop.f32.mrf.mxu0
      %v3990 = vadd.f32 %v3926, %v3989
      %3991 = vmatmul.bf16.gmra.mxu0 %v3187
      %v3992 = vpop.f32.mrf.mxu0
      %v3993 = vadd.f32 %v3929, %v3992
      %v3994 = vpop.f32.mrf.mxu0
      %v3995 = vadd.f32 %v3931, %v3994
      %3996 = vdwg.mxu0
      %3997 = vmatpush.bf16.msra.mxu0 %v3603
      %3998 = vmatpush.bf16.msra.mxu0 %v3600
      %3999 = vmatpush.bf16.msra.mxu0 %v3597
      %4000 = vmatpush.bf16.msra.mxu0 %v3594
      %4001 = vmatpush.bf16.msra.mxu0 %v3591
      %4002 = vmatpush.bf16.msra.mxu0 %v3588
      %4003 = vmatpush.bf16.msra.mxu0 %v3585
      %4004 = vmatpush.bf16.msra.mxu0 %v3582
      %4005 = vmatmul.bf16.gmra.mxu0 %v3158
      %v4006 = vpop.f32.mrf.mxu0
      %v4007 = vadd.f32 %v3943, %v4006
      %v4008 = vpop.f32.mrf.mxu0
      %v4009 = vadd.f32 %v3945, %v4008
      %4010 = vmatmul.bf16.gmra.mxu0 %v3161
      %v4011 = vpop.f32.mrf.mxu0
      %v4012 = vadd.f32 %v3948, %v4011
      %v4013 = vpop.f32.mrf.mxu0
      %v4014 = vadd.f32 %v3950, %v4013
      %4015 = vmatmul.bf16.gmra.mxu0 %v3164
      %v4016 = vpop.f32.mrf.mxu0
      %v4017 = vadd.f32 %v3953, %v4016
      %v4018 = vpop.f32.mrf.mxu0
      %v4019 = vadd.f32 %v3955, %v4018
      %4020 = vmatmul.bf16.gmra.mxu0 %v3167
      %v4021 = vpop.f32.mrf.mxu0
      %v4022 = vadd.f32 %v3958, %v4021
      %v4023 = vpop.f32.mrf.mxu0
      %v4024 = vadd.f32 %v3960, %v4023
      %4025 = vmatmul.bf16.gmra.mxu0 %v3170
      %v4026 = vpop.f32.mrf.mxu0
      %v4027 = vadd.f32 %v3963, %v4026
      %v4028 = vpop.f32.mrf.mxu0
      %v4029 = vadd.f32 %v3965, %v4028
      %4030 = vmatmul.bf16.gmra.mxu0 %v3173
      %v4031 = vpop.f32.mrf.mxu0
      %v4032 = vadd.f32 %v3968, %v4031
      %v4033 = vpop.f32.mrf.mxu0
      %v4034 = vadd.f32 %v3970, %v4033
      %4035 = vmatmul.bf16.gmra.mxu0 %v3176
      %v4036 = vpop.f32.mrf.mxu0
      %v4037 = vadd.f32 %v3973, %v4036
      %v4038 = vpop.f32.mrf.mxu0
      %v4039 = vadd.f32 %v3975, %v4038
      %4040 = vmatmul.bf16.gmra.mxu0 %v3179
      %v4041 = vpop.f32.mrf.mxu0
      %v4042 = vadd.f32 %v3978, %v4041
      %v4043 = vpop.f32.mrf.mxu0
      %v4044 = vadd.f32 %v3980, %v4043
      %4045 = vmatmul.bf16.gmra.mxu0 %v3182
      %v4046 = vpop.f32.mrf.mxu0
      %v4047 = vadd.f32 %v3983, %v4046
      %v4048 = vpop.f32.mrf.mxu0
      %v4049 = vadd.f32 %v3985, %v4048
      %4050 = vmatmul.bf16.gmra.mxu0 %v3185
      %v4051 = vpop.f32.mrf.mxu0
      %v4052 = vadd.f32 %v3988, %v4051
      %v4053 = vpop.f32.mrf.mxu0
      %v4054 = vadd.f32 %v3990, %v4053
      %4055 = vmatmul.bf16.gmra.mxu0 %v3188
      %v4056 = vpop.f32.mrf.mxu0
      %v4057 = vadd.f32 %v3993, %v4056
      %v4058 = vpop.f32.mrf.mxu0
      %v4059 = vadd.f32 %v3995, %v4058
      %4060 = vdwg.mxu0
      %4061 = vmatpush.bf16.msra.mxu0 %v3556
      %4062 = vmatpush.bf16.msra.mxu0 %v3553
      %4063 = vmatpush.bf16.msra.mxu0 %v3550
      %4064 = vmatpush.bf16.msra.mxu0 %v3547
      %4065 = vmatpush.bf16.msra.mxu0 %v3544
      %4066 = vmatpush.bf16.msra.mxu0 %v3541
      %4067 = vmatpush.bf16.msra.mxu0 %v3538
      %4068 = vmatpush.bf16.msra.mxu0 %v3535
      %4069 = vmatmul.bf16.gmra.mxu0 %v3156
      %v4070 = vpop.f32.mrf.mxu0
      %v4071 = vadd.f32 %v3289, %v4070
      %v4072 = vpop.f32.mrf.mxu0
      %v4073 = vadd.f32 %v3289, %v4072
      %4074 = vmatmul.bf16.gmra.mxu0 %v3159
      %v4075 = vpop.f32.mrf.mxu0
      %v4076 = vadd.f32 %v3289, %v4075
      %v4077 = vpop.f32.mrf.mxu0
      %v4078 = vadd.f32 %v3289, %v4077
      %4079 = vmatmul.bf16.gmra.mxu0 %v3162
      %v4080 = vpop.f32.mrf.mxu0
      %v4081 = vadd.f32 %v3289, %v4080
      %v4082 = vpop.f32.mrf.mxu0
      %v4083 = vadd.f32 %v3289, %v4082
      %4084 = vmatmul.bf16.gmra.mxu0 %v3165
      %v4085 = vpop.f32.mrf.mxu0
      %v4086 = vadd.f32 %v3289, %v4085
      %v4087 = vpop.f32.mrf.mxu0
      %v4088 = vadd.f32 %v3289, %v4087
      %4089 = vmatmul.bf16.gmra.mxu0 %v3168
      %v4090 = vpop.f32.mrf.mxu0
      %v4091 = vadd.f32 %v3289, %v4090
      %v4092 = vpop.f32.mrf.mxu0
      %v4093 = vadd.f32 %v3289, %v4092
      %4094 = vmatmul.bf16.gmra.mxu0 %v3171
      %v4095 = vpop.f32.mrf.mxu0
      %v4096 = vadd.f32 %v3289, %v4095
      %v4097 = vpop.f32.mrf.mxu0
      %v4098 = vadd.f32 %v3289, %v4097
      %4099 = vmatmul.bf16.gmra.mxu0 %v3174
      %v4100 = vpop.f32.mrf.mxu0
      %v4101 = vadd.f32 %v3289, %v4100
      %v4102 = vpop.f32.mrf.mxu0
      %v4103 = vadd.f32 %v3289, %v4102
      %4104 = vmatmul.bf16.gmra.mxu0 %v3177
      %v4105 = vpop.f32.mrf.mxu0
      %v4106 = vadd.f32 %v3289, %v4105
      %v4107 = vpop.f32.mrf.mxu0
      %v4108 = vadd.f32 %v3289, %v4107
      %4109 = vmatmul.bf16.gmra.mxu0 %v3180
      %v4110 = vpop.f32.mrf.mxu0
      %v4111 = vadd.f32 %v3289, %v4110
      %v4112 = vpop.f32.mrf.mxu0
      %v4113 = vadd.f32 %v3289, %v4112
      %4114 = vmatmul.bf16.gmra.mxu0 %v3183
      %v4115 = vpop.f32.mrf.mxu0
      %v4116 = vadd.f32 %v3289, %v4115
      %v4117 = vpop.f32.mrf.mxu0
      %v4118 = vadd.f32 %v3289, %v4117
      %4119 = vmatmul.bf16.gmra.mxu0 %v3186
      %v4120 = vpop.f32.mrf.mxu0
      %v4121 = vadd.f32 %v3289, %v4120
      %v4122 = vpop.f32.mrf.mxu0
      %v4123 = vadd.f32 %v3289, %v4122
      %4124 = vdwg.mxu0
      %4125 = vmatpush.bf16.msra.mxu0 %v3580
      %4126 = vmatpush.bf16.msra.mxu0 %v3577
      %4127 = vmatpush.bf16.msra.mxu0 %v3574
      %4128 = vmatpush.bf16.msra.mxu0 %v3571
      %4129 = vmatpush.bf16.msra.mxu0 %v3568
      %4130 = vmatpush.bf16.msra.mxu0 %v3565
      %4131 = vmatpush.bf16.msra.mxu0 %v3562
      %4132 = vmatpush.bf16.msra.mxu0 %v3559
      %4133 = vmatmul.bf16.gmra.mxu0 %v3157
      %v4134 = vpop.f32.mrf.mxu0
      %v4135 = vadd.f32 %v4071, %v4134
      %v4136 = vpop.f32.mrf.mxu0
      %v4137 = vadd.f32 %v4073, %v4136
      %4138 = vmatmul.bf16.gmra.mxu0 %v3160
      %v4139 = vpop.f32.mrf.mxu0
      %v4140 = vadd.f32 %v4076, %v4139
      %v4141 = vpop.f32.mrf.mxu0
      %v4142 = vadd.f32 %v4078, %v4141
      %4143 = vmatmul.bf16.gmra.mxu0 %v3163
      %v4144 = vpop.f32.mrf.mxu0
      %v4145 = vadd.f32 %v4081, %v4144
      %v4146 = vpop.f32.mrf.mxu0
      %v4147 = vadd.f32 %v4083, %v4146
      %4148 = vmatmul.bf16.gmra.mxu0 %v3166
      %v4149 = vpop.f32.mrf.mxu0
      %v4150 = vadd.f32 %v4086, %v4149
      %v4151 = vpop.f32.mrf.mxu0
      %v4152 = vadd.f32 %v4088, %v4151
      %4153 = vmatmul.bf16.gmra.mxu0 %v3169
      %v4154 = vpop.f32.mrf.mxu0
      %v4155 = vadd.f32 %v4091, %v4154
      %v4156 = vpop.f32.mrf.mxu0
      %v4157 = vadd.f32 %v4093, %v4156
      %4158 = vmatmul.bf16.gmra.mxu0 %v3172
      %v4159 = vpop.f32.mrf.mxu0
      %v4160 = vadd.f32 %v4096, %v4159
      %v4161 = vpop.f32.mrf.mxu0
      %v4162 = vadd.f32 %v4098, %v4161
      %4163 = vmatmul.bf16.gmra.mxu0 %v3175
      %v4164 = vpop.f32.mrf.mxu0
      %v4165 = vadd.f32 %v4101, %v4164
      %v4166 = vpop.f32.mrf.mxu0
      %v4167 = vadd.f32 %v4103, %v4166
      %4168 = vmatmul.bf16.gmra.mxu0 %v3178
      %v4169 = vpop.f32.mrf.mxu0
      %v4170 = vadd.f32 %v4106, %v4169
      %v4171 = vpop.f32.mrf.mxu0
      %v4172 = vadd.f32 %v4108, %v4171
      %4173 = vmatmul.bf16.gmra.mxu0 %v3181
      %v4174 = vpop.f32.mrf.mxu0
      %v4175 = vadd.f32 %v4111, %v4174
      %v4176 = vpop.f32.mrf.mxu0
      %v4177 = vadd.f32 %v4113, %v4176
      %4178 = vmatmul.bf16.gmra.mxu0 %v3184
      %v4179 = vpop.f32.mrf.mxu0
      %v4180 = vadd.f32 %v4116, %v4179
      %v4181 = vpop.f32.mrf.mxu0
      %v4182 = vadd.f32 %v4118, %v4181
      %4183 = vmatmul.bf16.gmra.mxu0 %v3187
      %v4184 = vpop.f32.mrf.mxu0
      %v4185 = vadd.f32 %v4121, %v4184
      %v4186 = vpop.f32.mrf.mxu0
      %v4187 = vadd.f32 %v4123, %v4186
      %4188 = vdwg.mxu0
      %4189 = vmatpush.bf16.msra.mxu0 %v3604
      %4190 = vmatpush.bf16.msra.mxu0 %v3601
      %4191 = vmatpush.bf16.msra.mxu0 %v3598
      %4192 = vmatpush.bf16.msra.mxu0 %v3595
      %4193 = vmatpush.bf16.msra.mxu0 %v3592
      %4194 = vmatpush.bf16.msra.mxu0 %v3589
      %4195 = vmatpush.bf16.msra.mxu0 %v3586
      %4196 = vmatpush.bf16.msra.mxu0 %v3583
      %4197 = vmatmul.bf16.gmra.mxu0 %v3158
      %v4198 = vpop.f32.mrf.mxu0
      %v4199 = vadd.f32 %v4135, %v4198
      %v4200 = vpop.f32.mrf.mxu0
      %v4201 = vadd.f32 %v4137, %v4200
      %4202 = vmatmul.bf16.gmra.mxu0 %v3161
      %v4203 = vpop.f32.mrf.mxu0
      %v4204 = vadd.f32 %v4140, %v4203
      %v4205 = vpop.f32.mrf.mxu0
      %v4206 = vadd.f32 %v4142, %v4205
      %4207 = vmatmul.bf16.gmra.mxu0 %v3164
      %v4208 = vpop.f32.mrf.mxu0
      %v4209 = vadd.f32 %v4145, %v4208
      %v4210 = vpop.f32.mrf.mxu0
      %v4211 = vadd.f32 %v4147, %v4210
      %4212 = vmatmul.bf16.gmra.mxu0 %v3167
      %v4213 = vpop.f32.mrf.mxu0
      %v4214 = vadd.f32 %v4150, %v4213
      %v4215 = vpop.f32.mrf.mxu0
      %v4216 = vadd.f32 %v4152, %v4215
      %4217 = vmatmul.bf16.gmra.mxu0 %v3170
      %v4218 = vpop.f32.mrf.mxu0
      %v4219 = vadd.f32 %v4155, %v4218
      %v4220 = vpop.f32.mrf.mxu0
      %v4221 = vadd.f32 %v4157, %v4220
      %4222 = vmatmul.bf16.gmra.mxu0 %v3173
      %v4223 = vpop.f32.mrf.mxu0
      %v4224 = vadd.f32 %v4160, %v4223
      %v4225 = vpop.f32.mrf.mxu0
      %v4226 = vadd.f32 %v4162, %v4225
      %4227 = vmatmul.bf16.gmra.mxu0 %v3176
      %v4228 = vpop.f32.mrf.mxu0
      %v4229 = vadd.f32 %v4165, %v4228
      %v4230 = vpop.f32.mrf.mxu0
      %v4231 = vadd.f32 %v4167, %v4230
      %4232 = vmatmul.bf16.gmra.mxu0 %v3179
      %v4233 = vpop.f32.mrf.mxu0
      %v4234 = vadd.f32 %v4170, %v4233
      %v4235 = vpop.f32.mrf.mxu0
      %v4236 = vadd.f32 %v4172, %v4235
      %4237 = vmatmul.bf16.gmra.mxu0 %v3182
      %v4238 = vpop.f32.mrf.mxu0
      %v4239 = vadd.f32 %v4175, %v4238
      %v4240 = vpop.f32.mrf.mxu0
      %v4241 = vadd.f32 %v4177, %v4240
      %4242 = vmatmul.bf16.gmra.mxu0 %v3185
      %v4243 = vpop.f32.mrf.mxu0
      %v4244 = vadd.f32 %v4180, %v4243
      %v4245 = vpop.f32.mrf.mxu0
      %v4246 = vadd.f32 %v4182, %v4245
      %4247 = vmatmul.bf16.gmra.mxu0 %v3188
      %v4248 = vpop.f32.mrf.mxu0
      %v4249 = vadd.f32 %v4185, %v4248
      %v4250 = vpop.f32.mrf.mxu0
      %v4251 = vadd.f32 %v4187, %v4250
      %4252 = vdwg.mxu0
      %v4253 = vmax.f32 %v3815, 0.0
      %v4254 = vmax.f32 %v4007, 0.0
      %v4255 = vmax.f32 %v4199, 0.0
      %v4256 = vmax.f32 %v3817, 0.0
      %v4257 = vmax.f32 %v4009, 0.0
      %v4258 = vmax.f32 %v4201, 0.0
      %v4259 = vmax.f32 %v3820, 0.0
      %v4260 = vmax.f32 %v4012, 0.0
      %v4261 = vmax.f32 %v4204, 0.0
      %v4262 = vmax.f32 %v3822, 0.0
      %v4263 = vmax.f32 %v4014, 0.0
      %v4264 = vmax.f32 %v4206, 0.0
      %v4265 = vmax.f32 %v3825, 0.0
      %v4266 = vmax.f32 %v4017, 0.0
      %v4267 = vmax.f32 %v4209, 0.0
      %v4268 = vmax.f32 %v3827, 0.0
      %v4269 = vmax.f32 %v4019, 0.0
      %v4270 = vmax.f32 %v4211, 0.0
      %v4271 = vmax.f32 %v3830, 0.0
      %v4272 = vmax.f32 %v4022, 0.0
      %v4273 = vmax.f32 %v4214, 0.0
      %v4274 = vmax.f32 %v3832, 0.0
      %v4275 = vmax.f32 %v4024, 0.0
      %v4276 = vmax.f32 %v4216, 0.0
      %v4277 = vmax.f32 %v3835, 0.0
      %v4278 = vmax.f32 %v4027, 0.0
      %v4279 = vmax.f32 %v4219, 0.0
      %v4280 = vmax.f32 %v3837, 0.0
      %v4281 = vmax.f32 %v4029, 0.0
      %v4282 = vmax.f32 %v4221, 0.0
      %v4283 = vmax.f32 %v3840, 0.0
      %v4284 = vmax.f32 %v4032, 0.0
      %v4285 = vmax.f32 %v4224, 0.0
      %v4286 = vmax.f32 %v3842, 0.0
      %v4287 = vmax.f32 %v4034, 0.0
      %v4288 = vmax.f32 %v4226, 0.0
      %v4289 = vmax.f32 %v3845, 0.0
      %v4290 = vmax.f32 %v4037, 0.0
      %v4291 = vmax.f32 %v4229, 0.0
      %v4292 = vmax.f32 %v3847, 0.0
      %v4293 = vmax.f32 %v4039, 0.0
      %v4294 = vmax.f32 %v4231, 0.0
      %v4295 = vmax.f32 %v3850, 0.0
      %v4296 = vmax.f32 %v4042, 0.0
      %v4297 = vmax.f32 %v4234, 0.0
      %v4298 = vmax.f32 %v3852, 0.0
      %v4299 = vmax.f32 %v4044, 0.0
      %v4300 = vmax.f32 %v4236, 0.0
      %v4301 = vmax.f32 %v3855, 0.0
      %v4302 = vmax.f32 %v4047, 0.0
      %v4303 = vmax.f32 %v4239, 0.0
      %v4304 = vmax.f32 %v3857, 0.0
      %v4305 = vmax.f32 %v4049, 0.0
      %v4306 = vmax.f32 %v4241, 0.0
      %v4307 = vmax.f32 %v3860, 0.0
      %v4308 = vmax.f32 %v4052, 0.0
      %v4309 = vmax.f32 %v4244, 0.0
      %v4310 = vmax.f32 %v3862, 0.0
      %v4311 = vmax.f32 %v4054, 0.0
      %v4312 = vmax.f32 %v4246, 0.0
      %v4313 = vmax.f32 %v3865, 0.0
      %v4314 = vmax.f32 %v4057, 0.0
      %v4315 = vmax.f32 %v4249, 0.0
      %v4316 = vmax.f32 %v3867, 0.0
      %v4317 = vmax.f32 %v4059, 0.0
      %v4318 = vmax.f32 %v4251, 0.0
      %v4319 = vpack.c.bf16 %v4256, %v4253
      %v4320 = vpack.c.bf16 %v4257, %v4254
      %v4321 = vpack.c.bf16 %v4258, %v4255
      %v4322 = vpack.c.bf16 %v4262, %v4259
      %v4323 = vpack.c.bf16 %v4263, %v4260
      %v4324 = vpack.c.bf16 %v4264, %v4261
      %v4325 = vpack.c.bf16 %v4268, %v4265
      %v4326 = vpack.c.bf16 %v4269, %v4266
      %v4327 = vpack.c.bf16 %v4270, %v4267
      %v4328 = vpack.c.bf16 %v4274, %v4271
      %v4329 = vpack.c.bf16 %v4275, %v4272
      %v4330 = vpack.c.bf16 %v4276, %v4273
      %v4331 = vpack.c.bf16 %v4280, %v4277
      %v4332 = vpack.c.bf16 %v4281, %v4278
      %v4333 = vpack.c.bf16 %v4282, %v4279
      %v4334 = vpack.c.bf16 %v4286, %v4283
      %v4335 = vpack.c.bf16 %v4287, %v4284
      %v4336 = vpack.c.bf16 %v4288, %v4285
      %v4337 = vpack.c.bf16 %v4292, %v4289
      %v4338 = vpack.c.bf16 %v4293, %v4290
      %v4339 = vpack.c.bf16 %v4294, %v4291
      %v4340 = vpack.c.bf16 %v4298, %v4295
      %v4341 = vpack.c.bf16 %v4299, %v4296
      %v4342 = vpack.c.bf16 %v4300, %v4297
      %v4343 = vpack.c.bf16 %v4304, %v4301
      %v4344 = vpack.c.bf16 %v4305, %v4302
      %v4345 = vpack.c.bf16 %v4306, %v4303
      %v4346 = vpack.c.bf16 %v4310, %v4307
      %v4347 = vpack.c.bf16 %v4311, %v4308
      %v4348 = vpack.c.bf16 %v4312, %v4309
      %v4349 = vpack.c.bf16 %v4316, %v4313
      %v4350 = vpack.c.bf16 %v4317, %v4314
      %v4351 = vpack.c.bf16 %v4318, %v4315
      %v4352 = vld [vmem:[%s9] sm:$0xff]
      %v4353 = vld [vmem:[%s9 + $0x8] sm:$0xf]
      %v4354 = vld [vmem:[%s9 + $0xc] sm:$0xff]
      %v4355 = vld [vmem:[%s9 + $0x14] sm:$0xf]
      %v4356 = vld [vmem:[%s9 + $0x18] sm:$0xff]
      %v4357 = vld [vmem:[%s9 + $0x20] sm:$0xf]
      %v4358 = vld [vmem:[%s9 + $0x24] sm:$0xff]
      %v4359 = vld [vmem:[%s9 + $0x2c] sm:$0xf]
      %v4360 = vld [vmem:[%s9 + $0x30] sm:$0xff]
      %v4361 = vld [vmem:[%s9 + $0x38] sm:$0xf]
      %v4362 = vld [vmem:[%s9 + $0x3c] sm:$0xff]
      %v4363 = vld [vmem:[%s9 + $0x44] sm:$0xf]
      %v4364 = vld [vmem:[%s9 + $0x48] sm:$0xff]
      %v4365 = vld [vmem:[%s9 + $0x50] sm:$0xf]
      %v4366 = vld [vmem:[%s9 + $0x54] sm:$0xff]
      %v4367 = vld [vmem:[%s9 + $0x5c] sm:$0xf]
      %v4368 = vld [vmem:[%s9 + $0x60] sm:$0xff]
      %v4369 = vld [vmem:[%s9 + $0x68] sm:$0xf]
      %v4370 = vld [vmem:[%s9 + $0x6c] sm:$0xff]
      %v4371 = vld [vmem:[%s9 + $0x74] sm:$0xf]
      %v4372 = vld [vmem:[%s9 + $0x78] sm:$0xff]
      %v4373 = vld [vmem:[%s9 + $0x80] sm:$0xf]
      %v4374 = vld [vmem:[%s9 + $0x84] sm:$0xff]
      %v4375 = vld [vmem:[%s9 + $0x8c] sm:$0xf]
      %v4376 = vld [vmem:[%s9 + $0x90] sm:$0xff]
      %v4377 = vld [vmem:[%s9 + $0x98] sm:$0xf]
      %v4378 = vld [vmem:[%s9 + $0x9c] sm:$0xff]
      %v4379 = vld [vmem:[%s9 + $0xa4] sm:$0xf]
      %v4380 = vld [vmem:[%s9 + $0xa8] sm:$0xff]
      %v4381 = vld [vmem:[%s9 + $0xb0] sm:$0xf]
      %v4382 = vld [vmem:[%s9 + $0xb4] sm:$0xff]
      %v4383 = vld [vmem:[%s9 + $0xbc] sm:$0xf]
      %v4384 = vld [vmem:[%s9 + $0xc0] sm:$0xff]
      %v4385 = vld [vmem:[%s9 + $0xc8] sm:$0xf]
      %v4386 = vld [vmem:[%s9 + $0xcc] sm:$0xff]
      %v4387 = vld [vmem:[%s9 + $0xd4] sm:$0xf]
      %v4388 = vld [vmem:[%s9 + $0xd8] sm:$0xff]
      %v4389 = vld [vmem:[%s9 + $0xe0] sm:$0xf]
      %v4390 = vld [vmem:[%s9 + $0xe4] sm:$0xff]
      %v4391 = vld [vmem:[%s9 + $0xec] sm:$0xf]
      %v4392 = vld [vmem:[%s9 + $0xf0] sm:$0xff]
      %v4393 = vld [vmem:[%s9 + $0xf8] sm:$0xf]
      %v4394 = vld [vmem:[%s9 + $0xfc] sm:$0xff]
      %v4395 = vld [vmem:[%s9 + $0x104] sm:$0xf]
      %v4396 = vld [vmem:[%s9 + $0x108] sm:$0xff]
      %v4397 = vld [vmem:[%s9 + $0x110] sm:$0xf]
      %v4398 = vld [vmem:[%s9 + $0x114] sm:$0xff]
      %v4399 = vld [vmem:[%s9 + $0x11c] sm:$0xf]
      %v4400 = vld [vmem:[%s9 + $0x120] sm:$0xff]
      %v4401 = vld [vmem:[%s9 + $0x128] sm:$0xf]
      %v4402 = vld [vmem:[%s9 + $0x12c] sm:$0xff]
      %v4403 = vld [vmem:[%s9 + $0x134] sm:$0xf]
      %v4404 = vld [vmem:[%s9 + $0x138] sm:$0xff]
      %v4405 = vld [vmem:[%s9 + $0x140] sm:$0xf]
      %v4406 = vld [vmem:[%s9 + $0x144] sm:$0xff]
      %v4407 = vld [vmem:[%s9 + $0x14c] sm:$0xf]
      %v4408 = vld [vmem:[%s9 + $0x150] sm:$0xff]
      %v4409 = vld [vmem:[%s9 + $0x158] sm:$0xf]
      %v4410 = vld [vmem:[%s9 + $0x15c] sm:$0xff]
      %v4411 = vld [vmem:[%s9 + $0x164] sm:$0xf]
      %v4412 = vld [vmem:[%s9 + $0x168] sm:$0xff]
      %v4413 = vld [vmem:[%s9 + $0x170] sm:$0xf]
      %v4414 = vld [vmem:[%s9 + $0x174] sm:$0xff]
      %v4415 = vld [vmem:[%s9 + $0x17c] sm:$0xf]
      %v4416 = vld [vmem:[%s9 + $0x180] sm:$0xff]
      %v4417 = vld [vmem:[%s9 + $0x188] sm:$0xf]
      %v4418 = vld [vmem:[%s9 + $0x18c] sm:$0xff]
      %v4419 = vld [vmem:[%s9 + $0x194] sm:$0xf]
      %v4420 = vld [vmem:[%s9 + $0x198] sm:$0xff]
      %v4421 = vld [vmem:[%s9 + $0x1a0] sm:$0xf]
      %v4422 = vld [vmem:[%s9 + $0x1a4] sm:$0xff]
      %v4423 = vld [vmem:[%s9 + $0x1ac] sm:$0xf]
      %v4424 = vld [vmem:[%s9 + $0x1b0] sm:$0xff]
      %v4425 = vld [vmem:[%s9 + $0x1b8] sm:$0xf]
      %v4426 = vld [vmem:[%s9 + $0x1bc] sm:$0xff]
      %v4427 = vld [vmem:[%s9 + $0x1c4] sm:$0xf]
      %v4428 = vld [vmem:[%s9 + $0x1c8] sm:$0xff]
      %v4429 = vld [vmem:[%s9 + $0x1d0] sm:$0xf]
      %v4430 = vld [vmem:[%s9 + $0x1d4] sm:$0xff]
      %v4431 = vld [vmem:[%s9 + $0x1dc] sm:$0xf]
      %v4432 = vld [vmem:[%s9 + $0x1e0] sm:$0xff]
      %v4433 = vld [vmem:[%s9 + $0x1e8] sm:$0xf]
      %v4434 = vld [vmem:[%s9 + $0x1ec] sm:$0xff]
      %v4435 = vld [vmem:[%s9 + $0x1f4] sm:$0xf]
      %v4436 = vld [vmem:[%s9 + $0x1f8] sm:$0xff]
      %v4437 = vld [vmem:[%s9 + $0x200] sm:$0xf]
      %v4438 = vld [vmem:[%s9 + $0x204] sm:$0xff]
      %v4439 = vld [vmem:[%s9 + $0x20c] sm:$0xf]
      %v4440 = vld [vmem:[%s9 + $0x210] sm:$0xff]
      %v4441 = vld [vmem:[%s9 + $0x218] sm:$0xf]
      %v4442 = vld [vmem:[%s9 + $0x21c] sm:$0xff]
      %v4443 = vld [vmem:[%s9 + $0x224] sm:$0xf]
      %v4444 = vld [vmem:[%s9 + $0x228] sm:$0xff]
      %v4445 = vld [vmem:[%s9 + $0x230] sm:$0xf]
      %v4446 = vld [vmem:[%s9 + $0x234] sm:$0xff]
      %v4447 = vld [vmem:[%s9 + $0x23c] sm:$0xf]
      %v4448 = vld [vmem:[%s10] sm:$0x7]
      %v4450 = vperm.slane %v4448, 0
      %v4451 = vperm.slane %v4448, 1
      %v4452 = vperm.slane %v4448, 2
      %v4552 = vunpack.c.l.b16 %v4352
      %v4553 = vunpack.c.h.b16 %v4352
      %v4554 = vunpack.c.l.b16 %v4353
      %v4555 = vunpack.c.l.b16 %v4354
      %v4556 = vunpack.c.h.b16 %v4354
      %v4557 = vunpack.c.l.b16 %v4355
      %v4558 = vunpack.c.l.b16 %v4356
      %v4559 = vunpack.c.h.b16 %v4356
      %v4560 = vunpack.c.l.b16 %v4357
      %v4561 = vunpack.c.l.b16 %v4358
      %v4562 = vunpack.c.h.b16 %v4358
      %v4563 = vunpack.c.l.b16 %v4359
      %v4564 = vunpack.c.l.b16 %v4360
      %v4565 = vunpack.c.h.b16 %v4360
      %v4566 = vunpack.c.l.b16 %v4361
      %v4567 = vunpack.c.l.b16 %v4362
      %v4568 = vunpack.c.h.b16 %v4362
      %v4569 = vunpack.c.l.b16 %v4363
      %v4570 = vunpack.c.l.b16 %v4364
      %v4571 = vunpack.c.h.b16 %v4364
      %v4572 = vunpack.c.l.b16 %v4365
      %v4573 = vunpack.c.l.b16 %v4366
      %v4574 = vunpack.c.h.b16 %v4366
      %v4575 = vunpack.c.l.b16 %v4367
      %v4576 = vunpack.c.l.b16 %v4368
      %v4577 = vunpack.c.h.b16 %v4368
      %v4578 = vunpack.c.l.b16 %v4369
      %v4579 = vunpack.c.l.b16 %v4370
      %v4580 = vunpack.c.h.b16 %v4370
      %v4581 = vunpack.c.l.b16 %v4371
      %v4582 = vunpack.c.l.b16 %v4372
      %v4583 = vunpack.c.h.b16 %v4372
      %v4584 = vunpack.c.l.b16 %v4373
      %v4585 = vunpack.c.l.b16 %v4374
      %v4586 = vunpack.c.h.b16 %v4374
      %v4587 = vunpack.c.l.b16 %v4375
      %v4588 = vunpack.c.l.b16 %v4376
      %v4589 = vunpack.c.h.b16 %v4376
      %v4590 = vunpack.c.l.b16 %v4377
      %v4591 = vunpack.c.l.b16 %v4378
      %v4592 = vunpack.c.h.b16 %v4378
      %v4593 = vunpack.c.l.b16 %v4379
      %v4594 = vunpack.c.l.b16 %v4380
      %v4595 = vunpack.c.h.b16 %v4380
      %v4596 = vunpack.c.l.b16 %v4381
      %v4597 = vunpack.c.l.b16 %v4382
      %v4598 = vunpack.c.h.b16 %v4382
      %v4599 = vunpack.c.l.b16 %v4383
      %v4600 = vunpack.c.l.b16 %v4384
      %v4601 = vunpack.c.h.b16 %v4384
      %v4602 = vunpack.c.l.b16 %v4385
      %v4603 = vunpack.c.l.b16 %v4386
      %v4604 = vunpack.c.h.b16 %v4386
      %v4605 = vunpack.c.l.b16 %v4387
      %v4606 = vunpack.c.l.b16 %v4388
      %v4607 = vunpack.c.h.b16 %v4388
      %v4608 = vunpack.c.l.b16 %v4389
      %v4609 = vunpack.c.l.b16 %v4390
      %v4610 = vunpack.c.h.b16 %v4390
      %v4611 = vunpack.c.l.b16 %v4391
      %v4612 = vunpack.c.l.b16 %v4392
      %v4613 = vunpack.c.h.b16 %v4392
      %v4614 = vunpack.c.l.b16 %v4393
      %v4615 = vunpack.c.l.b16 %v4394
      %v4616 = vunpack.c.h.b16 %v4394
      %v4617 = vunpack.c.l.b16 %v4395
      %v4618 = vunpack.c.l.b16 %v4396
      %v4619 = vunpack.c.h.b16 %v4396
      %v4620 = vunpack.c.l.b16 %v4397
      %v4621 = vunpack.c.l.b16 %v4398
      %v4622 = vunpack.c.h.b16 %v4398
      %v4623 = vunpack.c.l.b16 %v4399
      %v4624 = vunpack.c.l.b16 %v4400
      %v4625 = vunpack.c.h.b16 %v4400
      %v4626 = vunpack.c.l.b16 %v4401
      %v4627 = vunpack.c.l.b16 %v4402
      %v4628 = vunpack.c.h.b16 %v4402
      %v4629 = vunpack.c.l.b16 %v4403
      %v4630 = vunpack.c.l.b16 %v4404
      %v4631 = vunpack.c.h.b16 %v4404
      %v4632 = vunpack.c.l.b16 %v4405
      %v4633 = vunpack.c.l.b16 %v4406
      %v4634 = vunpack.c.h.b16 %v4406
      %v4635 = vunpack.c.l.b16 %v4407
      %v4636 = vunpack.c.l.b16 %v4408
      %v4637 = vunpack.c.h.b16 %v4408
      %v4638 = vunpack.c.l.b16 %v4409
      %v4639 = vunpack.c.l.b16 %v4410
      %v4640 = vunpack.c.h.b16 %v4410
      %v4641 = vunpack.c.l.b16 %v4411
      %v4642 = vunpack.c.l.b16 %v4412
      %v4643 = vunpack.c.h.b16 %v4412
      %v4644 = vunpack.c.l.b16 %v4413
      %v4645 = vunpack.c.l.b16 %v4414
      %v4646 = vunpack.c.h.b16 %v4414
      %v4647 = vunpack.c.l.b16 %v4415
      %v4648 = vunpack.c.l.b16 %v4416
      %v4649 = vunpack.c.h.b16 %v4416
      %v4650 = vunpack.c.l.b16 %v4417
      %v4651 = vunpack.c.l.b16 %v4418
      %v4652 = vunpack.c.h.b16 %v4418
      %v4653 = vunpack.c.l.b16 %v4419
      %v4654 = vunpack.c.l.b16 %v4420
      %v4655 = vunpack.c.h.b16 %v4420
      %v4656 = vunpack.c.l.b16 %v4421
      %v4657 = vunpack.c.l.b16 %v4422
      %v4658 = vunpack.c.h.b16 %v4422
      %v4659 = vunpack.c.l.b16 %v4423
      %v4660 = vunpack.c.l.b16 %v4424
      %v4661 = vunpack.c.h.b16 %v4424
      %v4662 = vunpack.c.l.b16 %v4425
      %v4663 = vunpack.c.l.b16 %v4426
      %v4664 = vunpack.c.h.b16 %v4426
      %v4665 = vunpack.c.l.b16 %v4427
      %v4666 = vunpack.c.l.b16 %v4428
      %v4667 = vunpack.c.h.b16 %v4428
      %v4668 = vunpack.c.l.b16 %v4429
      %v4669 = vunpack.c.l.b16 %v4430
      %v4670 = vunpack.c.h.b16 %v4430
      %v4671 = vunpack.c.l.b16 %v4431
      %v4672 = vunpack.c.l.b16 %v4432
      %v4673 = vunpack.c.h.b16 %v4432
      %v4674 = vunpack.c.l.b16 %v4433
      %v4675 = vunpack.c.l.b16 %v4434
      %v4676 = vunpack.c.h.b16 %v4434
      %v4677 = vunpack.c.l.b16 %v4435
      %v4678 = vunpack.c.l.b16 %v4436
      %v4679 = vunpack.c.h.b16 %v4436
      %v4680 = vunpack.c.l.b16 %v4437
      %v4681 = vunpack.c.l.b16 %v4438
      %v4682 = vunpack.c.h.b16 %v4438
      %v4683 = vunpack.c.l.b16 %v4439
      %v4684 = vunpack.c.l.b16 %v4440
      %v4685 = vunpack.c.h.b16 %v4440
      %v4686 = vunpack.c.l.b16 %v4441
      %v4687 = vunpack.c.l.b16 %v4442
      %v4688 = vunpack.c.h.b16 %v4442
      %v4689 = vunpack.c.l.b16 %v4443
      %v4690 = vunpack.c.l.b16 %v4444
      %v4691 = vunpack.c.h.b16 %v4444
      %v4692 = vunpack.c.l.b16 %v4445
      %v4693 = vunpack.c.l.b16 %v4446
      %v4694 = vunpack.c.h.b16 %v4446
      %v4695 = vunpack.c.l.b16 %v4447
      %v4696 = vpack.c.b16 %v4555, %v4552
      %v4697 = vpack.c.b16 %v4556, %v4553
      %v4698 = vpack.c.b16 %v4557, %v4554
      %v4699 = vpack.c.b16 %v4561, %v4558
      %v4700 = vpack.c.b16 %v4562, %v4559
      %v4701 = vpack.c.b16 %v4563, %v4560
      %v4702 = vpack.c.b16 %v4567, %v4564
      %v4703 = vpack.c.b16 %v4568, %v4565
      %v4704 = vpack.c.b16 %v4569, %v4566
      %v4705 = vpack.c.b16 %v4573, %v4570
      %v4706 = vpack.c.b16 %v4574, %v4571
      %v4707 = vpack.c.b16 %v4575, %v4572
      %v4708 = vpack.c.b16 %v4579, %v4576
      %v4709 = vpack.c.b16 %v4580, %v4577
      %v4710 = vpack.c.b16 %v4581, %v4578
      %v4711 = vpack.c.b16 %v4585, %v4582
      %v4712 = vpack.c.b16 %v4586, %v4583
      %v4713 = vpack.c.b16 %v4587, %v4584
      %v4714 = vpack.c.b16 %v4591, %v4588
      %v4715 = vpack.c.b16 %v4592, %v4589
      %v4716 = vpack.c.b16 %v4593, %v4590
      %v4717 = vpack.c.b16 %v4597, %v4594
      %v4718 = vpack.c.b16 %v4598, %v4595
      %v4719 = vpack.c.b16 %v4599, %v4596
      %v4720 = vpack.c.b16 %v4603, %v4600
      %v4721 = vpack.c.b16 %v4604, %v4601
      %v4722 = vpack.c.b16 %v4605, %v4602
      %v4723 = vpack.c.b16 %v4609, %v4606
      %v4724 = vpack.c.b16 %v4610, %v4607
      %v4725 = vpack.c.b16 %v4611, %v4608
      %v4726 = vpack.c.b16 %v4615, %v4612
      %v4727 = vpack.c.b16 %v4616, %v4613
      %v4728 = vpack.c.b16 %v4617, %v4614
      %v4729 = vpack.c.b16 %v4621, %v4618
      %v4730 = vpack.c.b16 %v4622, %v4619
      %v4731 = vpack.c.b16 %v4623, %v4620
      %v4732 = vpack.c.b16 %v4627, %v4624
      %v4733 = vpack.c.b16 %v4628, %v4625
      %v4734 = vpack.c.b16 %v4629, %v4626
      %v4735 = vpack.c.b16 %v4633, %v4630
      %v4736 = vpack.c.b16 %v4634, %v4631
      %v4737 = vpack.c.b16 %v4635, %v4632
      %v4738 = vpack.c.b16 %v4639, %v4636
      %v4739 = vpack.c.b16 %v4640, %v4637
      %v4740 = vpack.c.b16 %v4641, %v4638
      %v4741 = vpack.c.b16 %v4645, %v4642
      %v4742 = vpack.c.b16 %v4646, %v4643
      %v4743 = vpack.c.b16 %v4647, %v4644
      %v4744 = vpack.c.b16 %v4651, %v4648
      %v4745 = vpack.c.b16 %v4652, %v4649
      %v4746 = vpack.c.b16 %v4653, %v4650
      %v4747 = vpack.c.b16 %v4657, %v4654
      %v4748 = vpack.c.b16 %v4658, %v4655
      %v4749 = vpack.c.b16 %v4659, %v4656
      %v4750 = vpack.c.b16 %v4663, %v4660
      %v4751 = vpack.c.b16 %v4664, %v4661
      %v4752 = vpack.c.b16 %v4665, %v4662
      %v4753 = vpack.c.b16 %v4669, %v4666
      %v4754 = vpack.c.b16 %v4670, %v4667
      %v4755 = vpack.c.b16 %v4671, %v4668
      %v4756 = vpack.c.b16 %v4675, %v4672
      %v4757 = vpack.c.b16 %v4676, %v4673
      %v4758 = vpack.c.b16 %v4677, %v4674
      %v4759 = vpack.c.b16 %v4681, %v4678
      %v4760 = vpack.c.b16 %v4682, %v4679
      %v4761 = vpack.c.b16 %v4683, %v4680
      %v4762 = vpack.c.b16 %v4687, %v4684
      %v4763 = vpack.c.b16 %v4688, %v4685
      %v4764 = vpack.c.b16 %v4689, %v4686
      %v4765 = vpack.c.b16 %v4693, %v4690
      %v4766 = vpack.c.b16 %v4694, %v4691
      %v4767 = vpack.c.b16 %v4695, %v4692
      %4840 = vmatpush.bf16.msra.mxu0 %v4717
      %4841 = vmatpush.bf16.msra.mxu0 %v4714
      %4842 = vmatpush.bf16.msra.mxu0 %v4711
      %4843 = vmatpush.bf16.msra.mxu0 %v4708
      %4844 = vmatpush.bf16.msra.mxu0 %v4705
      %4845 = vmatpush.bf16.msra.mxu0 %v4702
      %4846 = vmatpush.bf16.msra.mxu0 %v4699
      %4847 = vmatpush.bf16.msra.mxu0 %v4696
      %4848 = vmatmul.bf16.gmra.mxu0 %v4319
      %v4849 = vpop.f32.mrf.mxu0
      %v4850 = vadd.f32 %v4450, %v4849
      %v4851 = vpop.f32.mrf.mxu0
      %v4852 = vadd.f32 %v4450, %v4851
      %4853 = vmatmul.bf16.gmra.mxu0 %v4322
      %v4854 = vpop.f32.mrf.mxu0
      %v4855 = vadd.f32 %v4450, %v4854
      %v4856 = vpop.f32.mrf.mxu0
      %v4857 = vadd.f32 %v4450, %v4856
      %4858 = vmatmul.bf16.gmra.mxu0 %v4325
      %v4859 = vpop.f32.mrf.mxu0
      %v4860 = vadd.f32 %v4450, %v4859
      %v4861 = vpop.f32.mrf.mxu0
      %v4862 = vadd.f32 %v4450, %v4861
      %4863 = vmatmul.bf16.gmra.mxu0 %v4328
      %v4864 = vpop.f32.mrf.mxu0
      %v4865 = vadd.f32 %v4450, %v4864
      %v4866 = vpop.f32.mrf.mxu0
      %v4867 = vadd.f32 %v4450, %v4866
      %4868 = vmatmul.bf16.gmra.mxu0 %v4331
      %v4869 = vpop.f32.mrf.mxu0
      %v4870 = vadd.f32 %v4450, %v4869
      %v4871 = vpop.f32.mrf.mxu0
      %v4872 = vadd.f32 %v4450, %v4871
      %4873 = vmatmul.bf16.gmra.mxu0 %v4334
      %v4874 = vpop.f32.mrf.mxu0
      %v4875 = vadd.f32 %v4450, %v4874
      %v4876 = vpop.f32.mrf.mxu0
      %v4877 = vadd.f32 %v4450, %v4876
      %4878 = vmatmul.bf16.gmra.mxu0 %v4337
      %v4879 = vpop.f32.mrf.mxu0
      %v4880 = vadd.f32 %v4450, %v4879
      %v4881 = vpop.f32.mrf.mxu0
      %v4882 = vadd.f32 %v4450, %v4881
      %4883 = vmatmul.bf16.gmra.mxu0 %v4340
      %v4884 = vpop.f32.mrf.mxu0
      %v4885 = vadd.f32 %v4450, %v4884
      %v4886 = vpop.f32.mrf.mxu0
      %v4887 = vadd.f32 %v4450, %v4886
      %4888 = vmatmul.bf16.gmra.mxu0 %v4343
      %v4889 = vpop.f32.mrf.mxu0
      %v4890 = vadd.f32 %v4450, %v4889
      %v4891 = vpop.f32.mrf.mxu0
      %v4892 = vadd.f32 %v4450, %v4891
      %4893 = vmatmul.bf16.gmra.mxu0 %v4346
      %v4894 = vpop.f32.mrf.mxu0
      %v4895 = vadd.f32 %v4450, %v4894
      %v4896 = vpop.f32.mrf.mxu0
      %v4897 = vadd.f32 %v4450, %v4896
      %4898 = vmatmul.bf16.gmra.mxu0 %v4349
      %v4899 = vpop.f32.mrf.mxu0
      %v4900 = vadd.f32 %v4450, %v4899
      %v4901 = vpop.f32.mrf.mxu0
      %v4902 = vadd.f32 %v4450, %v4901
      %4903 = vdwg.mxu0
      %4904 = vmatpush.bf16.msra.mxu0 %v4741
      %4905 = vmatpush.bf16.msra.mxu0 %v4738
      %4906 = vmatpush.bf16.msra.mxu0 %v4735
      %4907 = vmatpush.bf16.msra.mxu0 %v4732
      %4908 = vmatpush.bf16.msra.mxu0 %v4729
      %4909 = vmatpush.bf16.msra.mxu0 %v4726
      %4910 = vmatpush.bf16.msra.mxu0 %v4723
      %4911 = vmatpush.bf16.msra.mxu0 %v4720
      %4912 = vmatmul.bf16.gmra.mxu0 %v4320
      %v4913 = vpop.f32.mrf.mxu0
      %v4914 = vadd.f32 %v4850, %v4913
      %v4915 = vpop.f32.mrf.mxu0
      %v4916 = vadd.f32 %v4852, %v4915
      %4917 = vmatmul.bf16.gmra.mxu0 %v4323
      %v4918 = vpop.f32.mrf.mxu0
      %v4919 = vadd.f32 %v4855, %v4918
      %v4920 = vpop.f32.mrf.mxu0
      %v4921 = vadd.f32 %v4857, %v4920
      %4922 = vmatmul.bf16.gmra.mxu0 %v4326
      %v4923 = vpop.f32.mrf.mxu0
      %v4924 = vadd.f32 %v4860, %v4923
      %v4925 = vpop.f32.mrf.mxu0
      %v4926 = vadd.f32 %v4862, %v4925
      %4927 = vmatmul.bf16.gmra.mxu0 %v4329
      %v4928 = vpop.f32.mrf.mxu0
      %v4929 = vadd.f32 %v4865, %v4928
      %v4930 = vpop.f32.mrf.mxu0
      %v4931 = vadd.f32 %v4867, %v4930
      %4932 = vmatmul.bf16.gmra.mxu0 %v4332
      %v4933 = vpop.f32.mrf.mxu0
      %v4934 = vadd.f32 %v4870, %v4933
      %v4935 = vpop.f32.mrf.mxu0
      %v4936 = vadd.f32 %v4872, %v4935
      %4937 = vmatmul.bf16.gmra.mxu0 %v4335
      %v4938 = vpop.f32.mrf.mxu0
      %v4939 = vadd.f32 %v4875, %v4938
      %v4940 = vpop.f32.mrf.mxu0
      %v4941 = vadd.f32 %v4877, %v4940
      %4942 = vmatmul.bf16.gmra.mxu0 %v4338
      %v4943 = vpop.f32.mrf.mxu0
      %v4944 = vadd.f32 %v4880, %v4943
      %v4945 = vpop.f32.mrf.mxu0
      %v4946 = vadd.f32 %v4882, %v4945
      %4947 = vmatmul.bf16.gmra.mxu0 %v4341
      %v4948 = vpop.f32.mrf.mxu0
      %v4949 = vadd.f32 %v4885, %v4948
      %v4950 = vpop.f32.mrf.mxu0
      %v4951 = vadd.f32 %v4887, %v4950
      %4952 = vmatmul.bf16.gmra.mxu0 %v4344
      %v4953 = vpop.f32.mrf.mxu0
      %v4954 = vadd.f32 %v4890, %v4953
      %v4955 = vpop.f32.mrf.mxu0
      %v4956 = vadd.f32 %v4892, %v4955
      %4957 = vmatmul.bf16.gmra.mxu0 %v4347
      %v4958 = vpop.f32.mrf.mxu0
      %v4959 = vadd.f32 %v4895, %v4958
      %v4960 = vpop.f32.mrf.mxu0
      %v4961 = vadd.f32 %v4897, %v4960
      %4962 = vmatmul.bf16.gmra.mxu0 %v4350
      %v4963 = vpop.f32.mrf.mxu0
      %v4964 = vadd.f32 %v4900, %v4963
      %v4965 = vpop.f32.mrf.mxu0
      %v4966 = vadd.f32 %v4902, %v4965
      %4967 = vdwg.mxu0
      %4968 = vmatpush.bf16.msra.mxu0 %v4765
      %4969 = vmatpush.bf16.msra.mxu0 %v4762
      %4970 = vmatpush.bf16.msra.mxu0 %v4759
      %4971 = vmatpush.bf16.msra.mxu0 %v4756
      %4972 = vmatpush.bf16.msra.mxu0 %v4753
      %4973 = vmatpush.bf16.msra.mxu0 %v4750
      %4974 = vmatpush.bf16.msra.mxu0 %v4747
      %4975 = vmatpush.bf16.msra.mxu0 %v4744
      %4976 = vmatmul.bf16.gmra.mxu0 %v4321
      %v4977 = vpop.f32.mrf.mxu0
      %v4978 = vadd.f32 %v4914, %v4977
      %v4979 = vpop.f32.mrf.mxu0
      %v4980 = vadd.f32 %v4916, %v4979
      %4981 = vmatmul.bf16.gmra.mxu0 %v4324
      %v4982 = vpop.f32.mrf.mxu0
      %v4983 = vadd.f32 %v4919, %v4982
      %v4984 = vpop.f32.mrf.mxu0
      %v4985 = vadd.f32 %v4921, %v4984
      %4986 = vmatmul.bf16.gmra.mxu0 %v4327
      %v4987 = vpop.f32.mrf.mxu0
      %v4988 = vadd.f32 %v4924, %v4987
      %v4989 = vpop.f32.mrf.mxu0
      %v4990 = vadd.f32 %v4926, %v4989
      %4991 = vmatmul.bf16.gmra.mxu0 %v4330
      %v4992 = vpop.f32.mrf.mxu0
      %v4993 = vadd.f32 %v4929, %v4992
      %v4994 = vpop.f32.mrf.mxu0
      %v4995 = vadd.f32 %v4931, %v4994
      %4996 = vmatmul.bf16.gmra.mxu0 %v4333
      %v4997 = vpop.f32.mrf.mxu0
      %v4998 = vadd.f32 %v4934, %v4997
      %v4999 = vpop.f32.mrf.mxu0
      %v5000 = vadd.f32 %v4936, %v4999
      %5001 = vmatmul.bf16.gmra.mxu0 %v4336
      %v5002 = vpop.f32.mrf.mxu0
      %v5003 = vadd.f32 %v4939, %v5002
      %v5004 = vpop.f32.mrf.mxu0
      %v5005 = vadd.f32 %v4941, %v5004
      %5006 = vmatmul.bf16.gmra.mxu0 %v4339
      %v5007 = vpop.f32.mrf.mxu0
      %v5008 = vadd.f32 %v4944, %v5007
      %v5009 = vpop.f32.mrf.mxu0
      %v5010 = vadd.f32 %v4946, %v5009
      %5011 = vmatmul.bf16.gmra.mxu0 %v4342
      %v5012 = vpop.f32.mrf.mxu0
      %v5013 = vadd.f32 %v4949, %v5012
      %v5014 = vpop.f32.mrf.mxu0
      %v5015 = vadd.f32 %v4951, %v5014
      %5016 = vmatmul.bf16.gmra.mxu0 %v4345
      %v5017 = vpop.f32.mrf.mxu0
      %v5018 = vadd.f32 %v4954, %v5017
      %v5019 = vpop.f32.mrf.mxu0
      %v5020 = vadd.f32 %v4956, %v5019
      %5021 = vmatmul.bf16.gmra.mxu0 %v4348
      %v5022 = vpop.f32.mrf.mxu0
      %v5023 = vadd.f32 %v4959, %v5022
      %v5024 = vpop.f32.mrf.mxu0
      %v5025 = vadd.f32 %v4961, %v5024
      %5026 = vmatmul.bf16.gmra.mxu0 %v4351
      %v5027 = vpop.f32.mrf.mxu0
      %v5028 = vadd.f32 %v4964, %v5027
      %v5029 = vpop.f32.mrf.mxu0
      %v5030 = vadd.f32 %v4966, %v5029
      %5031 = vdwg.mxu0
      %5032 = vmatpush.bf16.msra.mxu0 %v4718
      %5033 = vmatpush.bf16.msra.mxu0 %v4715
      %5034 = vmatpush.bf16.msra.mxu0 %v4712
      %5035 = vmatpush.bf16.msra.mxu0 %v4709
      %5036 = vmatpush.bf16.msra.mxu0 %v4706
      %5037 = vmatpush.bf16.msra.mxu0 %v4703
      %5038 = vmatpush.bf16.msra.mxu0 %v4700
      %5039 = vmatpush.bf16.msra.mxu0 %v4697
      %5040 = vmatmul.bf16.gmra.mxu0 %v4319
      %v5041 = vpop.f32.mrf.mxu0
      %v5042 = vadd.f32 %v4451, %v5041
      %v5043 = vpop.f32.mrf.mxu0
      %v5044 = vadd.f32 %v4451, %v5043
      %5045 = vmatmul.bf16.gmra.mxu0 %v4322
      %v5046 = vpop.f32.mrf.mxu0
      %v5047 = vadd.f32 %v4451, %v5046
      %v5048 = vpop.f32.mrf.mxu0
      %v5049 = vadd.f32 %v4451, %v5048
      %5050 = vmatmul.bf16.gmra.mxu0 %v4325
      %v5051 = vpop.f32.mrf.mxu0
      %v5052 = vadd.f32 %v4451, %v5051
      %v5053 = vpop.f32.mrf.mxu0
      %v5054 = vadd.f32 %v4451, %v5053
      %5055 = vmatmul.bf16.gmra.mxu0 %v4328
      %v5056 = vpop.f32.mrf.mxu0
      %v5057 = vadd.f32 %v4451, %v5056
      %v5058 = vpop.f32.mrf.mxu0
      %v5059 = vadd.f32 %v4451, %v5058
      %5060 = vmatmul.bf16.gmra.mxu0 %v4331
      %v5061 = vpop.f32.mrf.mxu0
      %v5062 = vadd.f32 %v4451, %v5061
      %v5063 = vpop.f32.mrf.mxu0
      %v5064 = vadd.f32 %v4451, %v5063
      %5065 = vmatmul.bf16.gmra.mxu0 %v4334
      %v5066 = vpop.f32.mrf.mxu0
      %v5067 = vadd.f32 %v4451, %v5066
      %v5068 = vpop.f32.mrf.mxu0
      %v5069 = vadd.f32 %v4451, %v5068
      %5070 = vmatmul.bf16.gmra.mxu0 %v4337
      %v5071 = vpop.f32.mrf.mxu0
      %v5072 = vadd.f32 %v4451, %v5071
      %v5073 = vpop.f32.mrf.mxu0
      %v5074 = vadd.f32 %v4451, %v5073
      %5075 = vmatmul.bf16.gmra.mxu0 %v4340
      %v5076 = vpop.f32.mrf.mxu0
      %v5077 = vadd.f32 %v4451, %v5076
      %v5078 = vpop.f32.mrf.mxu0
      %v5079 = vadd.f32 %v4451, %v5078
      %5080 = vmatmul.bf16.gmra.mxu0 %v4343
      %v5081 = vpop.f32.mrf.mxu0
      %v5082 = vadd.f32 %v4451, %v5081
      %v5083 = vpop.f32.mrf.mxu0
      %v5084 = vadd.f32 %v4451, %v5083
      %5085 = vmatmul.bf16.gmra.mxu0 %v4346
      %v5086 = vpop.f32.mrf.mxu0
      %v5087 = vadd.f32 %v4451, %v5086
      %v5088 = vpop.f32.mrf.mxu0
      %v5089 = vadd.f32 %v4451, %v5088
      %5090 = vmatmul.bf16.gmra.mxu0 %v4349
      %v5091 = vpop.f32.mrf.mxu0
      %v5092 = vadd.f32 %v4451, %v5091
      %v5093 = vpop.f32.mrf.mxu0
      %v5094 = vadd.f32 %v4451, %v5093
      %5095 = vdwg.mxu0
      %5096 = vmatpush.bf16.msra.mxu0 %v4742
      %5097 = vmatpush.bf16.msra.mxu0 %v4739
      %5098 = vmatpush.bf16.msra.mxu0 %v4736
      %5099 = vmatpush.bf16.msra.mxu0 %v4733
      %5100 = vmatpush.bf16.msra.mxu0 %v4730
      %5101 = vmatpush.bf16.msra.mxu0 %v4727
      %5102 = vmatpush.bf16.msra.mxu0 %v4724
      %5103 = vmatpush.bf16.msra.mxu0 %v4721
      %5104 = vmatmul.bf16.gmra.mxu0 %v4320
      %v5105 = vpop.f32.mrf.mxu0
      %v5106 = vadd.f32 %v5042, %v5105
      %v5107 = vpop.f32.mrf.mxu0
      %v5108 = vadd.f32 %v5044, %v5107
      %5109 = vmatmul.bf16.gmra.mxu0 %v4323
      %v5110 = vpop.f32.mrf.mxu0
      %v5111 = vadd.f32 %v5047, %v5110
      %v5112 = vpop.f32.mrf.mxu0
      %v5113 = vadd.f32 %v5049, %v5112
      %5114 = vmatmul.bf16.gmra.mxu0 %v4326
      %v5115 = vpop.f32.mrf.mxu0
      %v5116 = vadd.f32 %v5052, %v5115
      %v5117 = vpop.f32.mrf.mxu0
      %v5118 = vadd.f32 %v5054, %v5117
      %5119 = vmatmul.bf16.gmra.mxu0 %v4329
      %v5120 = vpop.f32.mrf.mxu0
      %v5121 = vadd.f32 %v5057, %v5120
      %v5122 = vpop.f32.mrf.mxu0
      %v5123 = vadd.f32 %v5059, %v5122
      %5124 = vmatmul.bf16.gmra.mxu0 %v4332
      %v5125 = vpop.f32.mrf.mxu0
      %v5126 = vadd.f32 %v5062, %v5125
      %v5127 = vpop.f32.mrf.mxu0
      %v5128 = vadd.f32 %v5064, %v5127
      %5129 = vmatmul.bf16.gmra.mxu0 %v4335
      %v5130 = vpop.f32.mrf.mxu0
      %v5131 = vadd.f32 %v5067, %v5130
      %v5132 = vpop.f32.mrf.mxu0
      %v5133 = vadd.f32 %v5069, %v5132
      %5134 = vmatmul.bf16.gmra.mxu0 %v4338
      %v5135 = vpop.f32.mrf.mxu0
      %v5136 = vadd.f32 %v5072, %v5135
      %v5137 = vpop.f32.mrf.mxu0
      %v5138 = vadd.f32 %v5074, %v5137
      %5139 = vmatmul.bf16.gmra.mxu0 %v4341
      %v5140 = vpop.f32.mrf.mxu0
      %v5141 = vadd.f32 %v5077, %v5140
      %v5142 = vpop.f32.mrf.mxu0
      %v5143 = vadd.f32 %v5079, %v5142
      %5144 = vmatmul.bf16.gmra.mxu0 %v4344
      %v5145 = vpop.f32.mrf.mxu0
      %v5146 = vadd.f32 %v5082, %v5145
      %v5147 = vpop.f32.mrf.mxu0
      %v5148 = vadd.f32 %v5084, %v5147
      %5149 = vmatmul.bf16.gmra.mxu0 %v4347
      %v5150 = vpop.f32.mrf.mxu0
      %v5151 = vadd.f32 %v5087, %v5150
      %v5152 = vpop.f32.mrf.mxu0
      %v5153 = vadd.f32 %v5089, %v5152
      %5154 = vmatmul.bf16.gmra.mxu0 %v4350
      %v5155 = vpop.f32.mrf.mxu0
      %v5156 = vadd.f32 %v5092, %v5155
      %v5157 = vpop.f32.mrf.mxu0
      %v5158 = vadd.f32 %v5094, %v5157
      %5159 = vdwg.mxu0
      %5160 = vmatpush.bf16.msra.mxu0 %v4766
      %5161 = vmatpush.bf16.msra.mxu0 %v4763
      %5162 = vmatpush.bf16.msra.mxu0 %v4760
      %5163 = vmatpush.bf16.msra.mxu0 %v4757
      %5164 = vmatpush.bf16.msra.mxu0 %v4754
      %5165 = vmatpush.bf16.msra.mxu0 %v4751
      %5166 = vmatpush.bf16.msra.mxu0 %v4748
      %5167 = vmatpush.bf16.msra.mxu0 %v4745
      %5168 = vmatmul.bf16.gmra.mxu0 %v4321
      %v5169 = vpop.f32.mrf.mxu0
      %v5170 = vadd.f32 %v5106, %v5169
      %v5171 = vpop.f32.mrf.mxu0
      %v5172 = vadd.f32 %v5108, %v5171
      %5173 = vmatmul.bf16.gmra.mxu0 %v4324
      %v5174 = vpop.f32.mrf.mxu0
      %v5175 = vadd.f32 %v5111, %v5174
      %v5176 = vpop.f32.mrf.mxu0
      %v5177 = vadd.f32 %v5113, %v5176
      %5178 = vmatmul.bf16.gmra.mxu0 %v4327
      %v5179 = vpop.f32.mrf.mxu0
      %v5180 = vadd.f32 %v5116, %v5179
      %v5181 = vpop.f32.mrf.mxu0
      %v5182 = vadd.f32 %v5118, %v5181
      %5183 = vmatmul.bf16.gmra.mxu0 %v4330
      %v5184 = vpop.f32.mrf.mxu0
      %v5185 = vadd.f32 %v5121, %v5184
      %v5186 = vpop.f32.mrf.mxu0
      %v5187 = vadd.f32 %v5123, %v5186
      %5188 = vmatmul.bf16.gmra.mxu0 %v4333
      %v5189 = vpop.f32.mrf.mxu0
      %v5190 = vadd.f32 %v5126, %v5189
      %v5191 = vpop.f32.mrf.mxu0
      %v5192 = vadd.f32 %v5128, %v5191
      %5193 = vmatmul.bf16.gmra.mxu0 %v4336
      %v5194 = vpop.f32.mrf.mxu0
      %v5195 = vadd.f32 %v5131, %v5194
      %v5196 = vpop.f32.mrf.mxu0
      %v5197 = vadd.f32 %v5133, %v5196
      %5198 = vmatmul.bf16.gmra.mxu0 %v4339
      %v5199 = vpop.f32.mrf.mxu0
      %v5200 = vadd.f32 %v5136, %v5199
      %v5201 = vpop.f32.mrf.mxu0
      %v5202 = vadd.f32 %v5138, %v5201
      %5203 = vmatmul.bf16.gmra.mxu0 %v4342
      %v5204 = vpop.f32.mrf.mxu0
      %v5205 = vadd.f32 %v5141, %v5204
      %v5206 = vpop.f32.mrf.mxu0
      %v5207 = vadd.f32 %v5143, %v5206
      %5208 = vmatmul.bf16.gmra.mxu0 %v4345
      %v5209 = vpop.f32.mrf.mxu0
      %v5210 = vadd.f32 %v5146, %v5209
      %v5211 = vpop.f32.mrf.mxu0
      %v5212 = vadd.f32 %v5148, %v5211
      %5213 = vmatmul.bf16.gmra.mxu0 %v4348
      %v5214 = vpop.f32.mrf.mxu0
      %v5215 = vadd.f32 %v5151, %v5214
      %v5216 = vpop.f32.mrf.mxu0
      %v5217 = vadd.f32 %v5153, %v5216
      %5218 = vmatmul.bf16.gmra.mxu0 %v4351
      %v5219 = vpop.f32.mrf.mxu0
      %v5220 = vadd.f32 %v5156, %v5219
      %v5221 = vpop.f32.mrf.mxu0
      %v5222 = vadd.f32 %v5158, %v5221
      %5223 = vdwg.mxu0
      %5224 = vmatpush.bf16.msra.mxu0 %v4719
      %5225 = vmatpush.bf16.msra.mxu0 %v4716
      %5226 = vmatpush.bf16.msra.mxu0 %v4713
      %5227 = vmatpush.bf16.msra.mxu0 %v4710
      %5228 = vmatpush.bf16.msra.mxu0 %v4707
      %5229 = vmatpush.bf16.msra.mxu0 %v4704
      %5230 = vmatpush.bf16.msra.mxu0 %v4701
      %5231 = vmatpush.bf16.msra.mxu0 %v4698
      %5232 = vmatmul.bf16.gmra.mxu0 %v4319
      %v5233 = vpop.f32.mrf.mxu0
      %v5234 = vadd.f32 %v4452, %v5233
      %v5235 = vpop.f32.mrf.mxu0
      %v5236 = vadd.f32 %v4452, %v5235
      %5237 = vmatmul.bf16.gmra.mxu0 %v4322
      %v5238 = vpop.f32.mrf.mxu0
      %v5239 = vadd.f32 %v4452, %v5238
      %v5240 = vpop.f32.mrf.mxu0
      %v5241 = vadd.f32 %v4452, %v5240
      %5242 = vmatmul.bf16.gmra.mxu0 %v4325
      %v5243 = vpop.f32.mrf.mxu0
      %v5244 = vadd.f32 %v4452, %v5243
      %v5245 = vpop.f32.mrf.mxu0
      %v5246 = vadd.f32 %v4452, %v5245
      %5247 = vmatmul.bf16.gmra.mxu0 %v4328
      %v5248 = vpop.f32.mrf.mxu0
      %v5249 = vadd.f32 %v4452, %v5248
      %v5250 = vpop.f32.mrf.mxu0
      %v5251 = vadd.f32 %v4452, %v5250
      %5252 = vmatmul.bf16.gmra.mxu0 %v4331
      %v5253 = vpop.f32.mrf.mxu0
      %v5254 = vadd.f32 %v4452, %v5253
      %v5255 = vpop.f32.mrf.mxu0
      %v5256 = vadd.f32 %v4452, %v5255
      %5257 = vmatmul.bf16.gmra.mxu0 %v4334
      %v5258 = vpop.f32.mrf.mxu0
      %v5259 = vadd.f32 %v4452, %v5258
      %v5260 = vpop.f32.mrf.mxu0
      %v5261 = vadd.f32 %v4452, %v5260
      %5262 = vmatmul.bf16.gmra.mxu0 %v4337
      %v5263 = vpop.f32.mrf.mxu0
      %v5264 = vadd.f32 %v4452, %v5263
      %v5265 = vpop.f32.mrf.mxu0
      %v5266 = vadd.f32 %v4452, %v5265
      %5267 = vmatmul.bf16.gmra.mxu0 %v4340
      %v5268 = vpop.f32.mrf.mxu0
      %v5269 = vadd.f32 %v4452, %v5268
      %v5270 = vpop.f32.mrf.mxu0
      %v5271 = vadd.f32 %v4452, %v5270
      %5272 = vmatmul.bf16.gmra.mxu0 %v4343
      %v5273 = vpop.f32.mrf.mxu0
      %v5274 = vadd.f32 %v4452, %v5273
      %v5275 = vpop.f32.mrf.mxu0
      %v5276 = vadd.f32 %v4452, %v5275
      %5277 = vmatmul.bf16.gmra.mxu0 %v4346
      %v5278 = vpop.f32.mrf.mxu0
      %v5279 = vadd.f32 %v4452, %v5278
      %v5280 = vpop.f32.mrf.mxu0
      %v5281 = vadd.f32 %v4452, %v5280
      %5282 = vmatmul.bf16.gmra.mxu0 %v4349
      %v5283 = vpop.f32.mrf.mxu0
      %v5284 = vadd.f32 %v4452, %v5283
      %v5285 = vpop.f32.mrf.mxu0
      %v5286 = vadd.f32 %v4452, %v5285
      %5287 = vdwg.mxu0
      %5288 = vmatpush.bf16.msra.mxu0 %v4743
      %5289 = vmatpush.bf16.msra.mxu0 %v4740
      %5290 = vmatpush.bf16.msra.mxu0 %v4737
      %5291 = vmatpush.bf16.msra.mxu0 %v4734
      %5292 = vmatpush.bf16.msra.mxu0 %v4731
      %5293 = vmatpush.bf16.msra.mxu0 %v4728
      %5294 = vmatpush.bf16.msra.mxu0 %v4725
      %5295 = vmatpush.bf16.msra.mxu0 %v4722
      %5296 = vmatmul.bf16.gmra.mxu0 %v4320
      %v5297 = vpop.f32.mrf.mxu0
      %v5298 = vadd.f32 %v5234, %v5297
      %v5299 = vpop.f32.mrf.mxu0
      %v5300 = vadd.f32 %v5236, %v5299
      %5301 = vmatmul.bf16.gmra.mxu0 %v4323
      %v5302 = vpop.f32.mrf.mxu0
      %v5303 = vadd.f32 %v5239, %v5302
      %v5304 = vpop.f32.mrf.mxu0
      %v5305 = vadd.f32 %v5241, %v5304
      %5306 = vmatmul.bf16.gmra.mxu0 %v4326
      %v5307 = vpop.f32.mrf.mxu0
      %v5308 = vadd.f32 %v5244, %v5307
      %v5309 = vpop.f32.mrf.mxu0
      %v5310 = vadd.f32 %v5246, %v5309
      %5311 = vmatmul.bf16.gmra.mxu0 %v4329
      %v5312 = vpop.f32.mrf.mxu0
      %v5313 = vadd.f32 %v5249, %v5312
      %v5314 = vpop.f32.mrf.mxu0
      %v5315 = vadd.f32 %v5251, %v5314
      %5316 = vmatmul.bf16.gmra.mxu0 %v4332
      %v5317 = vpop.f32.mrf.mxu0
      %v5318 = vadd.f32 %v5254, %v5317
      %v5319 = vpop.f32.mrf.mxu0
      %v5320 = vadd.f32 %v5256, %v5319
      %5321 = vmatmul.bf16.gmra.mxu0 %v4335
      %v5322 = vpop.f32.mrf.mxu0
      %v5323 = vadd.f32 %v5259, %v5322
      %v5324 = vpop.f32.mrf.mxu0
      %v5325 = vadd.f32 %v5261, %v5324
      %5326 = vmatmul.bf16.gmra.mxu0 %v4338
      %v5327 = vpop.f32.mrf.mxu0
      %v5328 = vadd.f32 %v5264, %v5327
      %v5329 = vpop.f32.mrf.mxu0
      %v5330 = vadd.f32 %v5266, %v5329
      %5331 = vmatmul.bf16.gmra.mxu0 %v4341
      %v5332 = vpop.f32.mrf.mxu0
      %v5333 = vadd.f32 %v5269, %v5332
      %v5334 = vpop.f32.mrf.mxu0
      %v5335 = vadd.f32 %v5271, %v5334
      %5336 = vmatmul.bf16.gmra.mxu0 %v4344
      %v5337 = vpop.f32.mrf.mxu0
      %v5338 = vadd.f32 %v5274, %v5337
      %v5339 = vpop.f32.mrf.mxu0
      %v5340 = vadd.f32 %v5276, %v5339
      %5341 = vmatmul.bf16.gmra.mxu0 %v4347
      %v5342 = vpop.f32.mrf.mxu0
      %v5343 = vadd.f32 %v5279, %v5342
      %v5344 = vpop.f32.mrf.mxu0
      %v5345 = vadd.f32 %v5281, %v5344
      %5346 = vmatmul.bf16.gmra.mxu0 %v4350
      %v5347 = vpop.f32.mrf.mxu0
      %v5348 = vadd.f32 %v5284, %v5347
      %v5349 = vpop.f32.mrf.mxu0
      %v5350 = vadd.f32 %v5286, %v5349
      %5351 = vdwg.mxu0
      %5352 = vmatpush.bf16.msra.mxu0 %v4767
      %5353 = vmatpush.bf16.msra.mxu0 %v4764
      %5354 = vmatpush.bf16.msra.mxu0 %v4761
      %5355 = vmatpush.bf16.msra.mxu0 %v4758
      %5356 = vmatpush.bf16.msra.mxu0 %v4755
      %5357 = vmatpush.bf16.msra.mxu0 %v4752
      %5358 = vmatpush.bf16.msra.mxu0 %v4749
      %5359 = vmatpush.bf16.msra.mxu0 %v4746
      %5360 = vmatmul.bf16.gmra.mxu0 %v4321
      %v5361 = vpop.f32.mrf.mxu0
      %v5362 = vadd.f32 %v5298, %v5361
      %v5363 = vpop.f32.mrf.mxu0
      %v5364 = vadd.f32 %v5300, %v5363
      %5365 = vmatmul.bf16.gmra.mxu0 %v4324
      %v5366 = vpop.f32.mrf.mxu0
      %v5367 = vadd.f32 %v5303, %v5366
      %v5368 = vpop.f32.mrf.mxu0
      %v5369 = vadd.f32 %v5305, %v5368
      %5370 = vmatmul.bf16.gmra.mxu0 %v4327
      %v5371 = vpop.f32.mrf.mxu0
      %v5372 = vadd.f32 %v5308, %v5371
      %v5373 = vpop.f32.mrf.mxu0
      %v5374 = vadd.f32 %v5310, %v5373
      %5375 = vmatmul.bf16.gmra.mxu0 %v4330
      %v5376 = vpop.f32.mrf.mxu0
      %v5377 = vadd.f32 %v5313, %v5376
      %v5378 = vpop.f32.mrf.mxu0
      %v5379 = vadd.f32 %v5315, %v5378
      %5380 = vmatmul.bf16.gmra.mxu0 %v4333
      %v5381 = vpop.f32.mrf.mxu0
      %v5382 = vadd.f32 %v5318, %v5381
      %v5383 = vpop.f32.mrf.mxu0
      %v5384 = vadd.f32 %v5320, %v5383
      %5385 = vmatmul.bf16.gmra.mxu0 %v4336
      %v5386 = vpop.f32.mrf.mxu0
      %v5387 = vadd.f32 %v5323, %v5386
      %v5388 = vpop.f32.mrf.mxu0
      %v5389 = vadd.f32 %v5325, %v5388
      %5390 = vmatmul.bf16.gmra.mxu0 %v4339
      %v5391 = vpop.f32.mrf.mxu0
      %v5392 = vadd.f32 %v5328, %v5391
      %v5393 = vpop.f32.mrf.mxu0
      %v5394 = vadd.f32 %v5330, %v5393
      %5395 = vmatmul.bf16.gmra.mxu0 %v4342
      %v5396 = vpop.f32.mrf.mxu0
      %v5397 = vadd.f32 %v5333, %v5396
      %v5398 = vpop.f32.mrf.mxu0
      %v5399 = vadd.f32 %v5335, %v5398
      %5400 = vmatmul.bf16.gmra.mxu0 %v4345
      %v5401 = vpop.f32.mrf.mxu0
      %v5402 = vadd.f32 %v5338, %v5401
      %v5403 = vpop.f32.mrf.mxu0
      %v5404 = vadd.f32 %v5340, %v5403
      %5405 = vmatmul.bf16.gmra.mxu0 %v4348
      %v5406 = vpop.f32.mrf.mxu0
      %v5407 = vadd.f32 %v5343, %v5406
      %v5408 = vpop.f32.mrf.mxu0
      %v5409 = vadd.f32 %v5345, %v5408
      %5410 = vmatmul.bf16.gmra.mxu0 %v4351
      %v5411 = vpop.f32.mrf.mxu0
      %v5412 = vadd.f32 %v5348, %v5411
      %v5413 = vpop.f32.mrf.mxu0
      %v5414 = vadd.f32 %v5350, %v5413
      %5415 = vdwg.mxu0
      %v5416 = vmax.f32 %v4978, 0.0
      %v5417 = vmax.f32 %v5170, 0.0
      %v5418 = vmax.f32 %v5362, 0.0
      %v5419 = vmax.f32 %v4980, 0.0
      %v5420 = vmax.f32 %v5172, 0.0
      %v5421 = vmax.f32 %v5364, 0.0
      %v5422 = vmax.f32 %v4983, 0.0
      %v5423 = vmax.f32 %v5175, 0.0
      %v5424 = vmax.f32 %v5367, 0.0
      %v5425 = vmax.f32 %v4985, 0.0
      %v5426 = vmax.f32 %v5177, 0.0
      %v5427 = vmax.f32 %v5369, 0.0
      %v5428 = vmax.f32 %v4988, 0.0
      %v5429 = vmax.f32 %v5180, 0.0
      %v5430 = vmax.f32 %v5372, 0.0
      %v5431 = vmax.f32 %v4990, 0.0
      %v5432 = vmax.f32 %v5182, 0.0
      %v5433 = vmax.f32 %v5374, 0.0
      %v5434 = vmax.f32 %v4993, 0.0
      %v5435 = vmax.f32 %v5185, 0.0
      %v5436 = vmax.f32 %v5377, 0.0
      %v5437 = vmax.f32 %v4995, 0.0
      %v5438 = vmax.f32 %v5187, 0.0
      %v5439 = vmax.f32 %v5379, 0.0
      %v5440 = vmax.f32 %v4998, 0.0
      %v5441 = vmax.f32 %v5190, 0.0
      %v5442 = vmax.f32 %v5382, 0.0
      %v5443 = vmax.f32 %v5000, 0.0
      %v5444 = vmax.f32 %v5192, 0.0
      %v5445 = vmax.f32 %v5384, 0.0
      %v5446 = vmax.f32 %v5003, 0.0
      %v5447 = vmax.f32 %v5195, 0.0
      %v5448 = vmax.f32 %v5387, 0.0
      %v5449 = vmax.f32 %v5005, 0.0
      %v5450 = vmax.f32 %v5197, 0.0
      %v5451 = vmax.f32 %v5389, 0.0
      %v5452 = vmax.f32 %v5008, 0.0
      %v5453 = vmax.f32 %v5200, 0.0
      %v5454 = vmax.f32 %v5392, 0.0
      %v5455 = vmax.f32 %v5010, 0.0
      %v5456 = vmax.f32 %v5202, 0.0
      %v5457 = vmax.f32 %v5394, 0.0
      %v5458 = vmax.f32 %v5013, 0.0
      %v5459 = vmax.f32 %v5205, 0.0
      %v5460 = vmax.f32 %v5397, 0.0
      %v5461 = vmax.f32 %v5015, 0.0
      %v5462 = vmax.f32 %v5207, 0.0
      %v5463 = vmax.f32 %v5399, 0.0
      %v5464 = vmax.f32 %v5018, 0.0
      %v5465 = vmax.f32 %v5210, 0.0
      %v5466 = vmax.f32 %v5402, 0.0
      %v5467 = vmax.f32 %v5020, 0.0
      %v5468 = vmax.f32 %v5212, 0.0
      %v5469 = vmax.f32 %v5404, 0.0
      %v5470 = vmax.f32 %v5023, 0.0
      %v5471 = vmax.f32 %v5215, 0.0
      %v5472 = vmax.f32 %v5407, 0.0
      %v5473 = vmax.f32 %v5025, 0.0
      %v5474 = vmax.f32 %v5217, 0.0
      %v5475 = vmax.f32 %v5409, 0.0
      %v5476 = vmax.f32 %v5028, 0.0
      %v5477 = vmax.f32 %v5220, 0.0
      %v5478 = vmax.f32 %v5412, 0.0
      %v5479 = vmax.f32 %v5030, 0.0
      %v5480 = vmax.f32 %v5222, 0.0
      %v5481 = vmax.f32 %v5414, 0.0
      %v5482 = vtanh.pop %v5416
      %v5483 = vtanh.pop %v5417
      %v5484 = vtanh.pop %v5418
      %v5485 = vtanh.pop %v5419
      %v5486 = vtanh.pop %v5420
      %v5487 = vtanh.pop %v5421
      %v5488 = vtanh.pop %v5422
      %v5489 = vtanh.pop %v5423
      %v5490 = vtanh.pop %v5424
      %v5491 = vtanh.pop %v5425
      %v5492 = vtanh.pop %v5426
      %v5493 = vtanh.pop %v5427
      %v5494 = vtanh.pop %v5428
      %v5495 = vtanh.pop %v5429
      %v5496 = vtanh.pop %v5430
      %v5497 = vtanh.pop %v5431
      %v5498 = vtanh.pop %v5432
      %v5499 = vtanh.pop %v5433
      %v5500 = vtanh.pop %v5434
      %v5501 = vtanh.pop %v5435
      %v5502 = vtanh.pop %v5436
      %v5503 = vtanh.pop %v5437
      %v5504 = vtanh.pop %v5438
      %v5505 = vtanh.pop %v5439
      %v5506 = vtanh.pop %v5440
      %v5507 = vtanh.pop %v5441
      %v5508 = vtanh.pop %v5442
      %v5509 = vtanh.pop %v5443
      %v5510 = vtanh.pop %v5444
      %v5511 = vtanh.pop %v5445
      %v5512 = vtanh.pop %v5446
      %v5513 = vtanh.pop %v5447
      %v5514 = vtanh.pop %v5448
      %v5515 = vtanh.pop %v5449
      %v5516 = vtanh.pop %v5450
      %v5517 = vtanh.pop %v5451
      %v5518 = vtanh.pop %v5452
      %v5519 = vtanh.pop %v5453
      %v5520 = vtanh.pop %v5454
      %v5521 = vtanh.pop %v5455
      %v5522 = vtanh.pop %v5456
      %v5523 = vtanh.pop %v5457
      %v5524 = vtanh.pop %v5458
      %v5525 = vtanh.pop %v5459
      %v5526 = vtanh.pop %v5460
      %v5527 = vtanh.pop %v5461
      %v5528 = vtanh.pop %v5462
      %v5529 = vtanh.pop %v5463
      %v5530 = vtanh.pop %v5464
      %v5531 = vtanh.pop %v5465
      %v5532 = vtanh.pop %v5466
      %v5533 = vtanh.pop %v5467
      %v5534 = vtanh.pop %v5468
      %v5535 = vtanh.pop %v5469
      %v5536 = vtanh.pop %v5470
      %v5537 = vtanh.pop %v5471
      %v5538 = vtanh.pop %v5472
      %v5539 = vtanh.pop %v5473
      %v5540 = vtanh.pop %v5474
      %v5541 = vtanh.pop %v5475
      %v5542 = vtanh.pop %v5476
      %v5543 = vtanh.pop %v5477
      %v5544 = vtanh.pop %v5478
      %v5545 = vtanh.pop %v5479
      %v5546 = vtanh.pop %v5480
      %v5547 = vtanh.pop %v5481
      %5548 = vst [vmem:[%s390] sm:$0xff] %v5482
      %5549 = vst [vmem:[%s390 + $0x8] sm:$0xff] %v5483
      %5550 = vst [vmem:[%s390 + $0x10] sm:$0xff] %v5484
      %5551 = vst [vmem:[%s390 + $0x18] sm:$0xff] %v5485
      %5552 = vst [vmem:[%s390 + $0x20] sm:$0xff] %v5486
      %5553 = vst [vmem:[%s390 + $0x28] sm:$0xff] %v5487
      %5554 = vst [vmem:[%s390 + $0x30] sm:$0xff] %v5488
      %5555 = vst [vmem:[%s390 + $0x38] sm:$0xff] %v5489
      %5556 = vst [vmem:[%s390 + $0x40] sm:$0xff] %v5490
      %5557 = vst [vmem:[%s390 + $0x48] sm:$0xff] %v5491
      %5558 = vst [vmem:[%s390 + $0x50] sm:$0xff] %v5492
      %5559 = vst [vmem:[%s390 + $0x58] sm:$0xff] %v5493
      %5560 = vst [vmem:[%s390 + $0x60] sm:$0xff] %v5494
      %5561 = vst [vmem:[%s390 + $0x68] sm:$0xff] %v5495
      %5562 = vst [vmem:[%s390 + $0x70] sm:$0xff] %v5496
      %5563 = vst [vmem:[%s390 + $0x78] sm:$0xff] %v5497
      %5564 = vst [vmem:[%s390 + $0x80] sm:$0xff] %v5498
      %5565 = vst [vmem:[%s390 + $0x88] sm:$0xff] %v5499
      %5566 = vst [vmem:[%s390 + $0x90] sm:$0xff] %v5500
      %5567 = vst [vmem:[%s390 + $0x98] sm:$0xff] %v5501
      %5568 = vst [vmem:[%s390 + $0xa0] sm:$0xff] %v5502
      %5569 = vst [vmem:[%s390 + $0xa8] sm:$0xff] %v5503
      %5570 = vst [vmem:[%s390 + $0xb0] sm:$0xff] %v5504
      %5571 = vst [vmem:[%s390 + $0xb8] sm:$0xff] %v5505
      %5572 = vst [vmem:[%s390 + $0xc0] sm:$0xff] %v5506
      %5573 = vst [vmem:[%s390 + $0xc8] sm:$0xff] %v5507
      %5574 = vst [vmem:[%s390 + $0xd0] sm:$0xff] %v5508
      %5575 = vst [vmem:[%s390 + $0xd8] sm:$0xff] %v5509
      %5576 = vst [vmem:[%s390 + $0xe0] sm:$0xff] %v5510
      %5577 = vst [vmem:[%s390 + $0xe8] sm:$0xff] %v5511
      %5578 = vst [vmem:[%s390 + $0xf0] sm:$0xff] %v5512
      %5579 = vst [vmem:[%s390 + $0xf8] sm:$0xff] %v5513
      %5580 = vst [vmem:[%s390 + $0x100] sm:$0xff] %v5514
      %5581 = vst [vmem:[%s390 + $0x108] sm:$0xff] %v5515
      %5582 = vst [vmem:[%s390 + $0x110] sm:$0xff] %v5516
      %5583 = vst [vmem:[%s390 + $0x118] sm:$0xff] %v5517
      %5584 = vst [vmem:[%s390 + $0x120] sm:$0xff] %v5518
      %5585 = vst [vmem:[%s390 + $0x128] sm:$0xff] %v5519
      %5586 = vst [vmem:[%s390 + $0x130] sm:$0xff] %v5520
      %5587 = vst [vmem:[%s390 + $0x138] sm:$0xff] %v5521
      %5588 = vst [vmem:[%s390 + $0x140] sm:$0xff] %v5522
      %5589 = vst [vmem:[%s390 + $0x148] sm:$0xff] %v5523
      %5590 = vst [vmem:[%s390 + $0x150] sm:$0xff] %v5524
      %5591 = vst [vmem:[%s390 + $0x158] sm:$0xff] %v5525
      %5592 = vst [vmem:[%s390 + $0x160] sm:$0xff] %v5526
      %5593 = vst [vmem:[%s390 + $0x168] sm:$0xff] %v5527
      %5594 = vst [vmem:[%s390 + $0x170] sm:$0xff] %v5528
      %5595 = vst [vmem:[%s390 + $0x178] sm:$0xff] %v5529
      %5596 = vst [vmem:[%s390 + $0x180] sm:$0xff] %v5530
      %5597 = vst [vmem:[%s390 + $0x188] sm:$0xff] %v5531
      %5598 = vst [vmem:[%s390 + $0x190] sm:$0xff] %v5532
      %5599 = vst [vmem:[%s390 + $0x198] sm:$0xff] %v5533
      %5600 = vst [vmem:[%s390 + $0x1a0] sm:$0xff] %v5534
      %5601 = vst [vmem:[%s390 + $0x1a8] sm:$0xff] %v5535
      %5602 = vst [vmem:[%s390 + $0x1b0] sm:$0xff] %v5536
      %5603 = vst [vmem:[%s390 + $0x1b8] sm:$0xff] %v5537
      %5604 = vst [vmem:[%s390 + $0x1c0] sm:$0xff] %v5538
      %5605 = vst [vmem:[%s390 + $0x1c8] sm:$0xff] %v5539
      %5606 = vst [vmem:[%s390 + $0x1d0] sm:$0xff] %v5540
      %5607 = vst [vmem:[%s390 + $0x1d8] sm:$0xff] %v5541
      %5608 = vst [vmem:[%s390 + $0x1e0] sm:$0xff] %v5542
      %5609 = vst [vmem:[%s390 + $0x1e8] sm:$0xff] %v5543
      %5610 = vst [vmem:[%s390 + $0x1f0] sm:$0xff] %v5544
      %5611 = vst [vmem:[%s390 + $0x1f8] sm:$0xff] %v5545
      %5612 = vst [vmem:[%s390 + $0x200] sm:$0xff] %v5546
      %5613 = vst [vmem:[%s390 + $0x208] sm:$0xff] %v5547
      %s5614 = smul.u32 22, %s22
      %p5615 = scmp.lt.s32.totalorder %s5614, 87
      %s5616 = scalar_select %p5615, %s5614, 87
      %s5617 = smul.addr %s5616, 3
      %s5618 = smul.addr %s5617, 8
      %s5619 = scalar_lea.vmem %s11, %s5618
      // Predicated region
      $region65: #{model_tanh_forward.1} parent=63 // pred_check
        %p5620 = pneg %p276
      $region66: #{model_tanh_forward.1} parent=63 // pred_check_branch
        %5622 = sbr.rel (%p5620) target = $region68
      $region67: #{model_tanh_forward.1} parent=63 // pred_region
        %s5623 = smul.u32 22, %s22
      $region68: #{model_tanh_forward.1} parent=63 // pred_fallthru
        _
    $region64: #{model_tanh_forward.1} parent=5 // pred_fallthru
      _
    %p5624 = scmp.le.s32.totalorder 2, %s17
    // Predicated region
    $region69: #{model_tanh_forward.1} parent=5 // pred_check
      %p5625 = pneg %p5624
    $region70: #{model_tanh_forward.1} parent=5 // pred_check_branch
      %5627 = sbr.rel (%p5625) target = $region72
    $region71: #{model_tanh_forward.1} parent=5 // pred_region
      %s5628 = ssub.s32 %s17, 2
      // Predicated region
      $region73: #{model_tanh_forward.1} parent=71 // pred_check
        %p5629 = pneg %p282
      $region74: #{model_tanh_forward.1} parent=71 // pred_check_branch
        %5631 = sbr.rel (%p5629) target = $region76
      $region75: #{model_tanh_forward.1} parent=71 // pred_region
        %s5632 = smul.u32 22, %s23
        %p5633 = scmp.lt.s32.totalorder %s5632, 87
        %s5634 = scalar_select %p5633, %s5632, 87
        %s5635 = smul.addr %s5634, 3
        %s5636 = smul.addr %s5635, 8
        %s5637 = scalar_lea.vmem %s11, %s5636
      $region76: #{model_tanh_forward.1} parent=71 // pred_fallthru
        _
    $region72: #{model_tanh_forward.1} parent=5 // pred_fallthru
      _
  $region6: #{model_tanh_forward.1} parent=0 // loop_footer
    %s21 = sadd.s32 1, %s17
  $region7: #{model_tanh_forward.1} parent=0 // loop_footer_branch
    %16 = sbr.rel target = $region3
  $region8: #{model_tanh_forward.1} parent=0 // loop_exit
    _

</llo_original>
